<compile_context>
chip_gen: v7x
topology: tpu7x:2x2x1
jax: 0.10.0
libtpu: 0.0.40
codegen_flags: <defaults>
</compile_context>

<pallas_src>
import jax
import jax.numpy as jnp
import numpy as np
from jax.experimental import pallas as pl
from jax.experimental.pallas import tpu as pltpu


# ------------------------------ kernel helpers ------------------------------ #

def _layer_norm(x, gamma, beta, eps=1e-5):
    mean = jnp.mean(x, axis=-1, keepdims=True)
    var = jnp.mean((x - mean) ** 2, axis=-1, keepdims=True)
    return (x - mean) * jax.lax.rsqrt(var + eps) * gamma + beta


def _gelu_exact(x):
    # PyTorch nn.GELU() default: exact (erf-based) GELU, computed in f32.
    return 0.5 * x * (1.0 + jax.lax.erf(x * 0.7071067811865476))


def _make_decoder_kernel(n_heads, d_k, compute_dtype, with_attn_weights):
    """Fused stack of DecodeLayers.  grid = (batch_blocks, n_layers)."""

    def kernel(*refs):
        (x_ref, pad_ref, wqkv_ref, bqkv_ref, wo_ref, bo_ref,
         g1_ref, be1_ref, w1_ref, b1_ref, w2_ref, b2_ref,
         g2_ref, be2_ref) = refs[:14]
        n_out = 2 if with_attn_weights else 1
        out_ref = refs[14]
        attnw_ref = refs[15] if with_attn_weights else None
        mask_sc = refs[14 + n_out]
        merge_sc = refs[15 + n_out]

        layer = pl.program_id(1)
        Bt, S, D = out_ref.shape
        H, dk = n_heads, d_k
        N = Bt * S
        cd = compute_dtype

        # Layer 0: seed the resident activation and build the causal+pad mask
        # ONCE per batch block; both persist across the "arbitrary" layer axis.
        @pl.when(layer == 0)
        def _():
            out_ref[...] = x_ref[...]
            row = jax.lax.broadcasted_iota(jnp.int32, (S, S), 0)
            col = jax.lax.broadcasted_iota(jnp.int32, (S, S), 1)
            causal = col > row                                  # (S, S)
            pad = pad_ref[...][:, 0, :] > 0.0                   # (Bt, S)
            m = jnp.logical_or(causal[None, :, :], pad[:, None, :])
            mask_sc[...] = jnp.where(m, jnp.float32(1.0), jnp.float32(0.0))

        x2d = out_ref[...].reshape(N, D)                        # (N, D) f32
        masked = mask_sc[...] > 0.5                             # (Bt, S, S)

        # ---- fused QKV projection: ONE (N,D)@(D,3D) MXU matmul ---------------
        qkv = jnp.dot(x2d.astype(cd), wqkv_ref[0],
                      preferred_element_type=jnp.float32) + bqkv_ref[0]
        qkv_c = qkv.astype(cd)                                  # (N, 3D)

        # ---- per-head scaled dot-product attention ---------------------------
        # (score / PV matmuls are inherently K=d_k; the loop is unrolled and the
        #  per-head context lands directly in its lane slice of merge_sc.)
        scale = float(1.0 / (dk ** 0.5))
        for h in range(H):
            q_h = qkv_c[:, h * dk:(h + 1) * dk].reshape(Bt, S, dk)
            k_h = qkv_c[:, D + h * dk:D + (h + 1) * dk].reshape(Bt, S, dk)
            v_h = qkv_c[:, 2 * D + h * dk:2 * D + (h + 1) * dk].reshape(Bt, S, dk)

            s = jnp.einsum("bqd,bkd->bqk", q_h, k_h,
                           preferred_element_type=jnp.float32) * scale
            s = jnp.where(masked, jnp.float32(-1e9), s)         # masked_fill_
            s = s - jnp.max(s, axis=-1, keepdims=True)
            e = jnp.exp(s)
            aw = e * pl.reciprocal(jnp.sum(e, axis=-1, keepdims=True),
                                   approx=True)                 # (Bt, S, S)
            if with_attn_weights:
                attnw_ref[0, h] = aw

            ctx = jnp.einsum("bqk,bkd->bqd", aw.astype(cd), v_h,
                             preferred_element_type=jnp.float32)  # (Bt, S, dk)
            merge_sc[:, h * dk:(h + 1) * dk] = ctx.reshape(N, dk).astype(cd)

        # ---- output projection: ONE (N,D)@(D,D) matmul (K = H*d_k = D) -------
        attn = jnp.dot(merge_sc[...], wo_ref[0],
                       preferred_element_type=jnp.float32) + bo_ref[0]

        # ---- residual + LayerNorm, GELU FFN, residual + LayerNorm (all f32) --
        x1 = _layer_norm(attn + x2d, g1_ref[0], be1_ref[0])
        h1 = _gelu_exact(jnp.dot(x1.astype(cd), w1_ref[0],
                                 preferred_element_type=jnp.float32) + b1_ref[0])
        h2 = jnp.dot(h1.astype(cd), w2_ref[0],
                     preferred_element_type=jnp.float32) + b2_ref[0]
        y = _layer_norm(h2 + x1, g2_ref[0], be2_ref[0])

        out_ref[...] = y.reshape(Bt, S, D)

    return kernel


# ------------------------------- host wrapper ------------------------------- #

def _choose_block_b(batch, seq, target_rows=1024):
    """Largest divisor Bt of `batch` with Bt*seq <= target_rows.

    All layer weights are re-streamed once per batch block, so bigger blocks
    mean less weight DMA (the kernel is weight-DMA-bound at small blocks).
    # TODO(synk): on v7x prefer >= 2 batch grid steps so both TensorCores work.
    """
    best = 1
    for bt in range(1, batch + 1):
        if batch % bt == 0 and bt * seq <= target_rows:
            best = bt
    return best


def _vmem_limit_bytes():
    """~85% of the chip's physical VMEM (clamped); the 16/32 MiB scoped
    defaults are hit long before physical VMEM on v5e/v6e, and v7x needs an
    explicit budget under its 64 MiB."""
    try:
        cap = pltpu.get_tpu_info().vmem_capacity_bytes
    except Exception:
        cap = 64 << 20
    return max(32 << 20, min(int(cap * 0.85), 112 << 20))


def transformer_decoder_pallas(inputs, params, pad_id, n_heads, *,
                               compute_dtype=jnp.float32,
                               return_attn_weights=True):
    """Full TransformerDecoder forward.  inputs: (B, S) int32 token ids."""
    B, S = inputs.shape
    emb, pos_emb = params["emb"], params["pos_emb"]
    D = emb.shape[1]
    st = params["layers"]
    L = st["wq"].shape[0]
    d_k = D // n_heads
    cd = compute_dtype

    # Embedding + positions (plain-JAX gather glue).  embd dropout = identity.
    positions = jnp.broadcast_to(jnp.arange(S, dtype=jnp.int32) + 1, (B, S))
    positions = jnp.where(inputs == pad_id, 0, positions)
    x = emb[inputs] + pos_emb[positions]                        # (B, S, D) f32

    # Only the pad row ships to the kernel; the (S,S) causal+pad mask is built
    # in-kernel once per batch block (no B*S*S HBM traffic).
    pad_f = (inputs == pad_id).astype(jnp.float32).reshape(B, 1, S)

    # Fused QKV weight/bias (single full-width projection).  Matmul weights are
    # cast to the compute dtype on the host (halves weight DMA on bf16 path);
    # biases and LayerNorm params stay f32.
    wqkv = jnp.concatenate([st["wq"], st["wk"], st["wv"]], axis=-1).astype(cd)
    bqkv = jnp.concatenate([st["bq"], st["bk"], st["bv"]], axis=-1)
    weights = (wqkv, bqkv, st["wo"].astype(cd), st["bo"],
               st["ln1_g"], st["ln1_b"],
               st["w1"].astype(cd), st["b1"],
               st["w2"].astype(cd), st["b2"],
               st["ln2_g"], st["ln2_b"])

    Bt = _choose_block_b(B, S)
    grid = (B // Bt, L)

    def per_layer_spec(arr):
        nd = arr.ndim - 1
        return pl.BlockSpec((1,) + arr.shape[1:],
                            lambda b, l, nd=nd: (l,) + (0,) * nd)

    in_specs = [
        pl.BlockSpec((Bt, S, D), lambda b, l: (b, 0, 0)),   # x (resident over l)
        pl.BlockSpec((Bt, 1, S), lambda b, l: (b, 0, 0)),   # pad row
    ] + [per_layer_spec(w) for w in weights]

    out_specs = [pl.BlockSpec((Bt, S, D), lambda b, l: (b, 0, 0))]
    out_shape = [jax.ShapeDtypeStruct((B, S, D), jnp.float32)]
    if return_attn_weights:
        out_specs.append(
            pl.BlockSpec((1, n_heads, Bt, S, S), lambda b, l: (l, 0, b, 0, 0)))
        out_shape.append(
            jax.ShapeDtypeStruct((L, n_heads, B, S, S), jnp.float32))

    scratch_shapes = [
        pltpu.VMEM((Bt, S, S), jnp.float32),     # causal+pad mask (layer 0)
        pltpu.VMEM((Bt * S, D), cd),             # merged-head context buffer
    ]

    kernel = _make_decoder_kernel(n_heads, d_k, cd, return_attn_weights)
    outs = pl.pallas_call(
        kernel,
        grid=grid,
        in_specs=in_specs,
        out_specs=tuple(out_specs),
        out_shape=tuple(out_shape),
        scratch_shapes=scratch_shapes,
        compiler_params=pltpu.CompilerParams(
            dimension_semantics=("parallel", "arbitrary"),
            vmem_limit_bytes=_vmem_limit_bytes()),
    )(x, pad_f, *weights)

    if return_attn_weights:
        out, aw_all = outs
        # Kernel emits (L, H, B, S, S); the module returns per-layer (B, H, S, S).
        # TODO(synk): emit (L, B, H, S, S) directly from the kernel to drop this swap.
        return out, [jnp.swapaxes(aw_all[i], 0, 1) for i in range(L)]
    (out,) = outs
    return out, None


# --------------------------- pure-JAX reference ----------------------------- #

def reference_decoder(inputs, params, pad_id, n_heads):
    B, S = inputs.shape
    positions = jnp.broadcast_to(jnp.arange(S, dtype=jnp.int32) + 1, (B, S))
    positions = jnp.where(inputs == pad_id, 0, positions)
    x = params["emb"][inputs] + params["pos_emb"][positions]
    att_mask = ((inputs == pad_id)[:, None, :]
                | jnp.triu(jnp.ones((S, S), bool), k=1)[None])

    def ln(v, g, b):
        m = v.mean(-1, keepdims=True)
        var = ((v - m) ** 2).mean(-1, keepdims=True)
        return (v - m) / jnp.sqrt(var + 1e-5) * g + b

    st = params["layers"]
    L = st["wq"].shape[0]
    D = x.shape[-1]
    d_k = D // n_heads
    aws = []
    for i in range(L):
        q = (x @ st["wq"][i] + st["bq"][i]).reshape(B, S, n_heads, d_k).transpose(0, 2, 1, 3)
        k = (x @ st["wk"][i] + st["bk"][i]).reshape(B, S, n_heads, d_k).transpose(0, 2, 1, 3)
        v = (x @ st["wv"][i] + st["bv"][i]).reshape(B, S, n_heads, d_k).transpose(0, 2, 1, 3)
        s = jnp.einsum("bhqd,bhkd->bhqk", q, k) / d_k ** 0.5
        s = jnp.where(att_mask[:, None], -1e9, s)
        w = jax.nn.softmax(s, axis=-1)
        aws.append(w)
        attn = jnp.einsum("bhqk,bhkd->bhqd", w, v).transpose(0, 2, 1, 3).reshape(B, S, D)
        attn = attn @ st["wo"][i] + st["bo"][i]
        x1 = ln(attn + x, st["ln1_g"][i], st["ln1_b"][i])
        h1 = jax.nn.gelu(x1 @ st["w1"][i] + st["b1"][i], approximate=False)
        h2 = h1 @ st["w2"][i] + st["b2"][i]
        x = ln(h2 + x1, st["ln2_g"][i], st["ln2_b"][i])
    return x, aws


# ------------------------------- param init --------------------------------- #

def init_params(key, vocab_size, seq_len, n_layers, d_model, d_ff):
    ks = jax.random.split(key, 8)

    def nrm(k, shape):
        return 0.02 * jax.random.normal(k, shape, jnp.float32)

    zeros_d = jnp.zeros((n_layers, 1, d_model), jnp.float32)
    ones_d = jnp.ones((n_layers, 1, d_model), jnp.float32)
    layers = {
        "wq": nrm(ks[2], (n_layers, d_model, d_model)), "bq": zeros_d,
        "wk": nrm(ks[3], (n_layers, d_model, d_model)), "bk": zeros_d,
        "wv": nrm(ks[4], (n_layers, d_model, d_model)), "bv": zeros_d,
        "wo": nrm(ks[5], (n_layers, d_model, d_model)), "bo": zeros_d,
        "ln1_g": ones_d, "ln1_b": zeros_d,
        "w1": nrm(ks[6], (n_layers, d_model, d_ff)),
        "b1": jnp.zeros((n_layers, 1, d_ff), jnp.float32),
        "w2": nrm(ks[7], (n_layers, d_ff, d_model)), "b2": zeros_d,
        "ln2_g": ones_d, "ln2_b": zeros_d,
    }
    return {"emb": nrm(ks[0], (vocab_size, d_model)),
            "pos_emb": nrm(ks[1], (seq_len + 1, d_model)),
            "layers": layers}


# ---------------------------------- main ------------------------------------ #

if __name__ == "__main__":
    vocab_size, seq_len, n_layers = 50, 8, 2
    d_model, n_heads, d_ff = 32, 4, 64
    pad_id = 0
    B, S = 2, seq_len

    key = jax.random.PRNGKey(0)
    pkey, dkey = jax.random.split(key)
    params = init_params(pkey, vocab_size, seq_len, n_layers, d_model, d_ff)

    inputs = jax.random.randint(dkey, (B, S), 1, vocab_size, dtype=jnp.int32)
    inputs = inputs.at[1, -2:].set(pad_id)   # pad tokens to exercise the pad mask

    # f32 path with attention weights (matches PyTorch module return).
    out, attn_ws = transformer_decoder_pallas(inputs, params, pad_id, n_heads)
    out = jax.block_until_ready(out)
    attn_ws = [jax.block_until_ready(a) for a in attn_ws]

    ref_out, ref_ws = reference_decoder(inputs, params, pad_id, n_heads)
    np.testing.assert_allclose(np.asarray(out), np.asarray(ref_out),
                               rtol=2e-3, atol=2e-3)
    for a, r in zip(attn_ws, ref_ws):
        np.testing.assert_allclose(np.asarray(a), np.asarray(r),
                                   rtol=2e-3, atol=2e-3)

    # bf16-MXU fast path (works on v5e/v6e/v7x: bf16 operands, f32 accumulation)
    # with the optional attention-weights output disabled (dominant HBM write
    # at realistic sizes).  Looser tolerance by design.
    out_bf16, _ = transformer_decoder_pallas(
        inputs, params, pad_id, n_heads,
        compute_dtype=jnp.bfloat16, return_attn_weights=False)
    out_bf16 = jax.block_until_ready(out_bf16)
    np.testing.assert_allclose(np.asarray(out_bf16), np.asarray(ref_out),
                               rtol=1e-1, atol=1e-1)

    print("KERNEL_OK")
</pallas_src>

<mosaic_0001>
module attributes {stable_mosaic.version = 11 : i64} {
  func.func @kernel(%arg0: i32, %arg1: i32, %arg2: memref<2x8x32xf32, #tpu.memory_space<vmem>>, %arg3: memref<2x1x8xf32, #tpu.memory_space<vmem>>, %arg4: memref<1x32x96xf32, #tpu.memory_space<vmem>>, %arg5: memref<1x1x96xf32, #tpu.memory_space<vmem>>, %arg6: memref<1x32x32xf32, #tpu.memory_space<vmem>>, %arg7: memref<1x1x32xf32, #tpu.memory_space<vmem>>, %arg8: memref<1x1x32xf32, #tpu.memory_space<vmem>>, %arg9: memref<1x1x32xf32, #tpu.memory_space<vmem>>, %arg10: memref<1x32x64xf32, #tpu.memory_space<vmem>>, %arg11: memref<1x1x64xf32, #tpu.memory_space<vmem>>, %arg12: memref<1x64x32xf32, #tpu.memory_space<vmem>>, %arg13: memref<1x1x32xf32, #tpu.memory_space<vmem>>, %arg14: memref<1x1x32xf32, #tpu.memory_space<vmem>>, %arg15: memref<1x1x32xf32, #tpu.memory_space<vmem>>, %arg16: memref<2x8x32xf32, #tpu.memory_space<vmem>>, %arg17: memref<1x4x2x8x8xf32, #tpu.memory_space<vmem>>, %arg18: memref<2x8x8xf32, #tpu.memory_space<vmem>>, %arg19: memref<16x32xf32, #tpu.memory_space<vmem>>) attributes {dimension_semantics = [#tpu.dimension_semantics<parallel>, #tpu.dimension_semantics<arbitrary>], iteration_bounds = array<i64: 1, 2>, scalar_prefetch = 0 : i64, scratch_operands = 2 : i64, tpu.core_type = #tpu.core_type<tc>, window_params = [{transform_indices = @transform_0, window_bounds = array<i64: 2, 8, 32>}, {transform_indices = @transform_1, window_bounds = array<i64: 2, 1, 8>}, {transform_indices = @transform_2, window_bounds = array<i64: 1, 32, 96>}, {transform_indices = @transform_3, window_bounds = array<i64: 1, 1, 96>}, {transform_indices = @transform_4, window_bounds = array<i64: 1, 32, 32>}, {transform_indices = @transform_5, window_bounds = array<i64: 1, 1, 32>}, {transform_indices = @transform_6, window_bounds = array<i64: 1, 1, 32>}, {transform_indices = @transform_7, window_bounds = array<i64: 1, 1, 32>}, {transform_indices = @transform_8, window_bounds = array<i64: 1, 32, 64>}, {transform_indices = @transform_9, window_bounds = array<i64: 1, 1, 64>}, {transform_indices = @transform_10, window_bounds = array<i64: 1, 64, 32>}, {transform_indices = @transform_11, window_bounds = array<i64: 1, 1, 32>}, {transform_indices = @transform_12, window_bounds = array<i64: 1, 1, 32>}, {transform_indices = @transform_13, window_bounds = array<i64: 1, 1, 32>}, {transform_indices = @transform_14, window_bounds = array<i64: 2, 8, 32>}, {transform_indices = @transform_15, window_bounds = array<i64: 1, 4, 2, 8, 8>}]} {
    %c0_i32 = arith.constant 0 : i32
    %0 = arith.cmpi eq, %arg1, %c0_i32 : i32
    %1 = arith.extui %0 : i1 to i32
    %c0_i32_0 = arith.constant 0 : i32
    %2 = arith.cmpi ne, %1, %c0_i32_0 : i32
    scf.if %2 {
      %c0_110 = arith.constant 0 : index
      %c0_111 = arith.constant 0 : index
      %c0_112 = arith.constant 0 : index
      %209 = vector.load %arg2[%c0_110, %c0_111, %c0_112] : memref<2x8x32xf32, #tpu.memory_space<vmem>>, vector<2x8x32xf32>
      %c0_113 = arith.constant 0 : index
      %c0_114 = arith.constant 0 : index
      %c0_115 = arith.constant 0 : index
      %210 = vector.load %arg16[%c0_113, %c0_114, %c0_115] : memref<2x8x32xf32, #tpu.memory_space<vmem>>, vector<2x8x32xf32>
      tpu.vector_store %arg16[%c0_113, %c0_114, %c0_115], %209 {strides = array<i32>} : memref<2x8x32xf32, #tpu.memory_space<vmem>>, vector<2x8x32xf32>,
      %211 = tpu.iota {dimensions = array<i32: 0>} : vector<8x8xi32>
      %212 = tpu.iota {dimensions = array<i32: 1>} : vector<8x8xi32>
      %213 = arith.cmpi sgt, %212, %211 : vector<8x8xi32>
      %c0_116 = arith.constant 0 : index
      %c0_117 = arith.constant 0 : index
      %c0_118 = arith.constant 0 : index
      %214 = vector.load %arg3[%c0_116, %c0_117, %c0_118] : memref<2x1x8xf32, #tpu.memory_space<vmem>>, vector<2x1x8xf32>
      %215 = vector.shape_cast %214 : vector<2x1x8xf32> to vector<2x8xf32>
      %cst_119 = arith.constant 0.000000e+00 : f32
      %216 = vector.broadcast %cst_119 : f32 to vector<2x8xf32>
      %217 = arith.cmpf ogt, %215, %216 : vector<2x8xf32>
      %218 = vector.shape_cast %213 : vector<8x8xi1> to vector<1x8x8xi1>
      %219 = vector.shape_cast %217 : vector<2x8xi1> to vector<2x1x8xi1>
      %220 = vector.broadcast %218 : vector<1x8x8xi1> to vector<2x8x8xi1>
      %221 = vector.broadcast %219 : vector<2x1x8xi1> to vector<2x8x8xi1>
      %222 = arith.ori %220, %221 : vector<2x8x8xi1>
      %cst_120 = arith.constant 1.000000e+00 : f32
      %cst_121 = arith.constant 0.000000e+00 : f32
      %223 = vector.broadcast %cst_120 : f32 to vector<2x8x8xf32>
      %224 = vector.broadcast %cst_121 : f32 to vector<2x8x8xf32>
      %225 = arith.select %222, %223, %224 : vector<2x8x8xi1>, vector<2x8x8xf32>
      %c0_122 = arith.constant 0 : index
      %c0_123 = arith.constant 0 : index
      %c0_124 = arith.constant 0 : index
      %226 = vector.load %arg18[%c0_122, %c0_123, %c0_124] : memref<2x8x8xf32, #tpu.memory_space<vmem>>, vector<2x8x8xf32>
      tpu.vector_store %arg18[%c0_122, %c0_123, %c0_124], %225 {strides = array<i32>} : memref<2x8x8xf32, #tpu.memory_space<vmem>>, vector<2x8x8xf32>,
    } else {
    }
    %c0 = arith.constant 0 : index
    %c0_1 = arith.constant 0 : index
    %c0_2 = arith.constant 0 : index
    %3 = vector.load %arg16[%c0, %c0_1, %c0_2] : memref<2x8x32xf32, #tpu.memory_space<vmem>>, vector<2x8x32xf32>
    %4 = vector.shape_cast %3 : vector<2x8x32xf32> to vector<16x32xf32>
    %c0_3 = arith.constant 0 : index
    %c0_4 = arith.constant 0 : index
    %c0_5 = arith.constant 0 : index
    %5 = vector.load %arg18[%c0_3, %c0_4, %c0_5] : memref<2x8x8xf32, #tpu.memory_space<vmem>>, vector<2x8x8xf32>
    %cst = arith.constant 5.000000e-01 : f32
    %6 = vector.broadcast %cst : f32 to vector<2x8x8xf32>
    %7 = arith.cmpf ogt, %5, %6 : vector<2x8x8xf32>
    %c0_6 = arith.constant 0 : index
    %c0_7 = arith.constant 0 : index
    %c0_8 = arith.constant 0 : index
    %8 = vector.load %arg4[%c0_6, %c0_7, %c0_8] : memref<1x32x96xf32, #tpu.memory_space<vmem>>, vector<1x32x96xf32>
    %9 = vector.shape_cast %8 : vector<1x32x96xf32> to vector<32x96xf32>
    %cst_9 = arith.constant dense<0.000000e+00> : vector<16x96xf32>
    %10 = tpu.matmul %4, %9, %cst_9 {dimension_numbers = #tpu.dot_dimension_numbers<[1], [0], [0], [1], [0, 0, 1, 1], [], []>} : vector<16x32xf32>, vector<32x96xf32>, vector<16x96xf32> -> vector<16x96xf32>
    %c0_10 = arith.constant 0 : index
    %c0_11 = arith.constant 0 : index
    %c0_12 = arith.constant 0 : index
    %11 = vector.load %arg5[%c0_10, %c0_11, %c0_12] : memref<1x1x96xf32, #tpu.memory_space<vmem>>, vector<1x1x96xf32>
    %12 = vector.shape_cast %11 : vector<1x1x96xf32> to vector<1x96xf32>
    %13 = vector.broadcast %12 : vector<1x96xf32> to vector<16x96xf32>
    %14 = arith.addf %10, %13 : vector<16x96xf32>
    %15 = vector.extract_strided_slice %14 {offsets = [0, 0], sizes = [16, 8], strides = [1, 1]} : vector<16x96xf32> to vector<16x8xf32>
    %16 = vector.shape_cast %15 : vector<16x8xf32> to vector<2x8x8xf32>
    %17 = vector.extract_strided_slice %14 {offsets = [0, 32], sizes = [16, 8], strides = [1, 1]} : vector<16x96xf32> to vector<16x8xf32>
    %18 = vector.shape_cast %17 : vector<16x8xf32> to vector<2x8x8xf32>
    %19 = vector.extract_strided_slice %14 {offsets = [0, 64], sizes = [16, 8], strides = [1, 1]} : vector<16x96xf32> to vector<16x8xf32>
    %20 = vector.shape_cast %19 : vector<16x8xf32> to vector<2x8x8xf32>
    "tpu.trace_start"() <{level = 10 : i32, message = "bqd,bkd->bqk"}> : () -> ()
    %cst_13 = arith.constant dense<0.000000e+00> : vector<2x8x8xf32>
    %21 = tpu.matmul %16, %18, %cst_13 {dimension_numbers = #tpu.dot_dimension_numbers<[2], [2], [1], [1], [0, 0, 0, 1, 1, 1], [0], [0]>} : vector<2x8x8xf32>, vector<2x8x8xf32>, vector<2x8x8xf32> -> vector<2x8x8xf32>
    "tpu.trace_stop"() : () -> ()
    %cst_14 = arith.constant 0.353553385 : f32
    %22 = vector.broadcast %cst_14 : f32 to vector<2x8x8xf32>
    %23 = arith.mulf %21, %22 : vector<2x8x8xf32>
    %cst_15 = arith.constant -1.000000e+09 : f32
    %24 = vector.broadcast %cst_15 : f32 to vector<2x8x8xf32>
    %25 = arith.select %7, %24, %23 : vector<2x8x8xi1>, vector<2x8x8xf32>
    %cst_16 = arith.constant dense<0xFF800000> : vector<2x8xf32>
    %26 = vector.multi_reduction <maximumf>, %25, %cst_16 [2] : vector<2x8x8xf32> to vector<2x8xf32>
    %27 = vector.shape_cast %26 : vector<2x8xf32> to vector<2x8x1xf32>
    %28 = vector.broadcast %27 : vector<2x8x1xf32> to vector<2x8x8xf32>
    %29 = arith.subf %25, %28 : vector<2x8x8xf32>
    %30 = math.exp %29 : vector<2x8x8xf32>
    %cst_17 = arith.constant dense<0.000000e+00> : vector<2x8xf32>
    %31 = vector.multi_reduction <add>, %30, %cst_17 [2] : vector<2x8x8xf32> to vector<2x8xf32>
    %32 = vector.shape_cast %31 : vector<2x8xf32> to vector<2x8x1xf32>
    %33 = tpu.reciprocal %32 {approx = true} : vector<2x8x1xf32> -> vector<2x8x1xf32>
    %34 = vector.broadcast %33 : vector<2x8x1xf32> to vector<2x8x8xf32>
    %35 = arith.mulf %30, %34 : vector<2x8x8xf32>
    %c0_18 = arith.constant 0 : index
    %c0_19 = arith.constant 0 : index
    %c0_20 = arith.constant 0 : index
    %c0_21 = arith.constant 0 : index
    %c0_22 = arith.constant 0 : index
    %36 = vector.load %arg17[%c0_18, %c0_19, %c0_20, %c0_21, %c0_22] : memref<1x4x2x8x8xf32, #tpu.memory_space<vmem>>, vector<1x1x2x8x8xf32>
    %37 = vector.shape_cast %36 : vector<1x1x2x8x8xf32> to vector<2x8x8xf32>
    %38 = vector.shape_cast %35 : vector<2x8x8xf32> to vector<1x1x2x8x8xf32>
    tpu.vector_store %arg17[%c0_18, %c0_19, %c0_20, %c0_21, %c0_22], %38 {strides = array<i32>} : memref<1x4x2x8x8xf32, #tpu.memory_space<vmem>>, vector<1x1x2x8x8xf32>,
    "tpu.trace_start"() <{level = 10 : i32, message = "bqk,bkd->bqd"}> : () -> ()
    %cst_23 = arith.constant dense<0.000000e+00> : vector<2x8x8xf32>
    %39 = tpu.matmul %35, %20, %cst_23 {dimension_numbers = #tpu.dot_dimension_numbers<[2], [1], [1], [2], [0, 0, 0, 1, 1, 2], [0], [0]>} : vector<2x8x8xf32>, vector<2x8x8xf32>, vector<2x8x8xf32> -> vector<2x8x8xf32>
    "tpu.trace_stop"() : () -> ()
    %40 = vector.shape_cast %39 : vector<2x8x8xf32> to vector<16x8xf32>
    %c0_24 = arith.constant 0 : index
    %c0_25 = arith.constant 0 : index
    %41 = vector.load %arg19[%c0_24, %c0_25] : memref<16x32xf32, #tpu.memory_space<vmem>>, vector<16x8xf32>
    tpu.vector_store %arg19[%c0_24, %c0_25], %40 {strides = array<i32>} : memref<16x32xf32, #tpu.memory_space<vmem>>, vector<16x8xf32>,
    %42 = vector.extract_strided_slice %14 {offsets = [0, 8], sizes = [16, 8], strides = [1, 1]} : vector<16x96xf32> to vector<16x8xf32>
    %43 = vector.shape_cast %42 : vector<16x8xf32> to vector<2x8x8xf32>
    %44 = vector.extract_strided_slice %14 {offsets = [0, 40], sizes = [16, 8], strides = [1, 1]} : vector<16x96xf32> to vector<16x8xf32>
    %45 = vector.shape_cast %44 : vector<16x8xf32> to vector<2x8x8xf32>
    %46 = vector.extract_strided_slice %14 {offsets = [0, 72], sizes = [16, 8], strides = [1, 1]} : vector<16x96xf32> to vector<16x8xf32>
    %47 = vector.shape_cast %46 : vector<16x8xf32> to vector<2x8x8xf32>
    "tpu.trace_start"() <{level = 10 : i32, message = "bqd,bkd->bqk"}> : () -> ()
    %cst_26 = arith.constant dense<0.000000e+00> : vector<2x8x8xf32>
    %48 = tpu.matmul %43, %45, %cst_26 {dimension_numbers = #tpu.dot_dimension_numbers<[2], [2], [1], [1], [0, 0, 0, 1, 1, 1], [0], [0]>} : vector<2x8x8xf32>, vector<2x8x8xf32>, vector<2x8x8xf32> -> vector<2x8x8xf32>
    "tpu.trace_stop"() : () -> ()
    %cst_27 = arith.constant 0.353553385 : f32
    %49 = vector.broadcast %cst_27 : f32 to vector<2x8x8xf32>
    %50 = arith.mulf %48, %49 : vector<2x8x8xf32>
    %cst_28 = arith.constant -1.000000e+09 : f32
    %51 = vector.broadcast %cst_28 : f32 to vector<2x8x8xf32>
    %52 = arith.select %7, %51, %50 : vector<2x8x8xi1>, vector<2x8x8xf32>
    %cst_29 = arith.constant dense<0xFF800000> : vector<2x8xf32>
    %53 = vector.multi_reduction <maximumf>, %52, %cst_29 [2] : vector<2x8x8xf32> to vector<2x8xf32>
    %54 = vector.shape_cast %53 : vector<2x8xf32> to vector<2x8x1xf32>
    %55 = vector.broadcast %54 : vector<2x8x1xf32> to vector<2x8x8xf32>
    %56 = arith.subf %52, %55 : vector<2x8x8xf32>
    %57 = math.exp %56 : vector<2x8x8xf32>
    %cst_30 = arith.constant dense<0.000000e+00> : vector<2x8xf32>
    %58 = vector.multi_reduction <add>, %57, %cst_30 [2] : vector<2x8x8xf32> to vector<2x8xf32>
    %59 = vector.shape_cast %58 : vector<2x8xf32> to vector<2x8x1xf32>
    %60 = tpu.reciprocal %59 {approx = true} : vector<2x8x1xf32> -> vector<2x8x1xf32>
    %61 = vector.broadcast %60 : vector<2x8x1xf32> to vector<2x8x8xf32>
    %62 = arith.mulf %57, %61 : vector<2x8x8xf32>
    %c0_31 = arith.constant 0 : index
    %c1 = arith.constant 1 : index
    %c0_32 = arith.constant 0 : index
    %c0_33 = arith.constant 0 : index
    %c0_34 = arith.constant 0 : index
    %63 = vector.load %arg17[%c0_31, %c1, %c0_32, %c0_33, %c0_34] : memref<1x4x2x8x8xf32, #tpu.memory_space<vmem>>, vector<1x1x2x8x8xf32>
    %64 = vector.shape_cast %63 : vector<1x1x2x8x8xf32> to vector<2x8x8xf32>
    %65 = vector.shape_cast %62 : vector<2x8x8xf32> to vector<1x1x2x8x8xf32>
    tpu.vector_store %arg17[%c0_31, %c1, %c0_32, %c0_33, %c0_34], %65 {strides = array<i32>} : memref<1x4x2x8x8xf32, #tpu.memory_space<vmem>>, vector<1x1x2x8x8xf32>,
    "tpu.trace_start"() <{level = 10 : i32, message = "bqk,bkd->bqd"}> : () -> ()
    %cst_35 = arith.constant dense<0.000000e+00> : vector<2x8x8xf32>
    %66 = tpu.matmul %62, %47, %cst_35 {dimension_numbers = #tpu.dot_dimension_numbers<[2], [1], [1], [2], [0, 0, 0, 1, 1, 2], [0], [0]>} : vector<2x8x8xf32>, vector<2x8x8xf32>, vector<2x8x8xf32> -> vector<2x8x8xf32>
    "tpu.trace_stop"() : () -> ()
    %67 = vector.shape_cast %66 : vector<2x8x8xf32> to vector<16x8xf32>
    %c0_36 = arith.constant 0 : index
    %c8 = arith.constant 8 : index
    %68 = vector.load %arg19[%c0_36, %c8] : memref<16x32xf32, #tpu.memory_space<vmem>>, vector<16x8xf32>
    tpu.vector_store %arg19[%c0_36, %c8], %67 {strides = array<i32>} : memref<16x32xf32, #tpu.memory_space<vmem>>, vector<16x8xf32>,
    %69 = vector.extract_strided_slice %14 {offsets = [0, 16], sizes = [16, 8], strides = [1, 1]} : vector<16x96xf32> to vector<16x8xf32>
    %70 = vector.shape_cast %69 : vector<16x8xf32> to vector<2x8x8xf32>
    %71 = vector.extract_strided_slice %14 {offsets = [0, 48], sizes = [16, 8], strides = [1, 1]} : vector<16x96xf32> to vector<16x8xf32>
    %72 = vector.shape_cast %71 : vector<16x8xf32> to vector<2x8x8xf32>
    %73 = vector.extract_strided_slice %14 {offsets = [0, 80], sizes = [16, 8], strides = [1, 1]} : vector<16x96xf32> to vector<16x8xf32>
    %74 = vector.shape_cast %73 : vector<16x8xf32> to vector<2x8x8xf32>
    "tpu.trace_start"() <{level = 10 : i32, message = "bqd,bkd->bqk"}> : () -> ()
    %cst_37 = arith.constant dense<0.000000e+00> : vector<2x8x8xf32>
    %75 = tpu.matmul %70, %72, %cst_37 {dimension_numbers = #tpu.dot_dimension_numbers<[2], [2], [1], [1], [0, 0, 0, 1, 1, 1], [0], [0]>} : vector<2x8x8xf32>, vector<2x8x8xf32>, vector<2x8x8xf32> -> vector<2x8x8xf32>
    "tpu.trace_stop"() : () -> ()
    %cst_38 = arith.constant 0.353553385 : f32
    %76 = vector.broadcast %cst_38 : f32 to vector<2x8x8xf32>
    %77 = arith.mulf %75, %76 : vector<2x8x8xf32>
    %cst_39 = arith.constant -1.000000e+09 : f32
    %78 = vector.broadcast %cst_39 : f32 to vector<2x8x8xf32>
    %79 = arith.select %7, %78, %77 : vector<2x8x8xi1>, vector<2x8x8xf32>
    %cst_40 = arith.constant dense<0xFF800000> : vector<2x8xf32>
    %80 = vector.multi_reduction <maximumf>, %79, %cst_40 [2] : vector<2x8x8xf32> to vector<2x8xf32>
    %81 = vector.shape_cast %80 : vector<2x8xf32> to vector<2x8x1xf32>
    %82 = vector.broadcast %81 : vector<2x8x1xf32> to vector<2x8x8xf32>
    %83 = arith.subf %79, %82 : vector<2x8x8xf32>
    %84 = math.exp %83 : vector<2x8x8xf32>
    %cst_41 = arith.constant dense<0.000000e+00> : vector<2x8xf32>
    %85 = vector.multi_reduction <add>, %84, %cst_41 [2] : vector<2x8x8xf32> to vector<2x8xf32>
    %86 = vector.shape_cast %85 : vector<2x8xf32> to vector<2x8x1xf32>
    %87 = tpu.reciprocal %86 {approx = true} : vector<2x8x1xf32> -> vector<2x8x1xf32>
    %88 = vector.broadcast %87 : vector<2x8x1xf32> to vector<2x8x8xf32>
    %89 = arith.mulf %84, %88 : vector<2x8x8xf32>
    %c0_42 = arith.constant 0 : index
    %c2 = arith.constant 2 : index
    %c0_43 = arith.constant 0 : index
    %c0_44 = arith.constant 0 : index
    %c0_45 = arith.constant 0 : index
    %90 = vector.load %arg17[%c0_42, %c2, %c0_43, %c0_44, %c0_45] : memref<1x4x2x8x8xf32, #tpu.memory_space<vmem>>, vector<1x1x2x8x8xf32>
    %91 = vector.shape_cast %90 : vector<1x1x2x8x8xf32> to vector<2x8x8xf32>
    %92 = vector.shape_cast %89 : vector<2x8x8xf32> to vector<1x1x2x8x8xf32>
    tpu.vector_store %arg17[%c0_42, %c2, %c0_43, %c0_44, %c0_45], %92 {strides = array<i32>} : memref<1x4x2x8x8xf32, #tpu.memory_space<vmem>>, vector<1x1x2x8x8xf32>,
    "tpu.trace_start"() <{level = 10 : i32, message = "bqk,bkd->bqd"}> : () -> ()
    %cst_46 = arith.constant dense<0.000000e+00> : vector<2x8x8xf32>
    %93 = tpu.matmul %89, %74, %cst_46 {dimension_numbers = #tpu.dot_dimension_numbers<[2], [1], [1], [2], [0, 0, 0, 1, 1, 2], [0], [0]>} : vector<2x8x8xf32>, vector<2x8x8xf32>, vector<2x8x8xf32> -> vector<2x8x8xf32>
    "tpu.trace_stop"() : () -> ()
    %94 = vector.shape_cast %93 : vector<2x8x8xf32> to vector<16x8xf32>
    %c0_47 = arith.constant 0 : index
    %c16 = arith.constant 16 : index
    %95 = vector.load %arg19[%c0_47, %c16] : memref<16x32xf32, #tpu.memory_space<vmem>>, vector<16x8xf32>
    tpu.vector_store %arg19[%c0_47, %c16], %94 {strides = array<i32>} : memref<16x32xf32, #tpu.memory_space<vmem>>, vector<16x8xf32>,
    %96 = vector.extract_strided_slice %14 {offsets = [0, 24], sizes = [16, 8], strides = [1, 1]} : vector<16x96xf32> to vector<16x8xf32>
    %97 = vector.shape_cast %96 : vector<16x8xf32> to vector<2x8x8xf32>
    %98 = vector.extract_strided_slice %14 {offsets = [0, 56], sizes = [16, 8], strides = [1, 1]} : vector<16x96xf32> to vector<16x8xf32>
    %99 = vector.shape_cast %98 : vector<16x8xf32> to vector<2x8x8xf32>
    %100 = vector.extract_strided_slice %14 {offsets = [0, 88], sizes = [16, 8], strides = [1, 1]} : vector<16x96xf32> to vector<16x8xf32>
    %101 = vector.shape_cast %100 : vector<16x8xf32> to vector<2x8x8xf32>
    "tpu.trace_start"() <{level = 10 : i32, message = "bqd,bkd->bqk"}> : () -> ()
    %cst_48 = arith.constant dense<0.000000e+00> : vector<2x8x8xf32>
    %102 = tpu.matmul %97, %99, %cst_48 {dimension_numbers = #tpu.dot_dimension_numbers<[2], [2], [1], [1], [0, 0, 0, 1, 1, 1], [0], [0]>} : vector<2x8x8xf32>, vector<2x8x8xf32>, vector<2x8x8xf32> -> vector<2x8x8xf32>
    "tpu.trace_stop"() : () -> ()
    %cst_49 = arith.constant 0.353553385 : f32
    %103 = vector.broadcast %cst_49 : f32 to vector<2x8x8xf32>
    %104 = arith.mulf %102, %103 : vector<2x8x8xf32>
    %cst_50 = arith.constant -1.000000e+09 : f32
    %105 = vector.broadcast %cst_50 : f32 to vector<2x8x8xf32>
    %106 = arith.select %7, %105, %104 : vector<2x8x8xi1>, vector<2x8x8xf32>
    %cst_51 = arith.constant dense<0xFF800000> : vector<2x8xf32>
    %107 = vector.multi_reduction <maximumf>, %106, %cst_51 [2] : vector<2x8x8xf32> to vector<2x8xf32>
    %108 = vector.shape_cast %107 : vector<2x8xf32> to vector<2x8x1xf32>
    %109 = vector.broadcast %108 : vector<2x8x1xf32> to vector<2x8x8xf32>
    %110 = arith.subf %106, %109 : vector<2x8x8xf32>
    %111 = math.exp %110 : vector<2x8x8xf32>
    %cst_52 = arith.constant dense<0.000000e+00> : vector<2x8xf32>
    %112 = vector.multi_reduction <add>, %111, %cst_52 [2] : vector<2x8x8xf32> to vector<2x8xf32>
    %113 = vector.shape_cast %112 : vector<2x8xf32> to vector<2x8x1xf32>
    %114 = tpu.reciprocal %113 {approx = true} : vector<2x8x1xf32> -> vector<2x8x1xf32>
    %115 = vector.broadcast %114 : vector<2x8x1xf32> to vector<2x8x8xf32>
    %116 = arith.mulf %111, %115 : vector<2x8x8xf32>
    %c0_53 = arith.constant 0 : index
    %c3 = arith.constant 3 : index
    %c0_54 = arith.constant 0 : index
    %c0_55 = arith.constant 0 : index
    %c0_56 = arith.constant 0 : index
    %117 = vector.load %arg17[%c0_53, %c3, %c0_54, %c0_55, %c0_56] : memref<1x4x2x8x8xf32, #tpu.memory_space<vmem>>, vector<1x1x2x8x8xf32>
    %118 = vector.shape_cast %117 : vector<1x1x2x8x8xf32> to vector<2x8x8xf32>
    %119 = vector.shape_cast %116 : vector<2x8x8xf32> to vector<1x1x2x8x8xf32>
    tpu.vector_store %arg17[%c0_53, %c3, %c0_54, %c0_55, %c0_56], %119 {strides = array<i32>} : memref<1x4x2x8x8xf32, #tpu.memory_space<vmem>>, vector<1x1x2x8x8xf32>,
    "tpu.trace_start"() <{level = 10 : i32, message = "bqk,bkd->bqd"}> : () -> ()
    %cst_57 = arith.constant dense<0.000000e+00> : vector<2x8x8xf32>
    %120 = tpu.matmul %116, %101, %cst_57 {dimension_numbers = #tpu.dot_dimension_numbers<[2], [1], [1], [2], [0, 0, 0, 1, 1, 2], [0], [0]>} : vector<2x8x8xf32>, vector<2x8x8xf32>, vector<2x8x8xf32> -> vector<2x8x8xf32>
    "tpu.trace_stop"() : () -> ()
    %121 = vector.shape_cast %120 : vector<2x8x8xf32> to vector<16x8xf32>
    %c0_58 = arith.constant 0 : index
    %c24 = arith.constant 24 : index
    %122 = vector.load %arg19[%c0_58, %c24] : memref<16x32xf32, #tpu.memory_space<vmem>>, vector<16x8xf32>
    tpu.vector_store %arg19[%c0_58, %c24], %121 {strides = array<i32>} : memref<16x32xf32, #tpu.memory_space<vmem>>, vector<16x8xf32>,
    %c0_59 = arith.constant 0 : index
    %c0_60 = arith.constant 0 : index
    %123 = vector.load %arg19[%c0_59, %c0_60] : memref<16x32xf32, #tpu.memory_space<vmem>>, vector<16x32xf32>
    %c0_61 = arith.constant 0 : index
    %c0_62 = arith.constant 0 : index
    %c0_63 = arith.constant 0 : index
    %124 = vector.load %arg6[%c0_61, %c0_62, %c0_63] : memref<1x32x32xf32, #tpu.memory_space<vmem>>, vector<1x32x32xf32>
    %125 = vector.shape_cast %124 : vector<1x32x32xf32> to vector<32x32xf32>
    %cst_64 = arith.constant dense<0.000000e+00> : vector<16x32xf32>
    %126 = tpu.matmul %123, %125, %cst_64 {dimension_numbers = #tpu.dot_dimension_numbers<[1], [0], [0], [1], [0, 0, 1, 1], [], []>} : vector<16x32xf32>, vector<32x32xf32>, vector<16x32xf32> -> vector<16x32xf32>
    %c0_65 = arith.constant 0 : index
    %c0_66 = arith.constant 0 : index
    %c0_67 = arith.constant 0 : index
    %127 = vector.load %arg7[%c0_65, %c0_66, %c0_67] : memref<1x1x32xf32, #tpu.memory_space<vmem>>, vector<1x1x32xf32>
    %128 = vector.shape_cast %127 : vector<1x1x32xf32> to vector<1x32xf32>
    %129 = vector.broadcast %128 : vector<1x32xf32> to vector<16x32xf32>
    %130 = arith.addf %126, %129 : vector<16x32xf32>
    %131 = arith.addf %130, %4 : vector<16x32xf32>
    %c0_68 = arith.constant 0 : index
    %c0_69 = arith.constant 0 : index
    %c0_70 = arith.constant 0 : index
    %132 = vector.load %arg8[%c0_68, %c0_69, %c0_70] : memref<1x1x32xf32, #tpu.memory_space<vmem>>, vector<1x1x32xf32>
    %133 = vector.shape_cast %132 : vector<1x1x32xf32> to vector<1x32xf32>
    %c0_71 = arith.constant 0 : index
    %c0_72 = arith.constant 0 : index
    %c0_73 = arith.constant 0 : index
    %134 = vector.load %arg9[%c0_71, %c0_72, %c0_73] : memref<1x1x32xf32, #tpu.memory_space<vmem>>, vector<1x1x32xf32>
    %135 = vector.shape_cast %134 : vector<1x1x32xf32> to vector<1x32xf32>
    %cst_74 = arith.constant dense<0.000000e+00> : vector<16xf32>
    %136 = vector.multi_reduction <add>, %131, %cst_74 [1] : vector<16x32xf32> to vector<16xf32>
    %137 = vector.shape_cast %136 : vector<16xf32> to vector<16x1xf32>
    %cst_75 = arith.constant 3.200000e+01 : f32
    %138 = vector.broadcast %cst_75 : f32 to vector<16x1xf32>
    %139 = arith.divf %137, %138 : vector<16x1xf32>
    %140 = vector.broadcast %139 : vector<16x1xf32> to vector<16x32xf32>
    %141 = arith.subf %131, %140 : vector<16x32xf32>
    %142 = arith.mulf %141, %141 : vector<16x32xf32>
    %cst_76 = arith.constant dense<0.000000e+00> : vector<16xf32>
    %143 = vector.multi_reduction <add>, %142, %cst_76 [1] : vector<16x32xf32> to vector<16xf32>
    %144 = vector.shape_cast %143 : vector<16xf32> to vector<16x1xf32>
    %cst_77 = arith.constant 3.200000e+01 : f32
    %145 = vector.broadcast %cst_77 : f32 to vector<16x1xf32>
    %146 = arith.divf %144, %145 : vector<16x1xf32>
    %147 = vector.broadcast %139 : vector<16x1xf32> to vector<16x32xf32>
    %148 = arith.subf %131, %147 : vector<16x32xf32>
    %cst_78 = arith.constant 9.99999974E-6 : f32
    %149 = vector.broadcast %cst_78 : f32 to vector<16x1xf32>
    %150 = arith.addf %146, %149 : vector<16x1xf32>
    %151 = math.rsqrt %150 : vector<16x1xf32>
    %152 = vector.broadcast %151 : vector<16x1xf32> to vector<16x32xf32>
    %153 = arith.mulf %148, %152 : vector<16x32xf32>
    %154 = vector.broadcast %133 : vector<1x32xf32> to vector<16x32xf32>
    %155 = arith.mulf %153, %154 : vector<16x32xf32>
    %156 = vector.broadcast %135 : vector<1x32xf32> to vector<16x32xf32>
    %157 = arith.addf %155, %156 : vector<16x32xf32>
    %c0_79 = arith.constant 0 : index
    %c0_80 = arith.constant 0 : index
    %c0_81 = arith.constant 0 : index
    %158 = vector.load %arg10[%c0_79, %c0_80, %c0_81] : memref<1x32x64xf32, #tpu.memory_space<vmem>>, vector<1x32x64xf32>
    %159 = vector.shape_cast %158 : vector<1x32x64xf32> to vector<32x64xf32>
    %cst_82 = arith.constant dense<0.000000e+00> : vector<16x64xf32>
    %160 = tpu.matmul %157, %159, %cst_82 {dimension_numbers = #tpu.dot_dimension_numbers<[1], [0], [0], [1], [0, 0, 1, 1], [], []>} : vector<16x32xf32>, vector<32x64xf32>, vector<16x64xf32> -> vector<16x64xf32>
    %c0_83 = arith.constant 0 : index
    %c0_84 = arith.constant 0 : index
    %c0_85 = arith.constant 0 : index
    %161 = vector.load %arg11[%c0_83, %c0_84, %c0_85] : memref<1x1x64xf32, #tpu.memory_space<vmem>>, vector<1x1x64xf32>
    %162 = vector.shape_cast %161 : vector<1x1x64xf32> to vector<1x64xf32>
    %163 = vector.broadcast %162 : vector<1x64xf32> to vector<16x64xf32>
    %164 = arith.addf %160, %163 : vector<16x64xf32>
    %cst_86 = arith.constant 5.000000e-01 : f32
    %165 = vector.broadcast %cst_86 : f32 to vector<16x64xf32>
    %166 = arith.mulf %165, %164 : vector<16x64xf32>
    %cst_87 = arith.constant 0.707106769 : f32
    %167 = vector.broadcast %cst_87 : f32 to vector<16x64xf32>
    %168 = arith.mulf %164, %167 : vector<16x64xf32>
    %169 = math.erf %168 : vector<16x64xf32>
    %cst_88 = arith.constant 1.000000e+00 : f32
    %170 = vector.broadcast %cst_88 : f32 to vector<16x64xf32>
    %171 = arith.addf %170, %169 : vector<16x64xf32>
    %172 = arith.mulf %166, %171 : vector<16x64xf32>
    %c0_89 = arith.constant 0 : index
    %c0_90 = arith.constant 0 : index
    %c0_91 = arith.constant 0 : index
    %173 = vector.load %arg12[%c0_89, %c0_90, %c0_91] : memref<1x64x32xf32, #tpu.memory_space<vmem>>, vector<1x64x32xf32>
    %174 = vector.shape_cast %173 : vector<1x64x32xf32> to vector<64x32xf32>
    %cst_92 = arith.constant dense<0.000000e+00> : vector<16x32xf32>
    %175 = tpu.matmul %172, %174, %cst_92 {dimension_numbers = #tpu.dot_dimension_numbers<[1], [0], [0], [1], [0, 0, 1, 1], [], []>} : vector<16x64xf32>, vector<64x32xf32>, vector<16x32xf32> -> vector<16x32xf32>
    %c0_93 = arith.constant 0 : index
    %c0_94 = arith.constant 0 : index
    %c0_95 = arith.constant 0 : index
    %176 = vector.load %arg13[%c0_93, %c0_94, %c0_95] : memref<1x1x32xf32, #tpu.memory_space<vmem>>, vector<1x1x32xf32>
    %177 = vector.shape_cast %176 : vector<1x1x32xf32> to vector<1x32xf32>
    %178 = vector.broadcast %177 : vector<1x32xf32> to vector<16x32xf32>
    %179 = arith.addf %175, %178 : vector<16x32xf32>
    %180 = arith.addf %179, %157 : vector<16x32xf32>
    %c0_96 = arith.constant 0 : index
    %c0_97 = arith.constant 0 : index
    %c0_98 = arith.constant 0 : index
    %181 = vector.load %arg14[%c0_96, %c0_97, %c0_98] : memref<1x1x32xf32, #tpu.memory_space<vmem>>, vector<1x1x32xf32>
    %182 = vector.shape_cast %181 : vector<1x1x32xf32> to vector<1x32xf32>
    %c0_99 = arith.constant 0 : index
    %c0_100 = arith.constant 0 : index
    %c0_101 = arith.constant 0 : index
    %183 = vector.load %arg15[%c0_99, %c0_100, %c0_101] : memref<1x1x32xf32, #tpu.memory_space<vmem>>, vector<1x1x32xf32>
    %184 = vector.shape_cast %183 : vector<1x1x32xf32> to vector<1x32xf32>
    %cst_102 = arith.constant dense<0.000000e+00> : vector<16xf32>
    %185 = vector.multi_reduction <add>, %180, %cst_102 [1] : vector<16x32xf32> to vector<16xf32>
    %186 = vector.shape_cast %185 : vector<16xf32> to vector<16x1xf32>
    %cst_103 = arith.constant 3.200000e+01 : f32
    %187 = vector.broadcast %cst_103 : f32 to vector<16x1xf32>
    %188 = arith.divf %186, %187 : vector<16x1xf32>
    %189 = vector.broadcast %188 : vector<16x1xf32> to vector<16x32xf32>
    %190 = arith.subf %180, %189 : vector<16x32xf32>
    %191 = arith.mulf %190, %190 : vector<16x32xf32>
    %cst_104 = arith.constant dense<0.000000e+00> : vector<16xf32>
    %192 = vector.multi_reduction <add>, %191, %cst_104 [1] : vector<16x32xf32> to vector<16xf32>
    %193 = vector.shape_cast %192 : vector<16xf32> to vector<16x1xf32>
    %cst_105 = arith.constant 3.200000e+01 : f32
    %194 = vector.broadcast %cst_105 : f32 to vector<16x1xf32>
    %195 = arith.divf %193, %194 : vector<16x1xf32>
    %196 = vector.broadcast %188 : vector<16x1xf32> to vector<16x32xf32>
    %197 = arith.subf %180, %196 : vector<16x32xf32>
    %cst_106 = arith.constant 9.99999974E-6 : f32
    %198 = vector.broadcast %cst_106 : f32 to vector<16x1xf32>
    %199 = arith.addf %195, %198 : vector<16x1xf32>
    %200 = math.rsqrt %199 : vector<16x1xf32>
    %201 = vector.broadcast %200 : vector<16x1xf32> to vector<16x32xf32>
    %202 = arith.mulf %197, %201 : vector<16x32xf32>
    %203 = vector.broadcast %182 : vector<1x32xf32> to vector<16x32xf32>
    %204 = arith.mulf %202, %203 : vector<16x32xf32>
    %205 = vector.broadcast %184 : vector<1x32xf32> to vector<16x32xf32>
    %206 = arith.addf %204, %205 : vector<16x32xf32>
    %207 = vector.shape_cast %206 : vector<16x32xf32> to vector<2x8x32xf32>
    %c0_107 = arith.constant 0 : index
    %c0_108 = arith.constant 0 : index
    %c0_109 = arith.constant 0 : index
    %208 = vector.load %arg16[%c0_107, %c0_108, %c0_109] : memref<2x8x32xf32, #tpu.memory_space<vmem>>, vector<2x8x32xf32>
    tpu.vector_store %arg16[%c0_107, %c0_108, %c0_109], %207 {strides = array<i32>} : memref<2x8x32xf32, #tpu.memory_space<vmem>>, vector<2x8x32xf32>,
    return
  }
  func.func @transform_0(%arg0: i32, %arg1: i32) -> (i32, i32, i32) {
    %c0_i32 = arith.constant 0 : i32
    %c0_i32_0 = arith.constant 0 : i32
    %c0_i32_1 = arith.constant 0 : i32
    return %arg0, %c0_i32, %c0_i32_0 : i32, i32, i32
  }
  func.func @transform_1(%arg0: i32, %arg1: i32) -> (i32, i32, i32) {
    %c0_i32 = arith.constant 0 : i32
    %c0_i32_0 = arith.constant 0 : i32
    %c0_i32_1 = arith.constant 0 : i32
    return %arg0, %c0_i32, %c0_i32_0 : i32, i32, i32
  }
  func.func @transform_2(%arg0: i32, %arg1: i32) -> (i32, i32, i32) {
    %c0_i32 = arith.constant 0 : i32
    %c0_i32_0 = arith.constant 0 : i32
    %c0_i32_1 = arith.constant 0 : i32
    return %arg1, %c0_i32, %c0_i32_0 : i32, i32, i32
  }
  func.func @transform_3(%arg0: i32, %arg1: i32) -> (i32, i32, i32) {
    %c0_i32 = arith.constant 0 : i32
    %c0_i32_0 = arith.constant 0 : i32
    %c0_i32_1 = arith.constant 0 : i32
    return %arg1, %c0_i32, %c0_i32_0 : i32, i32, i32
  }
  func.func @transform_4(%arg0: i32, %arg1: i32) -> (i32, i32, i32) {
    %c0_i32 = arith.constant 0 : i32
    %c0_i32_0 = arith.constant 0 : i32
    %c0_i32_1 = arith.constant 0 : i32
    return %arg1, %c0_i32, %c0_i32_0 : i32, i32, i32
  }
  func.func @transform_5(%arg0: i32, %arg1: i32) -> (i32, i32, i32) {
    %c0_i32 = arith.constant 0 : i32
    %c0_i32_0 = arith.constant 0 : i32
    %c0_i32_1 = arith.constant 0 : i32
    return %arg1, %c0_i32, %c0_i32_0 : i32, i32, i32
  }
  func.func @transform_6(%arg0: i32, %arg1: i32) -> (i32, i32, i32) {
    %c0_i32 = arith.constant 0 : i32
    %c0_i32_0 = arith.constant 0 : i32
    %c0_i32_1 = arith.constant 0 : i32
    return %arg1, %c0_i32, %c0_i32_0 : i32, i32, i32
  }
  func.func @transform_7(%arg0: i32, %arg1: i32) -> (i32, i32, i32) {
    %c0_i32 = arith.constant 0 : i32
    %c0_i32_0 = arith.constant 0 : i32
    %c0_i32_1 = arith.constant 0 : i32
    return %arg1, %c0_i32, %c0_i32_0 : i32, i32, i32
  }
  func.func @transform_8(%arg0: i32, %arg1: i32) -> (i32, i32, i32) {
    %c0_i32 = arith.constant 0 : i32
    %c0_i32_0 = arith.constant 0 : i32
    %c0_i32_1 = arith.constant 0 : i32
    return %arg1, %c0_i32, %c0_i32_0 : i32, i32, i32
  }
  func.func @transform_9(%arg0: i32, %arg1: i32) -> (i32, i32, i32) {
    %c0_i32 = arith.constant 0 : i32
    %c0_i32_0 = arith.constant 0 : i32
    %c0_i32_1 = arith.constant 0 : i32
    return %arg1, %c0_i32, %c0_i32_0 : i32, i32, i32
  }
  func.func @transform_10(%arg0: i32, %arg1: i32) -> (i32, i32, i32) {
    %c0_i32 = arith.constant 0 : i32
    %c0_i32_0 = arith.constant 0 : i32
    %c0_i32_1 = arith.constant 0 : i32
    return %arg1, %c0_i32, %c0_i32_0 : i32, i32, i32
  }
  func.func @transform_11(%arg0: i32, %arg1: i32) -> (i32, i32, i32) {
    %c0_i32 = arith.constant 0 : i32
    %c0_i32_0 = arith.constant 0 : i32
    %c0_i32_1 = arith.constant 0 : i32
    return %arg1, %c0_i32, %c0_i32_0 : i32, i32, i32
  }
  func.func @transform_12(%arg0: i32, %arg1: i32) -> (i32, i32, i32) {
    %c0_i32 = arith.constant 0 : i32
    %c0_i32_0 = arith.constant 0 : i32
    %c0_i32_1 = arith.constant 0 : i32
    return %arg1, %c0_i32, %c0_i32_0 : i32, i32, i32
  }
  func.func @transform_13(%arg0: i32, %arg1: i32) -> (i32, i32, i32) {
    %c0_i32 = arith.constant 0 : i32
    %c0_i32_0 = arith.constant 0 : i32
    %c0_i32_1 = arith.constant 0 : i32
    return %arg1, %c0_i32, %c0_i32_0 : i32, i32, i32
  }
  func.func @transform_14(%arg0: i32, %arg1: i32) -> (i32, i32, i32) {
    %c0_i32 = arith.constant 0 : i32
    %c0_i32_0 = arith.constant 0 : i32
    %c0_i32_1 = arith.constant 0 : i32
    return %arg0, %c0_i32, %c0_i32_0 : i32, i32, i32
  }
  func.func @transform_15(%arg0: i32, %arg1: i32) -> (i32, i32, i32, i32, i32) {
    %c0_i32 = arith.constant 0 : i32
    %c0_i32_0 = arith.constant 0 : i32
    %c0_i32_1 = arith.constant 0 : i32
    %c0_i32_2 = arith.constant 0 : i32
    return %arg1, %c0_i32, %arg0, %c0_i32_0, %c0_i32_1 : i32, i32, i32, i32, i32
  }
}

</mosaic_0001>

<llo_original>
// kernel: tpu_custom_call.1
$region0: #{tpu_custom_call.1}
  #allocation0 [shape = 'u32[]', space=smem, size = 0x4, offset = 0x4, fixed_abs, tag = 'smem constant byte address 0x4 - core index']
  #allocation1 [shape = 'u32[144,128]{1,0:T(1,128)}', space=vmem, size = 0x12000, scoped, tag = 'internal scratch']
  #allocation2 [shape = 'f32[2,8,8]{2,1,0:T(8,128)}', space=vmem, size = 0x2000, scoped, tag = 'scratch operand']
  #allocation3 [shape = 'f32[16,32]{1,0:T(8,128)}', space=vmem, size = 0x2000, scoped, tag = 'scratch operand']
  %s0 = inlined_call_operand.hbm [shape: f32[2,8,32], index: 0, kind: input, shape index: {}]
  %s1 = inlined_call_operand.vmem [shape: f32[2,1,8], index: 1, kind: input, shape index: {}]
  %s2 = inlined_call_operand.vmem [shape: f32[2,32,96], index: 2, kind: input, shape index: {}]
  %s3 = inlined_call_operand.vmem [shape: f32[2,1,96], index: 3, kind: input, shape index: {}]
  %s4 = inlined_call_operand.vmem [shape: f32[2,32,32], index: 4, kind: input, shape index: {}]
  %s5 = inlined_call_operand.vmem [shape: f32[2,1,32], index: 5, kind: input, shape index: {}]
  %s6 = inlined_call_operand.vmem [shape: f32[2,1,32], index: 6, kind: input, shape index: {}]
  %s7 = inlined_call_operand.vmem [shape: f32[2,1,32], index: 7, kind: input, shape index: {}]
  %s8 = inlined_call_operand.vmem [shape: f32[2,32,64], index: 8, kind: input, shape index: {}]
  %s9 = inlined_call_operand.vmem [shape: f32[2,1,64], index: 9, kind: input, shape index: {}]
  %s10 = inlined_call_operand.vmem [shape: f32[2,64,32], index: 10, kind: input, shape index: {}]
  %s11 = inlined_call_operand.vmem [shape: f32[2,1,32], index: 11, kind: input, shape index: {}]
  %s12 = inlined_call_operand.vmem [shape: f32[2,1,32], index: 12, kind: input, shape index: {}]
  %s13 = inlined_call_operand.vmem [shape: f32[2,1,32], index: 13, kind: input, shape index: {}]
  %s14 = inlined_call_operand.hbm [shape: f32[2,8,32], index: 14, kind: output, shape index: {0}]
  %s15 = inlined_call_operand.hbm [shape: f32[2,4,2,8,8], index: 15, kind: output, shape index: {1}]
  %16 = xla_tuple %s14, %s15
  %s17 = sld [smem:[#allocation0]]
  $region105: #{tpu_custom_call.1} parent=0
    _
  %s19 = ssub.s32 1, %s17
  %s20 = scalar_select 0, %s19, %s17
  $region1: #{tpu_custom_call.1} parent=0
    #allocation4 [shape = 'u8[8192]{0}', space=vmem, size = 0x2000, scoped, tag = 'input window, operand 0, single buffered']
    #allocation5 [shape = 's32[2]{0}', space=sflag, size = 0x8, scoped, tag = 'scoped memory for tpu_custom_call.1']
    #allocation6 [shape = 's32[2]{0}', space=sflag, size = 0x8, scoped, tag = 'scoped memory for tpu_custom_call.1']
    #allocation7 [shape = 'u8[8192]{0}', space=vmem, size = 0x2000, scoped, tag = 'output window, operand 0, single buffered']
    #allocation8 [shape = 'u8[65536]{0}', space=vmem, size = 0x10000, scoped, tag = 'output window, operand 1']
    #allocation9 [shape = 's32[2]{0}', space=sflag, size = 0x8, scoped, tag = 'scoped memory for tpu_custom_call.1']
    %21 = vsyncpa [#allocation5], 0
    %22 = vsyncpa [#allocation6], 0
    %23 = vsyncpa [#allocation9], 0
    %s24 = scalar_lea.sflag [#allocation9], 1
    %25 = vsyncpa %s24, 0
    loop: start=0, step=1, limit=4
    $region2: #{tpu_custom_call.1} parent=1 // loop_pre_header
      _
    $region3: #{tpu_custom_call.1} parent=1 // loop_header
      %s27 = sphi 0, %s31
      %p28 = scmp.ge.s32.totalorder %s27, 4
      %s34 = sphi 0, %s46
      %s35 = sphi 0, %s42
      %s36 = sphi 0, %s34
      %s37 = sphi 0, %s35
      %s38 = sphi 0, %s36
      %s39 = sphi 0, %s37
      %s49 = sphi 0, %s51
      %s52 = sphi 0, %s49
      %s53 = sphi 0, %s52
      %s69 = sphi 0, %s53
      %s75 = sphi 0, %s77
      %s78 = sphi 0, %s75
      %s79 = sphi 0, %s78
      %s95 = sphi 0, %s79
      %s101 = sphi 0, %s103
      %s104 = sphi 0, %s101
      %s105 = sphi 0, %s104
      %s121 = sphi 0, %s105
      %s127 = sphi 0, %s129
      %s130 = sphi 0, %s127
      %s131 = sphi 0, %s130
      %s147 = sphi 0, %s131
      %s153 = sphi 0, %s155
      %s156 = sphi 0, %s153
      %s157 = sphi 0, %s156
      %s173 = sphi 0, %s157
      %s179 = sphi 0, %s181
      %s182 = sphi 0, %s179
      %s183 = sphi 0, %s182
      %s199 = sphi 0, %s183
      %s205 = sphi 0, %s207
      %s208 = sphi 0, %s205
      %s209 = sphi 0, %s208
      %s225 = sphi 0, %s209
      %s231 = sphi 0, %s233
      %s234 = sphi 0, %s231
      %s235 = sphi 0, %s234
      %s251 = sphi 0, %s235
      %s257 = sphi 0, %s259
      %s260 = sphi 0, %s257
      %s261 = sphi 0, %s260
      %s277 = sphi 0, %s261
      %s283 = sphi 0, %s285
      %s286 = sphi 0, %s283
      %s287 = sphi 0, %s286
      %s303 = sphi 0, %s287
      %s309 = sphi 0, %s311
      %s312 = sphi 0, %s309
      %s313 = sphi 0, %s312
      %s329 = sphi 0, %s313
      %s335 = sphi 0, %s337
      %s338 = sphi 0, %s335
      %s339 = sphi 0, %s338
      %s355 = sphi 0, %s339
      %s361 = sphi 0, %s363
      %s364 = sphi 0, %s361
      %s365 = sphi 0, %s364
      %s381 = sphi 0, %s365
      %s387 = sphi 0, %s389
      %s390 = sphi 0, %s387
      %s391 = sphi 0, %s390
      %s407 = sphi 0, %s391
      %s413 = sphi 0, %s415
      %s416 = sphi 0, %s413
      %s417 = sphi 0, %s416
      %s433 = sphi 0, %s417
      %s441 = sphi 0, %s443
      %s444 = sphi 0, %s441
      %s445 = sphi 0, %s444
      %s461 = sphi 0, %s445
    $region4: #{tpu_custom_call.1} parent=1 // loop_header_branch
      %30 = sbr.rel (%p28) target = $region8
    $region5: #{tpu_custom_call.1} parent=1 // loop_body
      %s32 = ssub.s32 %s27, 1
      %s33 = ssub.s32 %s27, 2
      %s40 = sadd.s32 1, %s35
      %p41 = scmp.ge.s32.totalorder %s40, 2
      %s42 = scalar_select %p41, 0, %s40
      %s43 = sadd.s32 1, %s34
      %s44 = scalar_select %p41, %s43, %s34
      %p45 = scmp.ge.s32.totalorder %s44, 1
      %s46 = scalar_select %p45, 0, %s44
      %s47 = ssub.s32 %s34, %s46
      %p48 = scmp.eq.s32.totalorder %s47, 0
      %s50 = sadd.s32 %s49, 1
      %s51 = scalar_select %p48, %s49, %s50
      %p54 = pneg %p48
      %p55 = scmp.eq.s32.totalorder %s27, 1
      %p56 = por %p54, %p55
      %p57 = scmp.ne.s32.totalorder %s49, %s52
      %p58 = scmp.eq.s32.totalorder %s27, 0
      %p59 = por %p57, %p58
      %p60 = scmp.ne.s32.totalorder %s49, %s52
      %p61 = scmp.eq.s32.totalorder %s32, 1
      %p62 = por %p60, %p61
      %p63 = scmp.ne.s32.totalorder %s52, %s53
      %p64 = scmp.eq.s32.totalorder %s32, 0
      %p65 = por %p63, %p64
      %p66 = scmp.ne.s32.totalorder %s52, %s53
      %p67 = scmp.eq.s32.totalorder %s33, 1
      %p68 = por %p66, %p67
      %p70 = scmp.ne.s32.totalorder %s53, %s69
      %p71 = scmp.eq.s32.totalorder %s33, 0
      %p72 = por %p70, %p71
      %s73 = ssub.s32 %s34, %s46
      %p74 = scmp.eq.s32.totalorder %s73, 0
      %s76 = sadd.s32 %s75, 1
      %s77 = scalar_select %p74, %s75, %s76
      %p80 = pneg %p74
      %p81 = scmp.eq.s32.totalorder %s27, 1
      %p82 = por %p80, %p81
      %p83 = scmp.ne.s32.totalorder %s75, %s78
      %p84 = scmp.eq.s32.totalorder %s27, 0
      %p85 = por %p83, %p84
      %p86 = scmp.ne.s32.totalorder %s75, %s78
      %p87 = scmp.eq.s32.totalorder %s32, 1
      %p88 = por %p86, %p87
      %p89 = scmp.ne.s32.totalorder %s78, %s79
      %p90 = scmp.eq.s32.totalorder %s32, 0
      %p91 = por %p89, %p90
      %p92 = scmp.ne.s32.totalorder %s78, %s79
      %p93 = scmp.eq.s32.totalorder %s33, 1
      %p94 = por %p92, %p93
      %p96 = scmp.ne.s32.totalorder %s79, %s95
      %p97 = scmp.eq.s32.totalorder %s33, 0
      %p98 = por %p96, %p97
      %s99 = ssub.s32 %s35, %s42
      %p100 = scmp.eq.s32.totalorder %s99, 0
      %s102 = sadd.s32 %s101, 1
      %s103 = scalar_select %p100, %s101, %s102
      %p106 = pneg %p100
      %p107 = scmp.eq.s32.totalorder %s27, 1
      %p108 = por %p106, %p107
      %p109 = scmp.ne.s32.totalorder %s101, %s104
      %p110 = scmp.eq.s32.totalorder %s27, 0
      %p111 = por %p109, %p110
      %p112 = scmp.ne.s32.totalorder %s101, %s104
      %p113 = scmp.eq.s32.totalorder %s32, 1
      %p114 = por %p112, %p113
      %p115 = scmp.ne.s32.totalorder %s104, %s105
      %p116 = scmp.eq.s32.totalorder %s32, 0
      %p117 = por %p115, %p116
      %p118 = scmp.ne.s32.totalorder %s104, %s105
      %p119 = scmp.eq.s32.totalorder %s33, 1
      %p120 = por %p118, %p119
      %p122 = scmp.ne.s32.totalorder %s105, %s121
      %p123 = scmp.eq.s32.totalorder %s33, 0
      %p124 = por %p122, %p123
      %s125 = ssub.s32 %s35, %s42
      %p126 = scmp.eq.s32.totalorder %s125, 0
      %s128 = sadd.s32 %s127, 1
      %s129 = scalar_select %p126, %s127, %s128
      %p132 = pneg %p126
      %p133 = scmp.eq.s32.totalorder %s27, 1
      %p134 = por %p132, %p133
      %p135 = scmp.ne.s32.totalorder %s127, %s130
      %p136 = scmp.eq.s32.totalorder %s27, 0
      %p137 = por %p135, %p136
      %p138 = scmp.ne.s32.totalorder %s127, %s130
      %p139 = scmp.eq.s32.totalorder %s32, 1
      %p140 = por %p138, %p139
      %p141 = scmp.ne.s32.totalorder %s130, %s131
      %p142 = scmp.eq.s32.totalorder %s32, 0
      %p143 = por %p141, %p142
      %p144 = scmp.ne.s32.totalorder %s130, %s131
      %p145 = scmp.eq.s32.totalorder %s33, 1
      %p146 = por %p144, %p145
      %p148 = scmp.ne.s32.totalorder %s131, %s147
      %p149 = scmp.eq.s32.totalorder %s33, 0
      %p150 = por %p148, %p149
      %s151 = ssub.s32 %s35, %s42
      %p152 = scmp.eq.s32.totalorder %s151, 0
      %s154 = sadd.s32 %s153, 1
      %s155 = scalar_select %p152, %s153, %s154
      %p158 = pneg %p152
      %p159 = scmp.eq.s32.totalorder %s27, 1
      %p160 = por %p158, %p159
      %p161 = scmp.ne.s32.totalorder %s153, %s156
      %p162 = scmp.eq.s32.totalorder %s27, 0
      %p163 = por %p161, %p162
      %p164 = scmp.ne.s32.totalorder %s153, %s156
      %p165 = scmp.eq.s32.totalorder %s32, 1
      %p166 = por %p164, %p165
      %p167 = scmp.ne.s32.totalorder %s156, %s157
      %p168 = scmp.eq.s32.totalorder %s32, 0
      %p169 = por %p167, %p168
      %p170 = scmp.ne.s32.totalorder %s156, %s157
      %p171 = scmp.eq.s32.totalorder %s33, 1
      %p172 = por %p170, %p171
      %p174 = scmp.ne.s32.totalorder %s157, %s173
      %p175 = scmp.eq.s32.totalorder %s33, 0
      %p176 = por %p174, %p175
      %s177 = ssub.s32 %s35, %s42
      %p178 = scmp.eq.s32.totalorder %s177, 0
      %s180 = sadd.s32 %s179, 1
      %s181 = scalar_select %p178, %s179, %s180
      %p184 = pneg %p178
      %p185 = scmp.eq.s32.totalorder %s27, 1
      %p186 = por %p184, %p185
      %p187 = scmp.ne.s32.totalorder %s179, %s182
      %p188 = scmp.eq.s32.totalorder %s27, 0
      %p189 = por %p187, %p188
      %p190 = scmp.ne.s32.totalorder %s179, %s182
      %p191 = scmp.eq.s32.totalorder %s32, 1
      %p192 = por %p190, %p191
      %p193 = scmp.ne.s32.totalorder %s182, %s183
      %p194 = scmp.eq.s32.totalorder %s32, 0
      %p195 = por %p193, %p194
      %p196 = scmp.ne.s32.totalorder %s182, %s183
      %p197 = scmp.eq.s32.totalorder %s33, 1
      %p198 = por %p196, %p197
      %p200 = scmp.ne.s32.totalorder %s183, %s199
      %p201 = scmp.eq.s32.totalorder %s33, 0
      %p202 = por %p200, %p201
      %s203 = ssub.s32 %s35, %s42
      %p204 = scmp.eq.s32.totalorder %s203, 0
      %s206 = sadd.s32 %s205, 1
      %s207 = scalar_select %p204, %s205, %s206
      %p210 = pneg %p204
      %p211 = scmp.eq.s32.totalorder %s27, 1
      %p212 = por %p210, %p211
      %p213 = scmp.ne.s32.totalorder %s205, %s208
      %p214 = scmp.eq.s32.totalorder %s27, 0
      %p215 = por %p213, %p214
      %p216 = scmp.ne.s32.totalorder %s205, %s208
      %p217 = scmp.eq.s32.totalorder %s32, 1
      %p218 = por %p216, %p217
      %p219 = scmp.ne.s32.totalorder %s208, %s209
      %p220 = scmp.eq.s32.totalorder %s32, 0
      %p221 = por %p219, %p220
      %p222 = scmp.ne.s32.totalorder %s208, %s209
      %p223 = scmp.eq.s32.totalorder %s33, 1
      %p224 = por %p222, %p223
      %p226 = scmp.ne.s32.totalorder %s209, %s225
      %p227 = scmp.eq.s32.totalorder %s33, 0
      %p228 = por %p226, %p227
      %s229 = ssub.s32 %s35, %s42
      %p230 = scmp.eq.s32.totalorder %s229, 0
      %s232 = sadd.s32 %s231, 1
      %s233 = scalar_select %p230, %s231, %s232
      %p236 = pneg %p230
      %p237 = scmp.eq.s32.totalorder %s27, 1
      %p238 = por %p236, %p237
      %p239 = scmp.ne.s32.totalorder %s231, %s234
      %p240 = scmp.eq.s32.totalorder %s27, 0
      %p241 = por %p239, %p240
      %p242 = scmp.ne.s32.totalorder %s231, %s234
      %p243 = scmp.eq.s32.totalorder %s32, 1
      %p244 = por %p242, %p243
      %p245 = scmp.ne.s32.totalorder %s234, %s235
      %p246 = scmp.eq.s32.totalorder %s32, 0
      %p247 = por %p245, %p246
      %p248 = scmp.ne.s32.totalorder %s234, %s235
      %p249 = scmp.eq.s32.totalorder %s33, 1
      %p250 = por %p248, %p249
      %p252 = scmp.ne.s32.totalorder %s235, %s251
      %p253 = scmp.eq.s32.totalorder %s33, 0
      %p254 = por %p252, %p253
      %s255 = ssub.s32 %s35, %s42
      %p256 = scmp.eq.s32.totalorder %s255, 0
      %s258 = sadd.s32 %s257, 1
      %s259 = scalar_select %p256, %s257, %s258
      %p262 = pneg %p256
      %p263 = scmp.eq.s32.totalorder %s27, 1
      %p264 = por %p262, %p263
      %p265 = scmp.ne.s32.totalorder %s257, %s260
      %p266 = scmp.eq.s32.totalorder %s27, 0
      %p267 = por %p265, %p266
      %p268 = scmp.ne.s32.totalorder %s257, %s260
      %p269 = scmp.eq.s32.totalorder %s32, 1
      %p270 = por %p268, %p269
      %p271 = scmp.ne.s32.totalorder %s260, %s261
      %p272 = scmp.eq.s32.totalorder %s32, 0
      %p273 = por %p271, %p272
      %p274 = scmp.ne.s32.totalorder %s260, %s261
      %p275 = scmp.eq.s32.totalorder %s33, 1
      %p276 = por %p274, %p275
      %p278 = scmp.ne.s32.totalorder %s261, %s277
      %p279 = scmp.eq.s32.totalorder %s33, 0
      %p280 = por %p278, %p279
      %s281 = ssub.s32 %s35, %s42
      %p282 = scmp.eq.s32.totalorder %s281, 0
      %s284 = sadd.s32 %s283, 1
      %s285 = scalar_select %p282, %s283, %s284
      %p288 = pneg %p282
      %p289 = scmp.eq.s32.totalorder %s27, 1
      %p290 = por %p288, %p289
      %p291 = scmp.ne.s32.totalorder %s283, %s286
      %p292 = scmp.eq.s32.totalorder %s27, 0
      %p293 = por %p291, %p292
      %p294 = scmp.ne.s32.totalorder %s283, %s286
      %p295 = scmp.eq.s32.totalorder %s32, 1
      %p296 = por %p294, %p295
      %p297 = scmp.ne.s32.totalorder %s286, %s287
      %p298 = scmp.eq.s32.totalorder %s32, 0
      %p299 = por %p297, %p298
      %p300 = scmp.ne.s32.totalorder %s286, %s287
      %p301 = scmp.eq.s32.totalorder %s33, 1
      %p302 = por %p300, %p301
      %p304 = scmp.ne.s32.totalorder %s287, %s303
      %p305 = scmp.eq.s32.totalorder %s33, 0
      %p306 = por %p304, %p305
      %s307 = ssub.s32 %s35, %s42
      %p308 = scmp.eq.s32.totalorder %s307, 0
      %s310 = sadd.s32 %s309, 1
      %s311 = scalar_select %p308, %s309, %s310
      %p314 = pneg %p308
      %p315 = scmp.eq.s32.totalorder %s27, 1
      %p316 = por %p314, %p315
      %p317 = scmp.ne.s32.totalorder %s309, %s312
      %p318 = scmp.eq.s32.totalorder %s27, 0
      %p319 = por %p317, %p318
      %p320 = scmp.ne.s32.totalorder %s309, %s312
      %p321 = scmp.eq.s32.totalorder %s32, 1
      %p322 = por %p320, %p321
      %p323 = scmp.ne.s32.totalorder %s312, %s313
      %p324 = scmp.eq.s32.totalorder %s32, 0
      %p325 = por %p323, %p324
      %p326 = scmp.ne.s32.totalorder %s312, %s313
      %p327 = scmp.eq.s32.totalorder %s33, 1
      %p328 = por %p326, %p327
      %p330 = scmp.ne.s32.totalorder %s313, %s329
      %p331 = scmp.eq.s32.totalorder %s33, 0
      %p332 = por %p330, %p331
      %s333 = ssub.s32 %s35, %s42
      %p334 = scmp.eq.s32.totalorder %s333, 0
      %s336 = sadd.s32 %s335, 1
      %s337 = scalar_select %p334, %s335, %s336
      %p340 = pneg %p334
      %p341 = scmp.eq.s32.totalorder %s27, 1
      %p342 = por %p340, %p341
      %p343 = scmp.ne.s32.totalorder %s335, %s338
      %p344 = scmp.eq.s32.totalorder %s27, 0
      %p345 = por %p343, %p344
      %p346 = scmp.ne.s32.totalorder %s335, %s338
      %p347 = scmp.eq.s32.totalorder %s32, 1
      %p348 = por %p346, %p347
      %p349 = scmp.ne.s32.totalorder %s338, %s339
      %p350 = scmp.eq.s32.totalorder %s32, 0
      %p351 = por %p349, %p350
      %p352 = scmp.ne.s32.totalorder %s338, %s339
      %p353 = scmp.eq.s32.totalorder %s33, 1
      %p354 = por %p352, %p353
      %p356 = scmp.ne.s32.totalorder %s339, %s355
      %p357 = scmp.eq.s32.totalorder %s33, 0
      %p358 = por %p356, %p357
      %s359 = ssub.s32 %s35, %s42
      %p360 = scmp.eq.s32.totalorder %s359, 0
      %s362 = sadd.s32 %s361, 1
      %s363 = scalar_select %p360, %s361, %s362
      %p366 = pneg %p360
      %p367 = scmp.eq.s32.totalorder %s27, 1
      %p368 = por %p366, %p367
      %p369 = scmp.ne.s32.totalorder %s361, %s364
      %p370 = scmp.eq.s32.totalorder %s27, 0
      %p371 = por %p369, %p370
      %p372 = scmp.ne.s32.totalorder %s361, %s364
      %p373 = scmp.eq.s32.totalorder %s32, 1
      %p374 = por %p372, %p373
      %p375 = scmp.ne.s32.totalorder %s364, %s365
      %p376 = scmp.eq.s32.totalorder %s32, 0
      %p377 = por %p375, %p376
      %p378 = scmp.ne.s32.totalorder %s364, %s365
      %p379 = scmp.eq.s32.totalorder %s33, 1
      %p380 = por %p378, %p379
      %p382 = scmp.ne.s32.totalorder %s365, %s381
      %p383 = scmp.eq.s32.totalorder %s33, 0
      %p384 = por %p382, %p383
      %s385 = ssub.s32 %s35, %s42
      %p386 = scmp.eq.s32.totalorder %s385, 0
      %s388 = sadd.s32 %s387, 1
      %s389 = scalar_select %p386, %s387, %s388
      %p392 = pneg %p386
      %p393 = scmp.eq.s32.totalorder %s27, 1
      %p394 = por %p392, %p393
      %p395 = scmp.ne.s32.totalorder %s387, %s390
      %p396 = scmp.eq.s32.totalorder %s27, 0
      %p397 = por %p395, %p396
      %p398 = scmp.ne.s32.totalorder %s387, %s390
      %p399 = scmp.eq.s32.totalorder %s32, 1
      %p400 = por %p398, %p399
      %p401 = scmp.ne.s32.totalorder %s390, %s391
      %p402 = scmp.eq.s32.totalorder %s32, 0
      %p403 = por %p401, %p402
      %p404 = scmp.ne.s32.totalorder %s390, %s391
      %p405 = scmp.eq.s32.totalorder %s33, 1
      %p406 = por %p404, %p405
      %p408 = scmp.ne.s32.totalorder %s391, %s407
      %p409 = scmp.eq.s32.totalorder %s33, 0
      %p410 = por %p408, %p409
      %s411 = ssub.s32 %s34, %s46
      %p412 = scmp.eq.s32.totalorder %s411, 0
      %s414 = sadd.s32 %s413, 1
      %s415 = scalar_select %p412, %s413, %s414
      %p418 = pneg %p412
      %p419 = scmp.eq.s32.totalorder %s27, 1
      %p420 = por %p418, %p419
      %p421 = scmp.ne.s32.totalorder %s413, %s416
      %p422 = scmp.eq.s32.totalorder %s27, 0
      %p423 = por %p421, %p422
      %p424 = scmp.ne.s32.totalorder %s413, %s416
      %p425 = scmp.eq.s32.totalorder %s32, 1
      %p426 = por %p424, %p425
      %p427 = scmp.ne.s32.totalorder %s416, %s417
      %p428 = scmp.eq.s32.totalorder %s32, 0
      %p429 = por %p427, %p428
      %p430 = scmp.ne.s32.totalorder %s416, %s417
      %p431 = scmp.eq.s32.totalorder %s33, 1
      %p432 = por %p430, %p431
      %p434 = scmp.ne.s32.totalorder %s417, %s433
      %p435 = scmp.eq.s32.totalorder %s33, 0
      %p436 = por %p434, %p435
      %s437 = ssub.s32 %s35, %s42
      %s438 = ssub.s32 %s34, %s46
      %s439 = sor.u32 %s437, %s438
      %p440 = scmp.eq.s32.totalorder %s439, 0
      %s442 = sadd.s32 %s441, 1
      %s443 = scalar_select %p440, %s441, %s442
      %p446 = pneg %p440
      %p447 = scmp.eq.s32.totalorder %s27, 1
      %p448 = por %p446, %p447
      %p449 = scmp.ne.s32.totalorder %s441, %s444
      %p450 = scmp.eq.s32.totalorder %s27, 0
      %p451 = por %p449, %p450
      %p452 = scmp.ne.s32.totalorder %s441, %s444
      %p453 = scmp.eq.s32.totalorder %s32, 1
      %p454 = por %p452, %p453
      %p455 = scmp.ne.s32.totalorder %s444, %s445
      %p456 = scmp.eq.s32.totalorder %s32, 0
      %p457 = por %p455, %p456
      %p458 = scmp.ne.s32.totalorder %s444, %s445
      %p459 = scmp.eq.s32.totalorder %s33, 1
      %p460 = por %p458, %p459
      %p462 = scmp.ne.s32.totalorder %s445, %s461
      %p463 = scmp.eq.s32.totalorder %s33, 0
      %p464 = por %p462, %p463
      %p465 = scmp.le.s32.totalorder 1, %s27
      %p466 = scmp.lt.s32.totalorder %s27, 3
      %p467 = pnand %p465, %p466
      %p468 = pneg %p467
      // Predicated region
      $region9: #{tpu_custom_call.1} parent=5 // pred_check
        _
      $region10: #{tpu_custom_call.1} parent=5 // pred_check_branch
        %470 = sbr.rel (%p467) target = $region12
      $region11: #{tpu_custom_call.1} parent=5 // pred_region
        %s471 = ssub.s32 %s27, 1
        // Predicated region
        $region13: #{tpu_custom_call.1} parent=11 // pred_check
          %p472 = pneg %p65
        $region14: #{tpu_custom_call.1} parent=11 // pred_check_branch
          %474 = sbr.rel (%p472) target = $region16
        $region15: #{tpu_custom_call.1} parent=11 // pred_region
          %s475 = smul.u32 2, %s36
          %s477 = ssub.s32 256, 256
          %478 = vsyncadd [#allocation5], %s477
          %s479 = smul.addr %s475, 128
          %s480 = scalar_lea.hbm %s0, %s479
          %s481 = sshll.u32 [#allocation4], 4
          %s482 = int_to_ptr.vmem [resolvable:$true] %s481
          %487 = dma.hbm_to_vmem [thread:$0]  %s480, 256, %s482, [#allocation5], 128, 128, 8
        $region16: #{tpu_custom_call.1} parent=11 // pred_fallthru
          _
        // Predicated region
        $region17: #{tpu_custom_call.1} parent=11 // pred_check
          %p488 = pneg %p91
        $region18: #{tpu_custom_call.1} parent=11 // pred_check_branch
          %490 = sbr.rel (%p488) target = $region20
        $region19: #{tpu_custom_call.1} parent=11 // pred_region
          %s491 = smul.u32 2, %s36
          %p492 = scmp.lt.s32.totalorder %s491, 1
          %s493 = scalar_select %p492, %s491, 1
          %s494 = scalar_lea.vmem %s1, %s493
          %s495 = smul.u32 2, %s36
        $region20: #{tpu_custom_call.1} parent=11 // pred_fallthru
          _
      $region12: #{tpu_custom_call.1} parent=5 // pred_fallthru
        _
      %p496 = scmp.lt.s32.totalorder %s27, 2
      // Predicated region
      $region21: #{tpu_custom_call.1} parent=5 // pred_check
        %p497 = pneg %p496
      $region22: #{tpu_custom_call.1} parent=5 // pred_check_branch
        %499 = sbr.rel (%p497) target = $region24
      $region23: #{tpu_custom_call.1} parent=5 // pred_region
        // Predicated region
        $region25: #{tpu_custom_call.1} parent=23 // pred_check
          %p500 = pneg %p111
        $region26: #{tpu_custom_call.1} parent=23 // pred_check_branch
          %502 = sbr.rel (%p500) target = $region28
        $region27: #{tpu_custom_call.1} parent=23 // pred_region
          %p503 = scmp.lt.s32.totalorder %s35, 1
          %s504 = scalar_select %p503, %s35, 1
          %s505 = smul.addr %s504, 4
          %s506 = smul.addr %s505, 8
          %s507 = scalar_lea.vmem %s2, %s506
        $region28: #{tpu_custom_call.1} parent=23 // pred_fallthru
          _
        // Predicated region
        $region29: #{tpu_custom_call.1} parent=23 // pred_check
          %p508 = pneg %p137
        $region30: #{tpu_custom_call.1} parent=23 // pred_check_branch
          %510 = sbr.rel (%p508) target = $region32
        $region31: #{tpu_custom_call.1} parent=23 // pred_region
          %p511 = scmp.lt.s32.totalorder %s35, 1
          %s512 = scalar_select %p511, %s35, 1
          %s513 = scalar_lea.vmem %s3, %s512
        $region32: #{tpu_custom_call.1} parent=23 // pred_fallthru
          _
        // Predicated region
        $region33: #{tpu_custom_call.1} parent=23 // pred_check
          %p514 = pneg %p163
        $region34: #{tpu_custom_call.1} parent=23 // pred_check_branch
          %516 = sbr.rel (%p514) target = $region36
        $region35: #{tpu_custom_call.1} parent=23 // pred_region
          %p517 = scmp.lt.s32.totalorder %s35, 1
          %s518 = scalar_select %p517, %s35, 1
          %s519 = smul.addr %s518, 4
          %s520 = smul.addr %s519, 8
          %s521 = scalar_lea.vmem %s4, %s520
        $region36: #{tpu_custom_call.1} parent=23 // pred_fallthru
          _
        // Predicated region
        $region37: #{tpu_custom_call.1} parent=23 // pred_check
          %p522 = pneg %p189
        $region38: #{tpu_custom_call.1} parent=23 // pred_check_branch
          %524 = sbr.rel (%p522) target = $region40
        $region39: #{tpu_custom_call.1} parent=23 // pred_region
          %p525 = scmp.lt.s32.totalorder %s35, 1
          %s526 = scalar_select %p525, %s35, 1
          %s527 = scalar_lea.vmem %s5, %s526
        $region40: #{tpu_custom_call.1} parent=23 // pred_fallthru
          _
        // Predicated region
        $region41: #{tpu_custom_call.1} parent=23 // pred_check
          %p528 = pneg %p215
        $region42: #{tpu_custom_call.1} parent=23 // pred_check_branch
          %530 = sbr.rel (%p528) target = $region44
        $region43: #{tpu_custom_call.1} parent=23 // pred_region
          %p531 = scmp.lt.s32.totalorder %s35, 1
          %s532 = scalar_select %p531, %s35, 1
          %s533 = scalar_lea.vmem %s6, %s532
        $region44: #{tpu_custom_call.1} parent=23 // pred_fallthru
          _
        // Predicated region
        $region45: #{tpu_custom_call.1} parent=23 // pred_check
          %p534 = pneg %p241
        $region46: #{tpu_custom_call.1} parent=23 // pred_check_branch
          %536 = sbr.rel (%p534) target = $region48
        $region47: #{tpu_custom_call.1} parent=23 // pred_region
          %p537 = scmp.lt.s32.totalorder %s35, 1
          %s538 = scalar_select %p537, %s35, 1
          %s539 = scalar_lea.vmem %s7, %s538
        $region48: #{tpu_custom_call.1} parent=23 // pred_fallthru
          _
        // Predicated region
        $region49: #{tpu_custom_call.1} parent=23 // pred_check
          %p540 = pneg %p267
        $region50: #{tpu_custom_call.1} parent=23 // pred_check_branch
          %542 = sbr.rel (%p540) target = $region52
        $region51: #{tpu_custom_call.1} parent=23 // pred_region
          %p543 = scmp.lt.s32.totalorder %s35, 1
          %s544 = scalar_select %p543, %s35, 1
          %s545 = smul.addr %s544, 4
          %s546 = smul.addr %s545, 8
          %s547 = scalar_lea.vmem %s8, %s546
        $region52: #{tpu_custom_call.1} parent=23 // pred_fallthru
          _
        // Predicated region
        $region53: #{tpu_custom_call.1} parent=23 // pred_check
          %p548 = pneg %p293
        $region54: #{tpu_custom_call.1} parent=23 // pred_check_branch
          %550 = sbr.rel (%p548) target = $region56
        $region55: #{tpu_custom_call.1} parent=23 // pred_region
          %p551 = scmp.lt.s32.totalorder %s35, 1
          %s552 = scalar_select %p551, %s35, 1
          %s553 = scalar_lea.vmem %s9, %s552
        $region56: #{tpu_custom_call.1} parent=23 // pred_fallthru
          _
        // Predicated region
        $region57: #{tpu_custom_call.1} parent=23 // pred_check
          %p554 = pneg %p319
        $region58: #{tpu_custom_call.1} parent=23 // pred_check_branch
          %556 = sbr.rel (%p554) target = $region60
        $region59: #{tpu_custom_call.1} parent=23 // pred_region
          %p557 = scmp.lt.s32.totalorder %s35, 1
          %s558 = scalar_select %p557, %s35, 1
          %s559 = smul.addr %s558, 8
          %s560 = smul.addr %s559, 8
          %s561 = scalar_lea.vmem %s10, %s560
        $region60: #{tpu_custom_call.1} parent=23 // pred_fallthru
          _
        // Predicated region
        $region61: #{tpu_custom_call.1} parent=23 // pred_check
          %p562 = pneg %p345
        $region62: #{tpu_custom_call.1} parent=23 // pred_check_branch
          %564 = sbr.rel (%p562) target = $region64
        $region63: #{tpu_custom_call.1} parent=23 // pred_region
          %p565 = scmp.lt.s32.totalorder %s35, 1
          %s566 = scalar_select %p565, %s35, 1
          %s567 = scalar_lea.vmem %s11, %s566
        $region64: #{tpu_custom_call.1} parent=23 // pred_fallthru
          _
        // Predicated region
        $region65: #{tpu_custom_call.1} parent=23 // pred_check
          %p568 = pneg %p371
        $region66: #{tpu_custom_call.1} parent=23 // pred_check_branch
          %570 = sbr.rel (%p568) target = $region68
        $region67: #{tpu_custom_call.1} parent=23 // pred_region
          %p571 = scmp.lt.s32.totalorder %s35, 1
          %s572 = scalar_select %p571, %s35, 1
          %s573 = scalar_lea.vmem %s12, %s572
        $region68: #{tpu_custom_call.1} parent=23 // pred_fallthru
          _
        // Predicated region
        $region69: #{tpu_custom_call.1} parent=23 // pred_check
          %p574 = pneg %p397
        $region70: #{tpu_custom_call.1} parent=23 // pred_check_branch
          %576 = sbr.rel (%p574) target = $region72
        $region71: #{tpu_custom_call.1} parent=23 // pred_region
          %p577 = scmp.lt.s32.totalorder %s35, 1
          %s578 = scalar_select %p577, %s35, 1
          %s579 = scalar_lea.vmem %s13, %s578
        $region72: #{tpu_custom_call.1} parent=23 // pred_fallthru
          _
      $region24: #{tpu_custom_call.1} parent=5 // pred_fallthru
        _
      %p580 = scmp.le.s32.totalorder 1, %s27
      %p581 = scmp.lt.s32.totalorder %s27, 3
      %p582 = pnand %p580, %p581
      %p583 = pneg %p582
      // Predicated region
      $region73: #{tpu_custom_call.1} parent=5 // pred_check
        _
      $region74: #{tpu_custom_call.1} parent=5 // pred_check_branch
        %585 = sbr.rel (%p582) target = $region76
      $region75: #{tpu_custom_call.1} parent=5 // pred_region
        %s586 = ssub.s32 %s27, 1
        // Predicated region
        $region77: #{tpu_custom_call.1} parent=75 // pred_check
          %p587 = pneg %p65
        $region78: #{tpu_custom_call.1} parent=75 // pred_check_branch
          %589 = sbr.rel (%p587) target = $region80
        $region79: #{tpu_custom_call.1} parent=75 // pred_region
          %590 = dma.done [#allocation5], 256
        $region80: #{tpu_custom_call.1} parent=75 // pred_fallthru
          _
        %p591 = pneg %p65
        %p592 = pneg %p62
        %s593 = smul.u32 2, %s36
        %p594 = scmp.lt.s32.totalorder %s593, 1
        %s595 = scalar_select %p594, %s593, 1
        %s596 = scalar_lea.vmem %s1, %s595
        %p597 = pneg %p91
        %p598 = pneg %p88
        %p599 = scmp.lt.s32.totalorder %s37, 1
        %s600 = scalar_select %p599, %s37, 1
        %s601 = smul.addr %s600, 4
        %s602 = smul.addr %s601, 8
        %s603 = scalar_lea.vmem %s2, %s602
        %p604 = pneg %p117
        %p605 = pneg %p114
        %p606 = scmp.lt.s32.totalorder %s37, 1
        %s607 = scalar_select %p606, %s37, 1
        %s608 = scalar_lea.vmem %s3, %s607
        %p609 = pneg %p143
        %p610 = pneg %p140
        %p611 = scmp.lt.s32.totalorder %s37, 1
        %s612 = scalar_select %p611, %s37, 1
        %s613 = smul.addr %s612, 4
        %s614 = smul.addr %s613, 8
        %s615 = scalar_lea.vmem %s4, %s614
        %p616 = pneg %p169
        %p617 = pneg %p166
        %p618 = scmp.lt.s32.totalorder %s37, 1
        %s619 = scalar_select %p618, %s37, 1
        %s620 = scalar_lea.vmem %s5, %s619
        %p621 = pneg %p195
        %p622 = pneg %p192
        %p623 = scmp.lt.s32.totalorder %s37, 1
        %s624 = scalar_select %p623, %s37, 1
        %s625 = scalar_lea.vmem %s6, %s624
        %p626 = pneg %p221
        %p627 = pneg %p218
        %p628 = scmp.lt.s32.totalorder %s37, 1
        %s629 = scalar_select %p628, %s37, 1
        %s630 = scalar_lea.vmem %s7, %s629
        %p631 = pneg %p247
        %p632 = pneg %p244
        %p633 = scmp.lt.s32.totalorder %s37, 1
        %s634 = scalar_select %p633, %s37, 1
        %s635 = smul.addr %s634, 4
        %s636 = smul.addr %s635, 8
        %s637 = scalar_lea.vmem %s8, %s636
        %p638 = pneg %p273
        %p639 = pneg %p270
        %p640 = scmp.lt.s32.totalorder %s37, 1
        %s641 = scalar_select %p640, %s37, 1
        %s642 = scalar_lea.vmem %s9, %s641
        %p643 = pneg %p299
        %p644 = pneg %p296
        %p645 = scmp.lt.s32.totalorder %s37, 1
        %s646 = scalar_select %p645, %s37, 1
        %s647 = smul.addr %s646, 8
        %s648 = smul.addr %s647, 8
        %s649 = scalar_lea.vmem %s10, %s648
        %p650 = pneg %p325
        %p651 = pneg %p322
        %p652 = scmp.lt.s32.totalorder %s37, 1
        %s653 = scalar_select %p652, %s37, 1
        %s654 = scalar_lea.vmem %s11, %s653
        %p655 = pneg %p351
        %p656 = pneg %p348
        %p657 = scmp.lt.s32.totalorder %s37, 1
        %s658 = scalar_select %p657, %s37, 1
        %s659 = scalar_lea.vmem %s12, %s658
        %p660 = pneg %p377
        %p661 = pneg %p374
        %p662 = scmp.lt.s32.totalorder %s37, 1
        %s663 = scalar_select %p662, %s37, 1
        %s664 = scalar_lea.vmem %s13, %s663
        %p665 = pneg %p403
        %p666 = pneg %p400
        %p667 = pneg %p429
        %p668 = pneg %p426
        %p669 = pneg %p457
        %p670 = pneg %p454
        %s671 = sand.u32 %s444, 1
        %s672 = scalar_lea.sflag [#allocation9], %s671
        %s673 = sand.u32 %s444, 1
        %s674 = smul.addr %s673, 64
        %s675 = scalar_lea.vmem [#allocation8], %s674
        %s676 = smul.u32 2, %s36
        %s677 = smul.u32 2, %s36
        %p678 = scmp.lt.s32.totalorder %s677, 1
        %s679 = scalar_select %p678, %s677, 1
        %s680 = scalar_lea.vmem %s1, %s679
        %s681 = smul.u32 2, %s36
        %p682 = scmp.lt.s32.totalorder %s37, 1
        %s683 = scalar_select %p682, %s37, 1
        %s684 = smul.addr %s683, 4
        %s685 = smul.addr %s684, 8
        %s686 = scalar_lea.vmem %s2, %s685
        %p687 = scmp.lt.s32.totalorder %s37, 1
        %s688 = scalar_select %p687, %s37, 1
        %s689 = scalar_lea.vmem %s3, %s688
        %p690 = scmp.lt.s32.totalorder %s37, 1
        %s691 = scalar_select %p690, %s37, 1
        %s692 = smul.addr %s691, 4
        %s693 = smul.addr %s692, 8
        %s694 = scalar_lea.vmem %s4, %s693
        %p695 = scmp.lt.s32.totalorder %s37, 1
        %s696 = scalar_select %p695, %s37, 1
        %s697 = scalar_lea.vmem %s5, %s696
        %p698 = scmp.lt.s32.totalorder %s37, 1
        %s699 = scalar_select %p698, %s37, 1
        %s700 = scalar_lea.vmem %s6, %s699
        %p701 = scmp.lt.s32.totalorder %s37, 1
        %s702 = scalar_select %p701, %s37, 1
        %s703 = scalar_lea.vmem %s7, %s702
        %p704 = scmp.lt.s32.totalorder %s37, 1
        %s705 = scalar_select %p704, %s37, 1
        %s706 = smul.addr %s705, 4
        %s707 = smul.addr %s706, 8
        %s708 = scalar_lea.vmem %s8, %s707
        %p709 = scmp.lt.s32.totalorder %s37, 1
        %s710 = scalar_select %p709, %s37, 1
        %s711 = scalar_lea.vmem %s9, %s710
        %p712 = scmp.lt.s32.totalorder %s37, 1
        %s713 = scalar_select %p712, %s37, 1
        %s714 = smul.addr %s713, 8
        %s715 = smul.addr %s714, 8
        %s716 = scalar_lea.vmem %s10, %s715
        %p717 = scmp.lt.s32.totalorder %s37, 1
        %s718 = scalar_select %p717, %s37, 1
        %s719 = scalar_lea.vmem %s11, %s718
        %p720 = scmp.lt.s32.totalorder %s37, 1
        %s721 = scalar_select %p720, %s37, 1
        %s722 = scalar_lea.vmem %s12, %s721
        %p723 = scmp.lt.s32.totalorder %s37, 1
        %s724 = scalar_select %p723, %s37, 1
        %s725 = scalar_lea.vmem %s13, %s724
        %s726 = smul.u32 2, %s36
        %s727 = smul.u32 2, %s36
        %p728 = scmp.eq.s32.totalorder %s37, 0
        // Predicated region
        $region81: #{tpu_custom_call.1} parent=75 // pred_check
          %p729 = pneg %p728
        $region82: #{tpu_custom_call.1} parent=75 // pred_check_branch
          %731 = sbr.rel (%p729) target = $region84
        $region83: #{tpu_custom_call.1} parent=75 // pred_region
          %v732 = vld [vmem:[#allocation4] sm:$0xff]
          %v733 = vld [vmem:[#allocation4 + $0x8] sm:$0xff]
          %vm734 = vcmask 261120
          %735 = vst.msk [vmem:[#allocation7] sm:$0xff] %vm734, %v732
          %736 = vst.msk [vmem:[#allocation7 + $0x8] sm:$0xff] %vm734, %v733
          %v737 = vlaneseq
          %v738 = vshrl.u32 %v737, 7
          %v739 = vlaneseq
          %v740 = vand.u32 %v739, 127
          %vm741 = vcmp.gt.s32.totalorder %v740, %v738
          %v742 = vld [vmem:[%s680] sm:$0x1]
          %v743 = vld [vmem:[%s680 + $0x1] sm:$0x1]
          %vm744 = vcmp.gt.f32.partialorder %v742, 0.0
          %vm745 = vcmp.gt.f32.partialorder %v743, 0.0
          %v746 = vsel %vm741, 1, 0
          %vm747 = vcmp.eq.s32.totalorder %v746, 1
          %v748 = vsel %vm744, 1, 0
          %v749 = vsel %vm745, 1, 0
          %v750 = vlaneseq
          %v751 = vshrl.u32 %v750, 7
          %v752 = vsub.s32 0, %v751
          %v753 = vrot.slane %v748, %v752
          %v754 = vlaneseq
          %v755 = vshrl.u32 %v754, 7
          %v756 = vsub.s32 0, %v755
          %v757 = vrot.slane %v749, %v756
          %vm758 = vcmp.eq.s32.totalorder %v753, 1
          %vm759 = vcmp.eq.s32.totalorder %v757, 1
          %vm760 = vmor %vm747, %vm758
          %vm761 = vmor %vm747, %vm759
          %v762 = vsel %vm760, 1.0, 0.0
          %v763 = vsel %vm761, 1.0, 0.0
          %vm764 = vcmask 64512
          %765 = vst.msk [vmem:[#allocation2] sm:$0xff] %vm764, %v762
          %766 = vst.msk [vmem:[#allocation2 + $0x8] sm:$0xff] %vm764, %v763
        $region84: #{tpu_custom_call.1} parent=75 // pred_fallthru
          _
        %v767 = vld [vmem:[#allocation7] sm:$0xff]
        %v768 = vld [vmem:[#allocation7 + $0x8] sm:$0xff]
        %v769 = vld [vmem:[#allocation2] sm:$0xff]
        %v770 = vld [vmem:[#allocation2 + $0x8] sm:$0xff]
        %vm771 = vcmp.gt.f32.partialorder %v769, 0.5
        %vm772 = vcmp.gt.f32.partialorder %v770, 0.5
        %v773 = vld [vmem:[%s686] sm:$0xff]
        %v774 = vld [vmem:[%s686 + $0x8] sm:$0xff]
        %v775 = vld [vmem:[%s686 + $0x10] sm:$0xff]
        %v776 = vld [vmem:[%s686 + $0x18] sm:$0xff]
        %v777 = vld [vmem:[%s689] sm:$0x1]
        %v779 = vlaneseq
        %v780 = vshrl.u32 %v779, 7
        %v781 = vsub.s32 0, %v780
        %v782 = vrot.slane %v777, %v781
        %vm784 = vcmask 261120
        %v786 = vsel %vm784, %v767, 0
        %v789 = vsel %vm784, %v768, 0
        %791 = vmatprep.subr.mxu0 0.0
        %792 = vmatpush1.msra.mxu0 %v773
        %793 = vmatprep.subr.mxu0 0.0
        %794 = vmatpush1.msra.mxu0 %v774
        %795 = vmatprep.subr.mxu0 0.0
        %796 = vmatpush1.msra.mxu0 %v775
        %797 = vmatprep.subr.mxu0 0.0
        %798 = vmatpush1.msra.mxu0 %v776
        %799 = vmatprep.subr.mxu0 0.0
        %800 = vmatpush1.msra.mxu0 0.0
        %801 = vmatprep.subr.mxu0 0.0
        %802 = vmatpush1.msra.mxu0 0.0
        %803 = vmatprep.subr.mxu0 0.0
        %804 = vmatpush1.msra.mxu0 0.0
        %805 = vmatprep.subr.mxu0 0.0
        %806 = vmatpush1.msra.mxu0 0.0
        %807 = vmatprep.subr.mxu0 0.0
        %808 = vmatpush1.msra.mxu0 0.0
        %809 = vmatprep.subr.mxu0 0.0
        %810 = vmatpush1.msra.mxu0 0.0
        %811 = vmatprep.subr.mxu0 0.0
        %812 = vmatpush1.msra.mxu0 0.0
        %813 = vmatprep.subr.mxu0 0.0
        %814 = vmatpush1.msra.mxu0 0.0
        %815 = vmatprep.subr.mxu0 0.0
        %816 = vmatpush1.msra.mxu0 0.0
        %817 = vmatprep.subr.mxu0 0.0
        %818 = vmatpush1.msra.mxu0 0.0
        %819 = vmatprep.subr.mxu0 0.0
        %820 = vmatpush1.msra.mxu0 0.0
        %821 = vmatprep.subr.mxu0 0.0
        %822 = vmatpush1.msra.mxu0 0.0
        %823 = vmatprep.subr.mxu0 0.0
        %824 = vmatpush1.msra.mxu0 0.0
        %825 = vmatprep.subr.mxu0 0.0
        %826 = vmatpush1.msra.mxu0 0.0
        %827 = vmatprep.subr.mxu0 0.0
        %828 = vmatpush1.msra.mxu0 0.0
        %829 = vmatprep.subr.mxu0 0.0
        %830 = vmatpush1.msra.mxu0 0.0
        %831 = vmatprep.subr.mxu0 0.0
        %832 = vmatpush1.msra.mxu0 0.0
        %833 = vmatprep.subr.mxu0 0.0
        %834 = vmatpush1.msra.mxu0 0.0
        %835 = vmatprep.subr.mxu0 0.0
        %836 = vmatpush1.msra.mxu0 0.0
        %837 = vmatprep.subr.mxu0 0.0
        %838 = vmatpush1.msra.mxu0 0.0
        %839 = vmatprep.subr.mxu0 0.0
        %840 = vmatpush1.msra.mxu0 0.0
        %841 = vmatprep.subr.mxu0 0.0
        %842 = vmatpush1.msra.mxu0 0.0
        %843 = vmatprep.subr.mxu0 0.0
        %844 = vmatpush1.msra.mxu0 0.0
        %845 = vmatprep.subr.mxu0 0.0
        %846 = vmatpush1.msra.mxu0 0.0
        %847 = vmatprep.subr.mxu0 0.0
        %848 = vmatpush1.msra.mxu0 0.0
        %849 = vmatprep.subr.mxu0 0.0
        %850 = vmatpush1.msra.mxu0 0.0
        %851 = vmatprep.subr.mxu0 0.0
        %852 = vmatpush1.msra.mxu0 0.0
        %853 = vmatprep.subr.mxu0 0.0
        %854 = vmatpush1.msra.mxu0 0.0
        %855 = vmatprep.mubr.f32.mxu0 0.0
        %856 = vmatmul.mubr.f32.gmra.mrb[0].mxu0 %v786
        %v857 = vpop.f32.mrb[0].mxu0
        %v858 = vadd.f32 %v782, %v857
        %v859 = vpop.f32.mrb[0].mxu0
        %860 = vmatprep.mubr.f32.mxu0 0.0
        %861 = vmatmul.mubr.f32.gmra.mrb[0].mxu0 %v789
        %v862 = vpop.f32.mrb[0].mxu0
        %v863 = vadd.f32 %v782, %v862
        %v864 = vpop.f32.mrb[0].mxu0
        %865 = vdwg.mxu0
        %867 = vrot.lane.b32.xlu0 %v858, 96
        %v868 = vpop.permute.xlu0 %867
        %vm869 = vcmask 64512
        %v870 = vsel %vm869, %v858, 0
        %v872 = vsel %vm869, %v868, 0
        %874 = vmatprep.subr.mxu0 0.0
        %875 = vmatpush1.xpose.msra.mxu0 %v872
        %876 = vmatprep.subr.mxu0 0.0
        %877 = vmatpush1.xpose.msra.mxu0 0.0
        %878 = vmatprep.subr.mxu0 0.0
        %879 = vmatpush1.xpose.msra.mxu0 0.0
        %880 = vmatprep.subr.mxu0 0.0
        %881 = vmatpush1.xpose.msra.mxu0 0.0
        %882 = vmatprep.subr.mxu0 0.0
        %883 = vmatpush1.xpose.msra.mxu0 0.0
        %884 = vmatprep.subr.mxu0 0.0
        %885 = vmatpush1.xpose.msra.mxu0 0.0
        %886 = vmatprep.subr.mxu0 0.0
        %887 = vmatpush1.xpose.msra.mxu0 0.0
        %888 = vmatprep.subr.mxu0 0.0
        %889 = vmatpush1.xpose.msra.mxu0 0.0
        %890 = vmatprep.subr.mxu0 0.0
        %891 = vmatpush1.xpose.msra.mxu0 0.0
        %892 = vmatprep.subr.mxu0 0.0
        %893 = vmatpush1.xpose.msra.mxu0 0.0
        %894 = vmatprep.subr.mxu0 0.0
        %895 = vmatpush1.xpose.msra.mxu0 0.0
        %896 = vmatprep.subr.mxu0 0.0
        %897 = vmatpush1.xpose.msra.mxu0 0.0
        %898 = vmatprep.subr.mxu0 0.0
        %899 = vmatpush1.xpose.msra.mxu0 0.0
        %900 = vmatprep.subr.mxu0 0.0
        %901 = vmatpush1.xpose.msra.mxu0 0.0
        %902 = vmatprep.subr.mxu0 0.0
        %903 = vmatpush1.xpose.msra.mxu0 0.0
        %904 = vmatprep.subr.mxu0 0.0
        %905 = vmatpush1.xpose.msra.mxu0 0.0
        %906 = vmatprep.subr.mxu0 0.0
        %907 = vmatpush1.xpose.msra.mxu0 0.0
        %908 = vmatprep.subr.mxu0 0.0
        %909 = vmatpush1.xpose.msra.mxu0 0.0
        %910 = vmatprep.subr.mxu0 0.0
        %911 = vmatpush1.xpose.msra.mxu0 0.0
        %912 = vmatprep.subr.mxu0 0.0
        %913 = vmatpush1.xpose.msra.mxu0 0.0
        %914 = vmatprep.subr.mxu0 0.0
        %915 = vmatpush1.xpose.msra.mxu0 0.0
        %916 = vmatprep.subr.mxu0 0.0
        %917 = vmatpush1.xpose.msra.mxu0 0.0
        %918 = vmatprep.subr.mxu0 0.0
        %919 = vmatpush1.xpose.msra.mxu0 0.0
        %920 = vmatprep.subr.mxu0 0.0
        %921 = vmatpush1.xpose.msra.mxu0 0.0
        %922 = vmatprep.subr.mxu0 0.0
        %923 = vmatpush1.xpose.msra.mxu0 0.0
        %924 = vmatprep.subr.mxu0 0.0
        %925 = vmatpush1.xpose.msra.mxu0 0.0
        %926 = vmatprep.subr.mxu0 0.0
        %927 = vmatpush1.xpose.msra.mxu0 0.0
        %928 = vmatprep.subr.mxu0 0.0
        %929 = vmatpush1.xpose.msra.mxu0 0.0
        %930 = vmatprep.subr.mxu0 0.0
        %931 = vmatpush1.xpose.msra.mxu0 0.0
        %932 = vmatprep.subr.mxu0 0.0
        %933 = vmatpush1.xpose.msra.mxu0 0.0
        %934 = vmatprep.subr.mxu0 0.0
        %935 = vmatpush1.xpose.msra.mxu0 0.0
        %936 = vmatprep.subr.mxu0 0.0
        %937 = vmatpush1.xpose.msra.mxu0 0.0
        %938 = vmatprep.mubr.f32.mxu0 0.0
        %939 = vmatmul.mubr.f32.gmra.mrb[0].mxu0 %v870
        %v940 = vpop.f32.mrb[0].mxu0
        %v941 = vadd.f32 0.0, %v940
        %v942 = vpop.f32.mrb[0].mxu0
        %943 = vdwg.mxu0
        %945 = vrot.lane.b32.xlu0 %v863, 96
        %v946 = vpop.permute.xlu0 %945
        %v947 = vsel %vm869, %v863, 0
        %v949 = vsel %vm869, %v946, 0
        %951 = vmatprep.subr.mxu0 0.0
        %952 = vmatpush1.xpose.msra.mxu0 %v949
        %953 = vmatprep.subr.mxu0 0.0
        %954 = vmatpush1.xpose.msra.mxu0 0.0
        %955 = vmatprep.subr.mxu0 0.0
        %956 = vmatpush1.xpose.msra.mxu0 0.0
        %957 = vmatprep.subr.mxu0 0.0
        %958 = vmatpush1.xpose.msra.mxu0 0.0
        %959 = vmatprep.subr.mxu0 0.0
        %960 = vmatpush1.xpose.msra.mxu0 0.0
        %961 = vmatprep.subr.mxu0 0.0
        %962 = vmatpush1.xpose.msra.mxu0 0.0
        %963 = vmatprep.subr.mxu0 0.0
        %964 = vmatpush1.xpose.msra.mxu0 0.0
        %965 = vmatprep.subr.mxu0 0.0
        %966 = vmatpush1.xpose.msra.mxu0 0.0
        %967 = vmatprep.subr.mxu0 0.0
        %968 = vmatpush1.xpose.msra.mxu0 0.0
        %969 = vmatprep.subr.mxu0 0.0
        %970 = vmatpush1.xpose.msra.mxu0 0.0
        %971 = vmatprep.subr.mxu0 0.0
        %972 = vmatpush1.xpose.msra.mxu0 0.0
        %973 = vmatprep.subr.mxu0 0.0
        %974 = vmatpush1.xpose.msra.mxu0 0.0
        %975 = vmatprep.subr.mxu0 0.0
        %976 = vmatpush1.xpose.msra.mxu0 0.0
        %977 = vmatprep.subr.mxu0 0.0
        %978 = vmatpush1.xpose.msra.mxu0 0.0
        %979 = vmatprep.subr.mxu0 0.0
        %980 = vmatpush1.xpose.msra.mxu0 0.0
        %981 = vmatprep.subr.mxu0 0.0
        %982 = vmatpush1.xpose.msra.mxu0 0.0
        %983 = vmatprep.subr.mxu0 0.0
        %984 = vmatpush1.xpose.msra.mxu0 0.0
        %985 = vmatprep.subr.mxu0 0.0
        %986 = vmatpush1.xpose.msra.mxu0 0.0
        %987 = vmatprep.subr.mxu0 0.0
        %988 = vmatpush1.xpose.msra.mxu0 0.0
        %989 = vmatprep.subr.mxu0 0.0
        %990 = vmatpush1.xpose.msra.mxu0 0.0
        %991 = vmatprep.subr.mxu0 0.0
        %992 = vmatpush1.xpose.msra.mxu0 0.0
        %993 = vmatprep.subr.mxu0 0.0
        %994 = vmatpush1.xpose.msra.mxu0 0.0
        %995 = vmatprep.subr.mxu0 0.0
        %996 = vmatpush1.xpose.msra.mxu0 0.0
        %997 = vmatprep.subr.mxu0 0.0
        %998 = vmatpush1.xpose.msra.mxu0 0.0
        %999 = vmatprep.subr.mxu0 0.0
        %1000 = vmatpush1.xpose.msra.mxu0 0.0
        %1001 = vmatprep.subr.mxu0 0.0
        %1002 = vmatpush1.xpose.msra.mxu0 0.0
        %1003 = vmatprep.subr.mxu0 0.0
        %1004 = vmatpush1.xpose.msra.mxu0 0.0
        %1005 = vmatprep.subr.mxu0 0.0
        %1006 = vmatpush1.xpose.msra.mxu0 0.0
        %1007 = vmatprep.subr.mxu0 0.0
        %1008 = vmatpush1.xpose.msra.mxu0 0.0
        %1009 = vmatprep.subr.mxu0 0.0
        %1010 = vmatpush1.xpose.msra.mxu0 0.0
        %1011 = vmatprep.subr.mxu0 0.0
        %1012 = vmatpush1.xpose.msra.mxu0 0.0
        %1013 = vmatprep.subr.mxu0 0.0
        %1014 = vmatpush1.xpose.msra.mxu0 0.0
        %1015 = vmatprep.mubr.f32.mxu0 0.0
        %1016 = vmatmul.mubr.f32.gmra.mrb[0].mxu0 %v947
        %v1017 = vpop.f32.mrb[0].mxu0
        %v1018 = vadd.f32 0.0, %v1017
        %v1019 = vpop.f32.mrb[0].mxu0
        %1020 = vdwg.mxu0
        %v1021 = vmul.f32 %v941, 0.35355338
        %v1022 = vmul.f32 %v1018, 0.35355338
        %v1023 = vsel %vm771, -1e+09, %v1021
        %v1024 = vsel %vm772, -1e+09, %v1022
        %v1025 = vsel %vm869, %v1023, -inf
        %1026 = vmax.xlane.f32.xlu0 %v1025
        %v1027 = vpop.xlane.xlu0 %1026
        %v1028 = vsel %vm869, %v1024, -inf
        %1029 = vmax.xlane.f32.xlu0 %v1028
        %v1030 = vpop.xlane.xlu0 %1029
        %v1031 = vsub.f32 %v1023, %v1027
        %v1032 = vsub.f32 %v1024, %v1030
        %v1033 = vmul.f32 %v1031, 1.442695
        %v1034 = vpow.pop %v1033
        %v1035 = vmul.f32 %v1032, 1.442695
        %v1036 = vpow.pop %v1035
        %v1037 = vsel %vm869, %v1034, 0.0
        %1038 = vadd.xlane.f32.xlu0 %v1037
        %v1039 = vpop.xlane.xlu0 %1038
        %v1040 = vsel %vm869, %v1036, 0.0
        %1041 = vadd.xlane.f32.xlu0 %v1040
        %v1042 = vpop.xlane.xlu0 %1041
        %v1043 = vrcp.pop %v1039
        %v1044 = vrcp.pop %v1042
        %v1045 = vmul.f32 %v1034, %v1043
        %v1046 = vmul.f32 %v1036, %v1044
        %1047 = vst.msk [vmem:[%s675] sm:$0xff] %vm869, %v1045
        %1048 = vst.msk [vmem:[%s675 + $0x8] sm:$0xff] %vm869, %v1046
        %1049 = vrot.lane.b32.xlu0 %v858, 64
        %v1050 = vpop.permute.xlu0 %1049
        %v1053 = vsel %vm869, %v1045, 0
        %1055 = vmatprep.subr.mxu0 0.0
        %1056 = vmatpush1.msra.mxu0 %v1050
        %1057 = vmatprep.subr.mxu0 0.0
        %1058 = vmatpush1.msra.mxu0 0.0
        %1059 = vmatprep.subr.mxu0 0.0
        %1060 = vmatpush1.msra.mxu0 0.0
        %1061 = vmatprep.subr.mxu0 0.0
        %1062 = vmatpush1.msra.mxu0 0.0
        %1063 = vmatprep.subr.mxu0 0.0
        %1064 = vmatpush1.msra.mxu0 0.0
        %1065 = vmatprep.subr.mxu0 0.0
        %1066 = vmatpush1.msra.mxu0 0.0
        %1067 = vmatprep.subr.mxu0 0.0
        %1068 = vmatpush1.msra.mxu0 0.0
        %1069 = vmatprep.subr.mxu0 0.0
        %1070 = vmatpush1.msra.mxu0 0.0
        %1071 = vmatprep.subr.mxu0 0.0
        %1072 = vmatpush1.msra.mxu0 0.0
        %1073 = vmatprep.subr.mxu0 0.0
        %1074 = vmatpush1.msra.mxu0 0.0
        %1075 = vmatprep.subr.mxu0 0.0
        %1076 = vmatpush1.msra.mxu0 0.0
        %1077 = vmatprep.subr.mxu0 0.0
        %1078 = vmatpush1.msra.mxu0 0.0
        %1079 = vmatprep.subr.mxu0 0.0
        %1080 = vmatpush1.msra.mxu0 0.0
        %1081 = vmatprep.subr.mxu0 0.0
        %1082 = vmatpush1.msra.mxu0 0.0
        %1083 = vmatprep.subr.mxu0 0.0
        %1084 = vmatpush1.msra.mxu0 0.0
        %1085 = vmatprep.subr.mxu0 0.0
        %1086 = vmatpush1.msra.mxu0 0.0
        %1087 = vmatprep.subr.mxu0 0.0
        %1088 = vmatpush1.msra.mxu0 0.0
        %1089 = vmatprep.subr.mxu0 0.0
        %1090 = vmatpush1.msra.mxu0 0.0
        %1091 = vmatprep.subr.mxu0 0.0
        %1092 = vmatpush1.msra.mxu0 0.0
        %1093 = vmatprep.subr.mxu0 0.0
        %1094 = vmatpush1.msra.mxu0 0.0
        %1095 = vmatprep.subr.mxu0 0.0
        %1096 = vmatpush1.msra.mxu0 0.0
        %1097 = vmatprep.subr.mxu0 0.0
        %1098 = vmatpush1.msra.mxu0 0.0
        %1099 = vmatprep.subr.mxu0 0.0
        %1100 = vmatpush1.msra.mxu0 0.0
        %1101 = vmatprep.subr.mxu0 0.0
        %1102 = vmatpush1.msra.mxu0 0.0
        %1103 = vmatprep.subr.mxu0 0.0
        %1104 = vmatpush1.msra.mxu0 0.0
        %1105 = vmatprep.subr.mxu0 0.0
        %1106 = vmatpush1.msra.mxu0 0.0
        %1107 = vmatprep.subr.mxu0 0.0
        %1108 = vmatpush1.msra.mxu0 0.0
        %1109 = vmatprep.subr.mxu0 0.0
        %1110 = vmatpush1.msra.mxu0 0.0
        %1111 = vmatprep.subr.mxu0 0.0
        %1112 = vmatpush1.msra.mxu0 0.0
        %1113 = vmatprep.subr.mxu0 0.0
        %1114 = vmatpush1.msra.mxu0 0.0
        %1115 = vmatprep.subr.mxu0 0.0
        %1116 = vmatpush1.msra.mxu0 0.0
        %1117 = vmatprep.subr.mxu0 0.0
        %1118 = vmatpush1.msra.mxu0 0.0
        %1119 = vmatprep.mubr.f32.mxu0 0.0
        %1120 = vmatmul.mubr.f32.gmra.mrb[0].mxu0 %v1053
        %v1121 = vpop.f32.mrb[0].mxu0
        %v1122 = vadd.f32 0.0, %v1121
        %v1123 = vpop.f32.mrb[0].mxu0
        %1124 = vdwg.mxu0
        %1125 = vrot.lane.b32.xlu0 %v863, 64
        %v1126 = vpop.permute.xlu0 %1125
        %v1129 = vsel %vm869, %v1046, 0
        %1131 = vmatprep.subr.mxu0 0.0
        %1132 = vmatpush1.msra.mxu0 %v1126
        %1133 = vmatprep.subr.mxu0 0.0
        %1134 = vmatpush1.msra.mxu0 0.0
        %1135 = vmatprep.subr.mxu0 0.0
        %1136 = vmatpush1.msra.mxu0 0.0
        %1137 = vmatprep.subr.mxu0 0.0
        %1138 = vmatpush1.msra.mxu0 0.0
        %1139 = vmatprep.subr.mxu0 0.0
        %1140 = vmatpush1.msra.mxu0 0.0
        %1141 = vmatprep.subr.mxu0 0.0
        %1142 = vmatpush1.msra.mxu0 0.0
        %1143 = vmatprep.subr.mxu0 0.0
        %1144 = vmatpush1.msra.mxu0 0.0
        %1145 = vmatprep.subr.mxu0 0.0
        %1146 = vmatpush1.msra.mxu0 0.0
        %1147 = vmatprep.subr.mxu0 0.0
        %1148 = vmatpush1.msra.mxu0 0.0
        %1149 = vmatprep.subr.mxu0 0.0
        %1150 = vmatpush1.msra.mxu0 0.0
        %1151 = vmatprep.subr.mxu0 0.0
        %1152 = vmatpush1.msra.mxu0 0.0
        %1153 = vmatprep.subr.mxu0 0.0
        %1154 = vmatpush1.msra.mxu0 0.0
        %1155 = vmatprep.subr.mxu0 0.0
        %1156 = vmatpush1.msra.mxu0 0.0
        %1157 = vmatprep.subr.mxu0 0.0
        %1158 = vmatpush1.msra.mxu0 0.0
        %1159 = vmatprep.subr.mxu0 0.0
        %1160 = vmatpush1.msra.mxu0 0.0
        %1161 = vmatprep.subr.mxu0 0.0
        %1162 = vmatpush1.msra.mxu0 0.0
        %1163 = vmatprep.subr.mxu0 0.0
        %1164 = vmatpush1.msra.mxu0 0.0
        %1165 = vmatprep.subr.mxu0 0.0
        %1166 = vmatpush1.msra.mxu0 0.0
        %1167 = vmatprep.subr.mxu0 0.0
        %1168 = vmatpush1.msra.mxu0 0.0
        %1169 = vmatprep.subr.mxu0 0.0
        %1170 = vmatpush1.msra.mxu0 0.0
        %1171 = vmatprep.subr.mxu0 0.0
        %1172 = vmatpush1.msra.mxu0 0.0
        %1173 = vmatprep.subr.mxu0 0.0
        %1174 = vmatpush1.msra.mxu0 0.0
        %1175 = vmatprep.subr.mxu0 0.0
        %1176 = vmatpush1.msra.mxu0 0.0
        %1177 = vmatprep.subr.mxu0 0.0
        %1178 = vmatpush1.msra.mxu0 0.0
        %1179 = vmatprep.subr.mxu0 0.0
        %1180 = vmatpush1.msra.mxu0 0.0
        %1181 = vmatprep.subr.mxu0 0.0
        %1182 = vmatpush1.msra.mxu0 0.0
        %1183 = vmatprep.subr.mxu0 0.0
        %1184 = vmatpush1.msra.mxu0 0.0
        %1185 = vmatprep.subr.mxu0 0.0
        %1186 = vmatpush1.msra.mxu0 0.0
        %1187 = vmatprep.subr.mxu0 0.0
        %1188 = vmatpush1.msra.mxu0 0.0
        %1189 = vmatprep.subr.mxu0 0.0
        %1190 = vmatpush1.msra.mxu0 0.0
        %1191 = vmatprep.subr.mxu0 0.0
        %1192 = vmatpush1.msra.mxu0 0.0
        %1193 = vmatprep.subr.mxu0 0.0
        %1194 = vmatpush1.msra.mxu0 0.0
        %1195 = vmatprep.mubr.f32.mxu0 0.0
        %1196 = vmatmul.mubr.f32.gmra.mrb[0].mxu0 %v1129
        %v1197 = vpop.f32.mrb[0].mxu0
        %v1198 = vadd.f32 0.0, %v1197
        %v1199 = vpop.f32.mrb[0].mxu0
        %1200 = vdwg.mxu0
        %1201 = vst.msk [vmem:[#allocation3] sm:$0xff] %vm869, %v1122
        %1202 = vst.msk [vmem:[#allocation3 + $0x8] sm:$0xff] %vm869, %v1198
        %1203 = vrot.lane.b32.xlu0 %v858, 120
        %v1204 = vpop.permute.xlu0 %1203
        %1205 = vrot.lane.b32.xlu0 %v858, 88
        %v1206 = vpop.permute.xlu0 %1205
        %v1207 = vsel %vm869, %v1204, 0
        %v1209 = vsel %vm869, %v1206, 0
        %1211 = vmatprep.subr.mxu0 0.0
        %1212 = vmatpush1.xpose.msra.mxu0 %v1209
        %1213 = vmatprep.subr.mxu0 0.0
        %1214 = vmatpush1.xpose.msra.mxu0 0.0
        %1215 = vmatprep.subr.mxu0 0.0
        %1216 = vmatpush1.xpose.msra.mxu0 0.0
        %1217 = vmatprep.subr.mxu0 0.0
        %1218 = vmatpush1.xpose.msra.mxu0 0.0
        %1219 = vmatprep.subr.mxu0 0.0
        %1220 = vmatpush1.xpose.msra.mxu0 0.0
        %1221 = vmatprep.subr.mxu0 0.0
        %1222 = vmatpush1.xpose.msra.mxu0 0.0
        %1223 = vmatprep.subr.mxu0 0.0
        %1224 = vmatpush1.xpose.msra.mxu0 0.0
        %1225 = vmatprep.subr.mxu0 0.0
        %1226 = vmatpush1.xpose.msra.mxu0 0.0
        %1227 = vmatprep.subr.mxu0 0.0
        %1228 = vmatpush1.xpose.msra.mxu0 0.0
        %1229 = vmatprep.subr.mxu0 0.0
        %1230 = vmatpush1.xpose.msra.mxu0 0.0
        %1231 = vmatprep.subr.mxu0 0.0
        %1232 = vmatpush1.xpose.msra.mxu0 0.0
        %1233 = vmatprep.subr.mxu0 0.0
        %1234 = vmatpush1.xpose.msra.mxu0 0.0
        %1235 = vmatprep.subr.mxu0 0.0
        %1236 = vmatpush1.xpose.msra.mxu0 0.0
        %1237 = vmatprep.subr.mxu0 0.0
        %1238 = vmatpush1.xpose.msra.mxu0 0.0
        %1239 = vmatprep.subr.mxu0 0.0
        %1240 = vmatpush1.xpose.msra.mxu0 0.0
        %1241 = vmatprep.subr.mxu0 0.0
        %1242 = vmatpush1.xpose.msra.mxu0 0.0
        %1243 = vmatprep.subr.mxu0 0.0
        %1244 = vmatpush1.xpose.msra.mxu0 0.0
        %1245 = vmatprep.subr.mxu0 0.0
        %1246 = vmatpush1.xpose.msra.mxu0 0.0
        %1247 = vmatprep.subr.mxu0 0.0
        %1248 = vmatpush1.xpose.msra.mxu0 0.0
        %1249 = vmatprep.subr.mxu0 0.0
        %1250 = vmatpush1.xpose.msra.mxu0 0.0
        %1251 = vmatprep.subr.mxu0 0.0
        %1252 = vmatpush1.xpose.msra.mxu0 0.0
        %1253 = vmatprep.subr.mxu0 0.0
        %1254 = vmatpush1.xpose.msra.mxu0 0.0
        %1255 = vmatprep.subr.mxu0 0.0
        %1256 = vmatpush1.xpose.msra.mxu0 0.0
        %1257 = vmatprep.subr.mxu0 0.0
        %1258 = vmatpush1.xpose.msra.mxu0 0.0
        %1259 = vmatprep.subr.mxu0 0.0
        %1260 = vmatpush1.xpose.msra.mxu0 0.0
        %1261 = vmatprep.subr.mxu0 0.0
        %1262 = vmatpush1.xpose.msra.mxu0 0.0
        %1263 = vmatprep.subr.mxu0 0.0
        %1264 = vmatpush1.xpose.msra.mxu0 0.0
        %1265 = vmatprep.subr.mxu0 0.0
        %1266 = vmatpush1.xpose.msra.mxu0 0.0
        %1267 = vmatprep.subr.mxu0 0.0
        %1268 = vmatpush1.xpose.msra.mxu0 0.0
        %1269 = vmatprep.subr.mxu0 0.0
        %1270 = vmatpush1.xpose.msra.mxu0 0.0
        %1271 = vmatprep.subr.mxu0 0.0
        %1272 = vmatpush1.xpose.msra.mxu0 0.0
        %1273 = vmatprep.subr.mxu0 0.0
        %1274 = vmatpush1.xpose.msra.mxu0 0.0
        %1275 = vmatprep.mubr.f32.mxu0 0.0
        %1276 = vmatmul.mubr.f32.gmra.mrb[0].mxu0 %v1207
        %v1277 = vpop.f32.mrb[0].mxu0
        %v1278 = vadd.f32 0.0, %v1277
        %v1279 = vpop.f32.mrb[0].mxu0
        %1280 = vdwg.mxu0
        %1281 = vrot.lane.b32.xlu0 %v863, 120
        %v1282 = vpop.permute.xlu0 %1281
        %1283 = vrot.lane.b32.xlu0 %v863, 88
        %v1284 = vpop.permute.xlu0 %1283
        %v1285 = vsel %vm869, %v1282, 0
        %v1287 = vsel %vm869, %v1284, 0
        %1289 = vmatprep.subr.mxu0 0.0
        %1290 = vmatpush1.xpose.msra.mxu0 %v1287
        %1291 = vmatprep.subr.mxu0 0.0
        %1292 = vmatpush1.xpose.msra.mxu0 0.0
        %1293 = vmatprep.subr.mxu0 0.0
        %1294 = vmatpush1.xpose.msra.mxu0 0.0
        %1295 = vmatprep.subr.mxu0 0.0
        %1296 = vmatpush1.xpose.msra.mxu0 0.0
        %1297 = vmatprep.subr.mxu0 0.0
        %1298 = vmatpush1.xpose.msra.mxu0 0.0
        %1299 = vmatprep.subr.mxu0 0.0
        %1300 = vmatpush1.xpose.msra.mxu0 0.0
        %1301 = vmatprep.subr.mxu0 0.0
        %1302 = vmatpush1.xpose.msra.mxu0 0.0
        %1303 = vmatprep.subr.mxu0 0.0
        %1304 = vmatpush1.xpose.msra.mxu0 0.0
        %1305 = vmatprep.subr.mxu0 0.0
        %1306 = vmatpush1.xpose.msra.mxu0 0.0
        %1307 = vmatprep.subr.mxu0 0.0
        %1308 = vmatpush1.xpose.msra.mxu0 0.0
        %1309 = vmatprep.subr.mxu0 0.0
        %1310 = vmatpush1.xpose.msra.mxu0 0.0
        %1311 = vmatprep.subr.mxu0 0.0
        %1312 = vmatpush1.xpose.msra.mxu0 0.0
        %1313 = vmatprep.subr.mxu0 0.0
        %1314 = vmatpush1.xpose.msra.mxu0 0.0
        %1315 = vmatprep.subr.mxu0 0.0
        %1316 = vmatpush1.xpose.msra.mxu0 0.0
        %1317 = vmatprep.subr.mxu0 0.0
        %1318 = vmatpush1.xpose.msra.mxu0 0.0
        %1319 = vmatprep.subr.mxu0 0.0
        %1320 = vmatpush1.xpose.msra.mxu0 0.0
        %1321 = vmatprep.subr.mxu0 0.0
        %1322 = vmatpush1.xpose.msra.mxu0 0.0
        %1323 = vmatprep.subr.mxu0 0.0
        %1324 = vmatpush1.xpose.msra.mxu0 0.0
        %1325 = vmatprep.subr.mxu0 0.0
        %1326 = vmatpush1.xpose.msra.mxu0 0.0
        %1327 = vmatprep.subr.mxu0 0.0
        %1328 = vmatpush1.xpose.msra.mxu0 0.0
        %1329 = vmatprep.subr.mxu0 0.0
        %1330 = vmatpush1.xpose.msra.mxu0 0.0
        %1331 = vmatprep.subr.mxu0 0.0
        %1332 = vmatpush1.xpose.msra.mxu0 0.0
        %1333 = vmatprep.subr.mxu0 0.0
        %1334 = vmatpush1.xpose.msra.mxu0 0.0
        %1335 = vmatprep.subr.mxu0 0.0
        %1336 = vmatpush1.xpose.msra.mxu0 0.0
        %1337 = vmatprep.subr.mxu0 0.0
        %1338 = vmatpush1.xpose.msra.mxu0 0.0
        %1339 = vmatprep.subr.mxu0 0.0
        %1340 = vmatpush1.xpose.msra.mxu0 0.0
        %1341 = vmatprep.subr.mxu0 0.0
        %1342 = vmatpush1.xpose.msra.mxu0 0.0
        %1343 = vmatprep.subr.mxu0 0.0
        %1344 = vmatpush1.xpose.msra.mxu0 0.0
        %1345 = vmatprep.subr.mxu0 0.0
        %1346 = vmatpush1.xpose.msra.mxu0 0.0
        %1347 = vmatprep.subr.mxu0 0.0
        %1348 = vmatpush1.xpose.msra.mxu0 0.0
        %1349 = vmatprep.subr.mxu0 0.0
        %1350 = vmatpush1.xpose.msra.mxu0 0.0
        %1351 = vmatprep.subr.mxu0 0.0
        %1352 = vmatpush1.xpose.msra.mxu0 0.0
        %1353 = vmatprep.mubr.f32.mxu0 0.0
        %1354 = vmatmul.mubr.f32.gmra.mrb[0].mxu0 %v1285
        %v1355 = vpop.f32.mrb[0].mxu0
        %v1356 = vadd.f32 0.0, %v1355
        %v1357 = vpop.f32.mrb[0].mxu0
        %1358 = vdwg.mxu0
        %v1359 = vmul.f32 %v1278, 0.35355338
        %v1360 = vmul.f32 %v1356, 0.35355338
        %v1361 = vsel %vm771, -1e+09, %v1359
        %v1362 = vsel %vm772, -1e+09, %v1360
        %v1363 = vsel %vm869, %v1361, -inf
        %1364 = vmax.xlane.f32.xlu0 %v1363
        %v1365 = vpop.xlane.xlu0 %1364
        %v1366 = vsel %vm869, %v1362, -inf
        %1367 = vmax.xlane.f32.xlu0 %v1366
        %v1368 = vpop.xlane.xlu0 %1367
        %v1369 = vsub.f32 %v1361, %v1365
        %v1370 = vsub.f32 %v1362, %v1368
        %v1371 = vmul.f32 %v1369, 1.442695
        %v1372 = vpow.pop %v1371
        %v1373 = vmul.f32 %v1370, 1.442695
        %v1374 = vpow.pop %v1373
        %v1375 = vsel %vm869, %v1372, 0.0
        %1376 = vadd.xlane.f32.xlu0 %v1375
        %v1377 = vpop.xlane.xlu0 %1376
        %v1378 = vsel %vm869, %v1374, 0.0
        %1379 = vadd.xlane.f32.xlu0 %v1378
        %v1380 = vpop.xlane.xlu0 %1379
        %v1381 = vrcp.pop %v1377
        %v1382 = vrcp.pop %v1380
        %v1383 = vmul.f32 %v1372, %v1381
        %v1384 = vmul.f32 %v1374, %v1382
        %s1385 = scalar_lea.vmem %s675, 16 [#allocation8]
        %1386 = vst.msk [vmem:[%s1385] sm:$0xff] %vm869, %v1383
        %1387 = vst.msk [vmem:[%s1385 + $0x8] sm:$0xff] %vm869, %v1384
        %1388 = vrot.lane.b32.xlu0 %v858, 56
        %v1389 = vpop.permute.xlu0 %1388
        %v1392 = vsel %vm869, %v1383, 0
        %1394 = vmatprep.subr.mxu0 0.0
        %1395 = vmatpush1.msra.mxu0 %v1389
        %1396 = vmatprep.subr.mxu0 0.0
        %1397 = vmatpush1.msra.mxu0 0.0
        %1398 = vmatprep.subr.mxu0 0.0
        %1399 = vmatpush1.msra.mxu0 0.0
        %1400 = vmatprep.subr.mxu0 0.0
        %1401 = vmatpush1.msra.mxu0 0.0
        %1402 = vmatprep.subr.mxu0 0.0
        %1403 = vmatpush1.msra.mxu0 0.0
        %1404 = vmatprep.subr.mxu0 0.0
        %1405 = vmatpush1.msra.mxu0 0.0
        %1406 = vmatprep.subr.mxu0 0.0
        %1407 = vmatpush1.msra.mxu0 0.0
        %1408 = vmatprep.subr.mxu0 0.0
        %1409 = vmatpush1.msra.mxu0 0.0
        %1410 = vmatprep.subr.mxu0 0.0
        %1411 = vmatpush1.msra.mxu0 0.0
        %1412 = vmatprep.subr.mxu0 0.0
        %1413 = vmatpush1.msra.mxu0 0.0
        %1414 = vmatprep.subr.mxu0 0.0
        %1415 = vmatpush1.msra.mxu0 0.0
        %1416 = vmatprep.subr.mxu0 0.0
        %1417 = vmatpush1.msra.mxu0 0.0
        %1418 = vmatprep.subr.mxu0 0.0
        %1419 = vmatpush1.msra.mxu0 0.0
        %1420 = vmatprep.subr.mxu0 0.0
        %1421 = vmatpush1.msra.mxu0 0.0
        %1422 = vmatprep.subr.mxu0 0.0
        %1423 = vmatpush1.msra.mxu0 0.0
        %1424 = vmatprep.subr.mxu0 0.0
        %1425 = vmatpush1.msra.mxu0 0.0
        %1426 = vmatprep.subr.mxu0 0.0
        %1427 = vmatpush1.msra.mxu0 0.0
        %1428 = vmatprep.subr.mxu0 0.0
        %1429 = vmatpush1.msra.mxu0 0.0
        %1430 = vmatprep.subr.mxu0 0.0
        %1431 = vmatpush1.msra.mxu0 0.0
        %1432 = vmatprep.subr.mxu0 0.0
        %1433 = vmatpush1.msra.mxu0 0.0
        %1434 = vmatprep.subr.mxu0 0.0
        %1435 = vmatpush1.msra.mxu0 0.0
        %1436 = vmatprep.subr.mxu0 0.0
        %1437 = vmatpush1.msra.mxu0 0.0
        %1438 = vmatprep.subr.mxu0 0.0
        %1439 = vmatpush1.msra.mxu0 0.0
        %1440 = vmatprep.subr.mxu0 0.0
        %1441 = vmatpush1.msra.mxu0 0.0
        %1442 = vmatprep.subr.mxu0 0.0
        %1443 = vmatpush1.msra.mxu0 0.0
        %1444 = vmatprep.subr.mxu0 0.0
        %1445 = vmatpush1.msra.mxu0 0.0
        %1446 = vmatprep.subr.mxu0 0.0
        %1447 = vmatpush1.msra.mxu0 0.0
        %1448 = vmatprep.subr.mxu0 0.0
        %1449 = vmatpush1.msra.mxu0 0.0
        %1450 = vmatprep.subr.mxu0 0.0
        %1451 = vmatpush1.msra.mxu0 0.0
        %1452 = vmatprep.subr.mxu0 0.0
        %1453 = vmatpush1.msra.mxu0 0.0
        %1454 = vmatprep.subr.mxu0 0.0
        %1455 = vmatpush1.msra.mxu0 0.0
        %1456 = vmatprep.subr.mxu0 0.0
        %1457 = vmatpush1.msra.mxu0 0.0
        %1458 = vmatprep.mubr.f32.mxu0 0.0
        %1459 = vmatmul.mubr.f32.gmra.mrb[0].mxu0 %v1392
        %v1460 = vpop.f32.mrb[0].mxu0
        %v1461 = vadd.f32 0.0, %v1460
        %v1462 = vpop.f32.mrb[0].mxu0
        %1463 = vdwg.mxu0
        %1464 = vrot.lane.b32.xlu0 %v863, 56
        %v1465 = vpop.permute.xlu0 %1464
        %v1468 = vsel %vm869, %v1384, 0
        %1470 = vmatprep.subr.mxu0 0.0
        %1471 = vmatpush1.msra.mxu0 %v1465
        %1472 = vmatprep.subr.mxu0 0.0
        %1473 = vmatpush1.msra.mxu0 0.0
        %1474 = vmatprep.subr.mxu0 0.0
        %1475 = vmatpush1.msra.mxu0 0.0
        %1476 = vmatprep.subr.mxu0 0.0
        %1477 = vmatpush1.msra.mxu0 0.0
        %1478 = vmatprep.subr.mxu0 0.0
        %1479 = vmatpush1.msra.mxu0 0.0
        %1480 = vmatprep.subr.mxu0 0.0
        %1481 = vmatpush1.msra.mxu0 0.0
        %1482 = vmatprep.subr.mxu0 0.0
        %1483 = vmatpush1.msra.mxu0 0.0
        %1484 = vmatprep.subr.mxu0 0.0
        %1485 = vmatpush1.msra.mxu0 0.0
        %1486 = vmatprep.subr.mxu0 0.0
        %1487 = vmatpush1.msra.mxu0 0.0
        %1488 = vmatprep.subr.mxu0 0.0
        %1489 = vmatpush1.msra.mxu0 0.0
        %1490 = vmatprep.subr.mxu0 0.0
        %1491 = vmatpush1.msra.mxu0 0.0
        %1492 = vmatprep.subr.mxu0 0.0
        %1493 = vmatpush1.msra.mxu0 0.0
        %1494 = vmatprep.subr.mxu0 0.0
        %1495 = vmatpush1.msra.mxu0 0.0
        %1496 = vmatprep.subr.mxu0 0.0
        %1497 = vmatpush1.msra.mxu0 0.0
        %1498 = vmatprep.subr.mxu0 0.0
        %1499 = vmatpush1.msra.mxu0 0.0
        %1500 = vmatprep.subr.mxu0 0.0
        %1501 = vmatpush1.msra.mxu0 0.0
        %1502 = vmatprep.subr.mxu0 0.0
        %1503 = vmatpush1.msra.mxu0 0.0
        %1504 = vmatprep.subr.mxu0 0.0
        %1505 = vmatpush1.msra.mxu0 0.0
        %1506 = vmatprep.subr.mxu0 0.0
        %1507 = vmatpush1.msra.mxu0 0.0
        %1508 = vmatprep.subr.mxu0 0.0
        %1509 = vmatpush1.msra.mxu0 0.0
        %1510 = vmatprep.subr.mxu0 0.0
        %1511 = vmatpush1.msra.mxu0 0.0
        %1512 = vmatprep.subr.mxu0 0.0
        %1513 = vmatpush1.msra.mxu0 0.0
        %1514 = vmatprep.subr.mxu0 0.0
        %1515 = vmatpush1.msra.mxu0 0.0
        %1516 = vmatprep.subr.mxu0 0.0
        %1517 = vmatpush1.msra.mxu0 0.0
        %1518 = vmatprep.subr.mxu0 0.0
        %1519 = vmatpush1.msra.mxu0 0.0
        %1520 = vmatprep.subr.mxu0 0.0
        %1521 = vmatpush1.msra.mxu0 0.0
        %1522 = vmatprep.subr.mxu0 0.0
        %1523 = vmatpush1.msra.mxu0 0.0
        %1524 = vmatprep.subr.mxu0 0.0
        %1525 = vmatpush1.msra.mxu0 0.0
        %1526 = vmatprep.subr.mxu0 0.0
        %1527 = vmatpush1.msra.mxu0 0.0
        %1528 = vmatprep.subr.mxu0 0.0
        %1529 = vmatpush1.msra.mxu0 0.0
        %1530 = vmatprep.subr.mxu0 0.0
        %1531 = vmatpush1.msra.mxu0 0.0
        %1532 = vmatprep.subr.mxu0 0.0
        %1533 = vmatpush1.msra.mxu0 0.0
        %1534 = vmatprep.mubr.f32.mxu0 0.0
        %1535 = vmatmul.mubr.f32.gmra.mrb[0].mxu0 %v1468
        %v1536 = vpop.f32.mrb[0].mxu0
        %v1537 = vadd.f32 0.0, %v1536
        %v1538 = vpop.f32.mrb[0].mxu0
        %1539 = vdwg.mxu0
        %1542 = vrot.lane.b32.xlu0 %v1461, 8
        %v1543 = vpop.permute.xlu0 %1542
        %1544 = vrot.lane.b32.xlu0 %v1537, 8
        %v1545 = vpop.permute.xlu0 %1544
        %vm1548 = vcmask 130112
        %1549 = vst.msk [vmem:[#allocation3] sm:$0xff] %vm1548, %v1543
        %1550 = vst.msk [vmem:[#allocation3 + $0x8] sm:$0xff] %vm1548, %v1545
        %1551 = vrot.lane.b32.xlu0 %v858, 112
        %v1552 = vpop.permute.xlu0 %1551
        %1553 = vrot.lane.b32.xlu0 %v858, 80
        %v1554 = vpop.permute.xlu0 %1553
        %v1555 = vsel %vm869, %v1552, 0
        %v1557 = vsel %vm869, %v1554, 0
        %1559 = vmatprep.subr.mxu0 0.0
        %1560 = vmatpush1.xpose.msra.mxu0 %v1557
        %1561 = vmatprep.subr.mxu0 0.0
        %1562 = vmatpush1.xpose.msra.mxu0 0.0
        %1563 = vmatprep.subr.mxu0 0.0
        %1564 = vmatpush1.xpose.msra.mxu0 0.0
        %1565 = vmatprep.subr.mxu0 0.0
        %1566 = vmatpush1.xpose.msra.mxu0 0.0
        %1567 = vmatprep.subr.mxu0 0.0
        %1568 = vmatpush1.xpose.msra.mxu0 0.0
        %1569 = vmatprep.subr.mxu0 0.0
        %1570 = vmatpush1.xpose.msra.mxu0 0.0
        %1571 = vmatprep.subr.mxu0 0.0
        %1572 = vmatpush1.xpose.msra.mxu0 0.0
        %1573 = vmatprep.subr.mxu0 0.0
        %1574 = vmatpush1.xpose.msra.mxu0 0.0
        %1575 = vmatprep.subr.mxu0 0.0
        %1576 = vmatpush1.xpose.msra.mxu0 0.0
        %1577 = vmatprep.subr.mxu0 0.0
        %1578 = vmatpush1.xpose.msra.mxu0 0.0
        %1579 = vmatprep.subr.mxu0 0.0
        %1580 = vmatpush1.xpose.msra.mxu0 0.0
        %1581 = vmatprep.subr.mxu0 0.0
        %1582 = vmatpush1.xpose.msra.mxu0 0.0
        %1583 = vmatprep.subr.mxu0 0.0
        %1584 = vmatpush1.xpose.msra.mxu0 0.0
        %1585 = vmatprep.subr.mxu0 0.0
        %1586 = vmatpush1.xpose.msra.mxu0 0.0
        %1587 = vmatprep.subr.mxu0 0.0
        %1588 = vmatpush1.xpose.msra.mxu0 0.0
        %1589 = vmatprep.subr.mxu0 0.0
        %1590 = vmatpush1.xpose.msra.mxu0 0.0
        %1591 = vmatprep.subr.mxu0 0.0
        %1592 = vmatpush1.xpose.msra.mxu0 0.0
        %1593 = vmatprep.subr.mxu0 0.0
        %1594 = vmatpush1.xpose.msra.mxu0 0.0
        %1595 = vmatprep.subr.mxu0 0.0
        %1596 = vmatpush1.xpose.msra.mxu0 0.0
        %1597 = vmatprep.subr.mxu0 0.0
        %1598 = vmatpush1.xpose.msra.mxu0 0.0
        %1599 = vmatprep.subr.mxu0 0.0
        %1600 = vmatpush1.xpose.msra.mxu0 0.0
        %1601 = vmatprep.subr.mxu0 0.0
        %1602 = vmatpush1.xpose.msra.mxu0 0.0
        %1603 = vmatprep.subr.mxu0 0.0
        %1604 = vmatpush1.xpose.msra.mxu0 0.0
        %1605 = vmatprep.subr.mxu0 0.0
        %1606 = vmatpush1.xpose.msra.mxu0 0.0
        %1607 = vmatprep.subr.mxu0 0.0
        %1608 = vmatpush1.xpose.msra.mxu0 0.0
        %1609 = vmatprep.subr.mxu0 0.0
        %1610 = vmatpush1.xpose.msra.mxu0 0.0
        %1611 = vmatprep.subr.mxu0 0.0
        %1612 = vmatpush1.xpose.msra.mxu0 0.0
        %1613 = vmatprep.subr.mxu0 0.0
        %1614 = vmatpush1.xpose.msra.mxu0 0.0
        %1615 = vmatprep.subr.mxu0 0.0
        %1616 = vmatpush1.xpose.msra.mxu0 0.0
        %1617 = vmatprep.subr.mxu0 0.0
        %1618 = vmatpush1.xpose.msra.mxu0 0.0
        %1619 = vmatprep.subr.mxu0 0.0
        %1620 = vmatpush1.xpose.msra.mxu0 0.0
        %1621 = vmatprep.subr.mxu0 0.0
        %1622 = vmatpush1.xpose.msra.mxu0 0.0
        %1623 = vmatprep.mubr.f32.mxu0 0.0
        %1624 = vmatmul.mubr.f32.gmra.mrb[0].mxu0 %v1555
        %v1625 = vpop.f32.mrb[0].mxu0
        %v1626 = vadd.f32 0.0, %v1625
        %v1627 = vpop.f32.mrb[0].mxu0
        %1628 = vdwg.mxu0
        %1629 = vrot.lane.b32.xlu0 %v863, 112
        %v1630 = vpop.permute.xlu0 %1629
        %1631 = vrot.lane.b32.xlu0 %v863, 80
        %v1632 = vpop.permute.xlu0 %1631
        %v1633 = vsel %vm869, %v1630, 0
        %v1635 = vsel %vm869, %v1632, 0
        %1637 = vmatprep.subr.mxu0 0.0
        %1638 = vmatpush1.xpose.msra.mxu0 %v1635
        %1639 = vmatprep.subr.mxu0 0.0
        %1640 = vmatpush1.xpose.msra.mxu0 0.0
        %1641 = vmatprep.subr.mxu0 0.0
        %1642 = vmatpush1.xpose.msra.mxu0 0.0
        %1643 = vmatprep.subr.mxu0 0.0
        %1644 = vmatpush1.xpose.msra.mxu0 0.0
        %1645 = vmatprep.subr.mxu0 0.0
        %1646 = vmatpush1.xpose.msra.mxu0 0.0
        %1647 = vmatprep.subr.mxu0 0.0
        %1648 = vmatpush1.xpose.msra.mxu0 0.0
        %1649 = vmatprep.subr.mxu0 0.0
        %1650 = vmatpush1.xpose.msra.mxu0 0.0
        %1651 = vmatprep.subr.mxu0 0.0
        %1652 = vmatpush1.xpose.msra.mxu0 0.0
        %1653 = vmatprep.subr.mxu0 0.0
        %1654 = vmatpush1.xpose.msra.mxu0 0.0
        %1655 = vmatprep.subr.mxu0 0.0
        %1656 = vmatpush1.xpose.msra.mxu0 0.0
        %1657 = vmatprep.subr.mxu0 0.0
        %1658 = vmatpush1.xpose.msra.mxu0 0.0
        %1659 = vmatprep.subr.mxu0 0.0
        %1660 = vmatpush1.xpose.msra.mxu0 0.0
        %1661 = vmatprep.subr.mxu0 0.0
        %1662 = vmatpush1.xpose.msra.mxu0 0.0
        %1663 = vmatprep.subr.mxu0 0.0
        %1664 = vmatpush1.xpose.msra.mxu0 0.0
        %1665 = vmatprep.subr.mxu0 0.0
        %1666 = vmatpush1.xpose.msra.mxu0 0.0
        %1667 = vmatprep.subr.mxu0 0.0
        %1668 = vmatpush1.xpose.msra.mxu0 0.0
        %1669 = vmatprep.subr.mxu0 0.0
        %1670 = vmatpush1.xpose.msra.mxu0 0.0
        %1671 = vmatprep.subr.mxu0 0.0
        %1672 = vmatpush1.xpose.msra.mxu0 0.0
        %1673 = vmatprep.subr.mxu0 0.0
        %1674 = vmatpush1.xpose.msra.mxu0 0.0
        %1675 = vmatprep.subr.mxu0 0.0
        %1676 = vmatpush1.xpose.msra.mxu0 0.0
        %1677 = vmatprep.subr.mxu0 0.0
        %1678 = vmatpush1.xpose.msra.mxu0 0.0
        %1679 = vmatprep.subr.mxu0 0.0
        %1680 = vmatpush1.xpose.msra.mxu0 0.0
        %1681 = vmatprep.subr.mxu0 0.0
        %1682 = vmatpush1.xpose.msra.mxu0 0.0
        %1683 = vmatprep.subr.mxu0 0.0
        %1684 = vmatpush1.xpose.msra.mxu0 0.0
        %1685 = vmatprep.subr.mxu0 0.0
        %1686 = vmatpush1.xpose.msra.mxu0 0.0
        %1687 = vmatprep.subr.mxu0 0.0
        %1688 = vmatpush1.xpose.msra.mxu0 0.0
        %1689 = vmatprep.subr.mxu0 0.0
        %1690 = vmatpush1.xpose.msra.mxu0 0.0
        %1691 = vmatprep.subr.mxu0 0.0
        %1692 = vmatpush1.xpose.msra.mxu0 0.0
        %1693 = vmatprep.subr.mxu0 0.0
        %1694 = vmatpush1.xpose.msra.mxu0 0.0
        %1695 = vmatprep.subr.mxu0 0.0
        %1696 = vmatpush1.xpose.msra.mxu0 0.0
        %1697 = vmatprep.subr.mxu0 0.0
        %1698 = vmatpush1.xpose.msra.mxu0 0.0
        %1699 = vmatprep.subr.mxu0 0.0
        %1700 = vmatpush1.xpose.msra.mxu0 0.0
        %1701 = vmatprep.mubr.f32.mxu0 0.0
        %1702 = vmatmul.mubr.f32.gmra.mrb[0].mxu0 %v1633
        %v1703 = vpop.f32.mrb[0].mxu0
        %v1704 = vadd.f32 0.0, %v1703
        %v1705 = vpop.f32.mrb[0].mxu0
        %1706 = vdwg.mxu0
        %v1707 = vmul.f32 %v1626, 0.35355338
        %v1708 = vmul.f32 %v1704, 0.35355338
        %v1709 = vsel %vm771, -1e+09, %v1707
        %v1710 = vsel %vm772, -1e+09, %v1708
        %v1711 = vsel %vm869, %v1709, -inf
        %1712 = vmax.xlane.f32.xlu0 %v1711
        %v1713 = vpop.xlane.xlu0 %1712
        %v1714 = vsel %vm869, %v1710, -inf
        %1715 = vmax.xlane.f32.xlu0 %v1714
        %v1716 = vpop.xlane.xlu0 %1715
        %v1717 = vsub.f32 %v1709, %v1713
        %v1718 = vsub.f32 %v1710, %v1716
        %v1719 = vmul.f32 %v1717, 1.442695
        %v1720 = vpow.pop %v1719
        %v1721 = vmul.f32 %v1718, 1.442695
        %v1722 = vpow.pop %v1721
        %v1723 = vsel %vm869, %v1720, 0.0
        %1724 = vadd.xlane.f32.xlu0 %v1723
        %v1725 = vpop.xlane.xlu0 %1724
        %v1726 = vsel %vm869, %v1722, 0.0
        %1727 = vadd.xlane.f32.xlu0 %v1726
        %v1728 = vpop.xlane.xlu0 %1727
        %v1729 = vrcp.pop %v1725
        %v1730 = vrcp.pop %v1728
        %v1731 = vmul.f32 %v1720, %v1729
        %v1732 = vmul.f32 %v1722, %v1730
        %s1733 = scalar_lea.vmem %s675, 32 [#allocation8]
        %1734 = vst.msk [vmem:[%s1733] sm:$0xff] %vm869, %v1731
        %1735 = vst.msk [vmem:[%s1733 + $0x8] sm:$0xff] %vm869, %v1732
        %1736 = vrot.lane.b32.xlu0 %v858, 48
        %v1737 = vpop.permute.xlu0 %1736
        %v1740 = vsel %vm869, %v1731, 0
        %1742 = vmatprep.subr.mxu0 0.0
        %1743 = vmatpush1.msra.mxu0 %v1737
        %1744 = vmatprep.subr.mxu0 0.0
        %1745 = vmatpush1.msra.mxu0 0.0
        %1746 = vmatprep.subr.mxu0 0.0
        %1747 = vmatpush1.msra.mxu0 0.0
        %1748 = vmatprep.subr.mxu0 0.0
        %1749 = vmatpush1.msra.mxu0 0.0
        %1750 = vmatprep.subr.mxu0 0.0
        %1751 = vmatpush1.msra.mxu0 0.0
        %1752 = vmatprep.subr.mxu0 0.0
        %1753 = vmatpush1.msra.mxu0 0.0
        %1754 = vmatprep.subr.mxu0 0.0
        %1755 = vmatpush1.msra.mxu0 0.0
        %1756 = vmatprep.subr.mxu0 0.0
        %1757 = vmatpush1.msra.mxu0 0.0
        %1758 = vmatprep.subr.mxu0 0.0
        %1759 = vmatpush1.msra.mxu0 0.0
        %1760 = vmatprep.subr.mxu0 0.0
        %1761 = vmatpush1.msra.mxu0 0.0
        %1762 = vmatprep.subr.mxu0 0.0
        %1763 = vmatpush1.msra.mxu0 0.0
        %1764 = vmatprep.subr.mxu0 0.0
        %1765 = vmatpush1.msra.mxu0 0.0
        %1766 = vmatprep.subr.mxu0 0.0
        %1767 = vmatpush1.msra.mxu0 0.0
        %1768 = vmatprep.subr.mxu0 0.0
        %1769 = vmatpush1.msra.mxu0 0.0
        %1770 = vmatprep.subr.mxu0 0.0
        %1771 = vmatpush1.msra.mxu0 0.0
        %1772 = vmatprep.subr.mxu0 0.0
        %1773 = vmatpush1.msra.mxu0 0.0
        %1774 = vmatprep.subr.mxu0 0.0
        %1775 = vmatpush1.msra.mxu0 0.0
        %1776 = vmatprep.subr.mxu0 0.0
        %1777 = vmatpush1.msra.mxu0 0.0
        %1778 = vmatprep.subr.mxu0 0.0
        %1779 = vmatpush1.msra.mxu0 0.0
        %1780 = vmatprep.subr.mxu0 0.0
        %1781 = vmatpush1.msra.mxu0 0.0
        %1782 = vmatprep.subr.mxu0 0.0
        %1783 = vmatpush1.msra.mxu0 0.0
        %1784 = vmatprep.subr.mxu0 0.0
        %1785 = vmatpush1.msra.mxu0 0.0
        %1786 = vmatprep.subr.mxu0 0.0
        %1787 = vmatpush1.msra.mxu0 0.0
        %1788 = vmatprep.subr.mxu0 0.0
        %1789 = vmatpush1.msra.mxu0 0.0
        %1790 = vmatprep.subr.mxu0 0.0
        %1791 = vmatpush1.msra.mxu0 0.0
        %1792 = vmatprep.subr.mxu0 0.0
        %1793 = vmatpush1.msra.mxu0 0.0
        %1794 = vmatprep.subr.mxu0 0.0
        %1795 = vmatpush1.msra.mxu0 0.0
        %1796 = vmatprep.subr.mxu0 0.0
        %1797 = vmatpush1.msra.mxu0 0.0
        %1798 = vmatprep.subr.mxu0 0.0
        %1799 = vmatpush1.msra.mxu0 0.0
        %1800 = vmatprep.subr.mxu0 0.0
        %1801 = vmatpush1.msra.mxu0 0.0
        %1802 = vmatprep.subr.mxu0 0.0
        %1803 = vmatpush1.msra.mxu0 0.0
        %1804 = vmatprep.subr.mxu0 0.0
        %1805 = vmatpush1.msra.mxu0 0.0
        %1806 = vmatprep.mubr.f32.mxu0 0.0
        %1807 = vmatmul.mubr.f32.gmra.mrb[0].mxu0 %v1740
        %v1808 = vpop.f32.mrb[0].mxu0
        %v1809 = vadd.f32 0.0, %v1808
        %v1810 = vpop.f32.mrb[0].mxu0
        %1811 = vdwg.mxu0
        %1812 = vrot.lane.b32.xlu0 %v863, 48
        %v1813 = vpop.permute.xlu0 %1812
        %v1816 = vsel %vm869, %v1732, 0
        %1818 = vmatprep.subr.mxu0 0.0
        %1819 = vmatpush1.msra.mxu0 %v1813
        %1820 = vmatprep.subr.mxu0 0.0
        %1821 = vmatpush1.msra.mxu0 0.0
        %1822 = vmatprep.subr.mxu0 0.0
        %1823 = vmatpush1.msra.mxu0 0.0
        %1824 = vmatprep.subr.mxu0 0.0
        %1825 = vmatpush1.msra.mxu0 0.0
        %1826 = vmatprep.subr.mxu0 0.0
        %1827 = vmatpush1.msra.mxu0 0.0
        %1828 = vmatprep.subr.mxu0 0.0
        %1829 = vmatpush1.msra.mxu0 0.0
        %1830 = vmatprep.subr.mxu0 0.0
        %1831 = vmatpush1.msra.mxu0 0.0
        %1832 = vmatprep.subr.mxu0 0.0
        %1833 = vmatpush1.msra.mxu0 0.0
        %1834 = vmatprep.subr.mxu0 0.0
        %1835 = vmatpush1.msra.mxu0 0.0
        %1836 = vmatprep.subr.mxu0 0.0
        %1837 = vmatpush1.msra.mxu0 0.0
        %1838 = vmatprep.subr.mxu0 0.0
        %1839 = vmatpush1.msra.mxu0 0.0
        %1840 = vmatprep.subr.mxu0 0.0
        %1841 = vmatpush1.msra.mxu0 0.0
        %1842 = vmatprep.subr.mxu0 0.0
        %1843 = vmatpush1.msra.mxu0 0.0
        %1844 = vmatprep.subr.mxu0 0.0
        %1845 = vmatpush1.msra.mxu0 0.0
        %1846 = vmatprep.subr.mxu0 0.0
        %1847 = vmatpush1.msra.mxu0 0.0
        %1848 = vmatprep.subr.mxu0 0.0
        %1849 = vmatpush1.msra.mxu0 0.0
        %1850 = vmatprep.subr.mxu0 0.0
        %1851 = vmatpush1.msra.mxu0 0.0
        %1852 = vmatprep.subr.mxu0 0.0
        %1853 = vmatpush1.msra.mxu0 0.0
        %1854 = vmatprep.subr.mxu0 0.0
        %1855 = vmatpush1.msra.mxu0 0.0
        %1856 = vmatprep.subr.mxu0 0.0
        %1857 = vmatpush1.msra.mxu0 0.0
        %1858 = vmatprep.subr.mxu0 0.0
        %1859 = vmatpush1.msra.mxu0 0.0
        %1860 = vmatprep.subr.mxu0 0.0
        %1861 = vmatpush1.msra.mxu0 0.0
        %1862 = vmatprep.subr.mxu0 0.0
        %1863 = vmatpush1.msra.mxu0 0.0
        %1864 = vmatprep.subr.mxu0 0.0
        %1865 = vmatpush1.msra.mxu0 0.0
        %1866 = vmatprep.subr.mxu0 0.0
        %1867 = vmatpush1.msra.mxu0 0.0
        %1868 = vmatprep.subr.mxu0 0.0
        %1869 = vmatpush1.msra.mxu0 0.0
        %1870 = vmatprep.subr.mxu0 0.0
        %1871 = vmatpush1.msra.mxu0 0.0
        %1872 = vmatprep.subr.mxu0 0.0
        %1873 = vmatpush1.msra.mxu0 0.0
        %1874 = vmatprep.subr.mxu0 0.0
        %1875 = vmatpush1.msra.mxu0 0.0
        %1876 = vmatprep.subr.mxu0 0.0
        %1877 = vmatpush1.msra.mxu0 0.0
        %1878 = vmatprep.subr.mxu0 0.0
        %1879 = vmatpush1.msra.mxu0 0.0
        %1880 = vmatprep.subr.mxu0 0.0
        %1881 = vmatpush1.msra.mxu0 0.0
        %1882 = vmatprep.mubr.f32.mxu0 0.0
        %1883 = vmatmul.mubr.f32.gmra.mrb[0].mxu0 %v1816
        %v1884 = vpop.f32.mrb[0].mxu0
        %v1885 = vadd.f32 0.0, %v1884
        %v1886 = vpop.f32.mrb[0].mxu0
        %1887 = vdwg.mxu0
        %1890 = vrot.lane.b32.xlu0 %v1809, 16
        %v1891 = vpop.permute.xlu0 %1890
        %1892 = vrot.lane.b32.xlu0 %v1885, 16
        %v1893 = vpop.permute.xlu0 %1892
        %vm1896 = vcmask 195712
        %1897 = vst.msk [vmem:[#allocation3] sm:$0xff] %vm1896, %v1891
        %1898 = vst.msk [vmem:[#allocation3 + $0x8] sm:$0xff] %vm1896, %v1893
        %1899 = vrot.lane.b32.xlu0 %v858, 104
        %v1900 = vpop.permute.xlu0 %1899
        %1901 = vrot.lane.b32.xlu0 %v858, 72
        %v1902 = vpop.permute.xlu0 %1901
        %v1903 = vsel %vm869, %v1900, 0
        %v1905 = vsel %vm869, %v1902, 0
        %1907 = vmatprep.subr.mxu0 0.0
        %1908 = vmatpush1.xpose.msra.mxu0 %v1905
        %1909 = vmatprep.subr.mxu0 0.0
        %1910 = vmatpush1.xpose.msra.mxu0 0.0
        %1911 = vmatprep.subr.mxu0 0.0
        %1912 = vmatpush1.xpose.msra.mxu0 0.0
        %1913 = vmatprep.subr.mxu0 0.0
        %1914 = vmatpush1.xpose.msra.mxu0 0.0
        %1915 = vmatprep.subr.mxu0 0.0
        %1916 = vmatpush1.xpose.msra.mxu0 0.0
        %1917 = vmatprep.subr.mxu0 0.0
        %1918 = vmatpush1.xpose.msra.mxu0 0.0
        %1919 = vmatprep.subr.mxu0 0.0
        %1920 = vmatpush1.xpose.msra.mxu0 0.0
        %1921 = vmatprep.subr.mxu0 0.0
        %1922 = vmatpush1.xpose.msra.mxu0 0.0
        %1923 = vmatprep.subr.mxu0 0.0
        %1924 = vmatpush1.xpose.msra.mxu0 0.0
        %1925 = vmatprep.subr.mxu0 0.0
        %1926 = vmatpush1.xpose.msra.mxu0 0.0
        %1927 = vmatprep.subr.mxu0 0.0
        %1928 = vmatpush1.xpose.msra.mxu0 0.0
        %1929 = vmatprep.subr.mxu0 0.0
        %1930 = vmatpush1.xpose.msra.mxu0 0.0
        %1931 = vmatprep.subr.mxu0 0.0
        %1932 = vmatpush1.xpose.msra.mxu0 0.0
        %1933 = vmatprep.subr.mxu0 0.0
        %1934 = vmatpush1.xpose.msra.mxu0 0.0
        %1935 = vmatprep.subr.mxu0 0.0
        %1936 = vmatpush1.xpose.msra.mxu0 0.0
        %1937 = vmatprep.subr.mxu0 0.0
        %1938 = vmatpush1.xpose.msra.mxu0 0.0
        %1939 = vmatprep.subr.mxu0 0.0
        %1940 = vmatpush1.xpose.msra.mxu0 0.0
        %1941 = vmatprep.subr.mxu0 0.0
        %1942 = vmatpush1.xpose.msra.mxu0 0.0
        %1943 = vmatprep.subr.mxu0 0.0
        %1944 = vmatpush1.xpose.msra.mxu0 0.0
        %1945 = vmatprep.subr.mxu0 0.0
        %1946 = vmatpush1.xpose.msra.mxu0 0.0
        %1947 = vmatprep.subr.mxu0 0.0
        %1948 = vmatpush1.xpose.msra.mxu0 0.0
        %1949 = vmatprep.subr.mxu0 0.0
        %1950 = vmatpush1.xpose.msra.mxu0 0.0
        %1951 = vmatprep.subr.mxu0 0.0
        %1952 = vmatpush1.xpose.msra.mxu0 0.0
        %1953 = vmatprep.subr.mxu0 0.0
        %1954 = vmatpush1.xpose.msra.mxu0 0.0
        %1955 = vmatprep.subr.mxu0 0.0
        %1956 = vmatpush1.xpose.msra.mxu0 0.0
        %1957 = vmatprep.subr.mxu0 0.0
        %1958 = vmatpush1.xpose.msra.mxu0 0.0
        %1959 = vmatprep.subr.mxu0 0.0
        %1960 = vmatpush1.xpose.msra.mxu0 0.0
        %1961 = vmatprep.subr.mxu0 0.0
        %1962 = vmatpush1.xpose.msra.mxu0 0.0
        %1963 = vmatprep.subr.mxu0 0.0
        %1964 = vmatpush1.xpose.msra.mxu0 0.0
        %1965 = vmatprep.subr.mxu0 0.0
        %1966 = vmatpush1.xpose.msra.mxu0 0.0
        %1967 = vmatprep.subr.mxu0 0.0
        %1968 = vmatpush1.xpose.msra.mxu0 0.0
        %1969 = vmatprep.subr.mxu0 0.0
        %1970 = vmatpush1.xpose.msra.mxu0 0.0
        %1971 = vmatprep.mubr.f32.mxu0 0.0
        %1972 = vmatmul.mubr.f32.gmra.mrb[0].mxu0 %v1903
        %v1973 = vpop.f32.mrb[0].mxu0
        %v1974 = vadd.f32 0.0, %v1973
        %v1975 = vpop.f32.mrb[0].mxu0
        %1976 = vdwg.mxu0
        %1977 = vrot.lane.b32.xlu0 %v863, 104
        %v1978 = vpop.permute.xlu0 %1977
        %1979 = vrot.lane.b32.xlu0 %v863, 72
        %v1980 = vpop.permute.xlu0 %1979
        %v1981 = vsel %vm869, %v1978, 0
        %v1983 = vsel %vm869, %v1980, 0
        %1985 = vmatprep.subr.mxu0 0.0
        %1986 = vmatpush1.xpose.msra.mxu0 %v1983
        %1987 = vmatprep.subr.mxu0 0.0
        %1988 = vmatpush1.xpose.msra.mxu0 0.0
        %1989 = vmatprep.subr.mxu0 0.0
        %1990 = vmatpush1.xpose.msra.mxu0 0.0
        %1991 = vmatprep.subr.mxu0 0.0
        %1992 = vmatpush1.xpose.msra.mxu0 0.0
        %1993 = vmatprep.subr.mxu0 0.0
        %1994 = vmatpush1.xpose.msra.mxu0 0.0
        %1995 = vmatprep.subr.mxu0 0.0
        %1996 = vmatpush1.xpose.msra.mxu0 0.0
        %1997 = vmatprep.subr.mxu0 0.0
        %1998 = vmatpush1.xpose.msra.mxu0 0.0
        %1999 = vmatprep.subr.mxu0 0.0
        %2000 = vmatpush1.xpose.msra.mxu0 0.0
        %2001 = vmatprep.subr.mxu0 0.0
        %2002 = vmatpush1.xpose.msra.mxu0 0.0
        %2003 = vmatprep.subr.mxu0 0.0
        %2004 = vmatpush1.xpose.msra.mxu0 0.0
        %2005 = vmatprep.subr.mxu0 0.0
        %2006 = vmatpush1.xpose.msra.mxu0 0.0
        %2007 = vmatprep.subr.mxu0 0.0
        %2008 = vmatpush1.xpose.msra.mxu0 0.0
        %2009 = vmatprep.subr.mxu0 0.0
        %2010 = vmatpush1.xpose.msra.mxu0 0.0
        %2011 = vmatprep.subr.mxu0 0.0
        %2012 = vmatpush1.xpose.msra.mxu0 0.0
        %2013 = vmatprep.subr.mxu0 0.0
        %2014 = vmatpush1.xpose.msra.mxu0 0.0
        %2015 = vmatprep.subr.mxu0 0.0
        %2016 = vmatpush1.xpose.msra.mxu0 0.0
        %2017 = vmatprep.subr.mxu0 0.0
        %2018 = vmatpush1.xpose.msra.mxu0 0.0
        %2019 = vmatprep.subr.mxu0 0.0
        %2020 = vmatpush1.xpose.msra.mxu0 0.0
        %2021 = vmatprep.subr.mxu0 0.0
        %2022 = vmatpush1.xpose.msra.mxu0 0.0
        %2023 = vmatprep.subr.mxu0 0.0
        %2024 = vmatpush1.xpose.msra.mxu0 0.0
        %2025 = vmatprep.subr.mxu0 0.0
        %2026 = vmatpush1.xpose.msra.mxu0 0.0
        %2027 = vmatprep.subr.mxu0 0.0
        %2028 = vmatpush1.xpose.msra.mxu0 0.0
        %2029 = vmatprep.subr.mxu0 0.0
        %2030 = vmatpush1.xpose.msra.mxu0 0.0
        %2031 = vmatprep.subr.mxu0 0.0
        %2032 = vmatpush1.xpose.msra.mxu0 0.0
        %2033 = vmatprep.subr.mxu0 0.0
        %2034 = vmatpush1.xpose.msra.mxu0 0.0
        %2035 = vmatprep.subr.mxu0 0.0
        %2036 = vmatpush1.xpose.msra.mxu0 0.0
        %2037 = vmatprep.subr.mxu0 0.0
        %2038 = vmatpush1.xpose.msra.mxu0 0.0
        %2039 = vmatprep.subr.mxu0 0.0
        %2040 = vmatpush1.xpose.msra.mxu0 0.0
        %2041 = vmatprep.subr.mxu0 0.0
        %2042 = vmatpush1.xpose.msra.mxu0 0.0
        %2043 = vmatprep.subr.mxu0 0.0
        %2044 = vmatpush1.xpose.msra.mxu0 0.0
        %2045 = vmatprep.subr.mxu0 0.0
        %2046 = vmatpush1.xpose.msra.mxu0 0.0
        %2047 = vmatprep.subr.mxu0 0.0
        %2048 = vmatpush1.xpose.msra.mxu0 0.0
        %2049 = vmatprep.mubr.f32.mxu0 0.0
        %2050 = vmatmul.mubr.f32.gmra.mrb[0].mxu0 %v1981
        %v2051 = vpop.f32.mrb[0].mxu0
        %v2052 = vadd.f32 0.0, %v2051
        %v2053 = vpop.f32.mrb[0].mxu0
        %2054 = vdwg.mxu0
        %v2055 = vmul.f32 %v1974, 0.35355338
        %v2056 = vmul.f32 %v2052, 0.35355338
        %v2057 = vsel %vm771, -1e+09, %v2055
        %v2058 = vsel %vm772, -1e+09, %v2056
        %v2059 = vsel %vm869, %v2057, -inf
        %2060 = vmax.xlane.f32.xlu0 %v2059
        %v2061 = vpop.xlane.xlu0 %2060
        %v2062 = vsel %vm869, %v2058, -inf
        %2063 = vmax.xlane.f32.xlu0 %v2062
        %v2064 = vpop.xlane.xlu0 %2063
        %v2065 = vsub.f32 %v2057, %v2061
        %v2066 = vsub.f32 %v2058, %v2064
        %v2067 = vmul.f32 %v2065, 1.442695
        %v2068 = vpow.pop %v2067
        %v2069 = vmul.f32 %v2066, 1.442695
        %v2070 = vpow.pop %v2069
        %v2071 = vsel %vm869, %v2068, 0.0
        %2072 = vadd.xlane.f32.xlu0 %v2071
        %v2073 = vpop.xlane.xlu0 %2072
        %v2074 = vsel %vm869, %v2070, 0.0
        %2075 = vadd.xlane.f32.xlu0 %v2074
        %v2076 = vpop.xlane.xlu0 %2075
        %v2077 = vrcp.pop %v2073
        %v2078 = vrcp.pop %v2076
        %v2079 = vmul.f32 %v2068, %v2077
        %v2080 = vmul.f32 %v2070, %v2078
        %s2081 = scalar_lea.vmem %s675, 48 [#allocation8]
        %2082 = vst.msk [vmem:[%s2081] sm:$0xff] %vm869, %v2079
        %2083 = vst.msk [vmem:[%s2081 + $0x8] sm:$0xff] %vm869, %v2080
        %2084 = vrot.lane.b32.xlu0 %v858, 40
        %v2085 = vpop.permute.xlu0 %2084
        %v2088 = vsel %vm869, %v2079, 0
        %2090 = vmatprep.subr.mxu0 0.0
        %2091 = vmatpush1.msra.mxu0 %v2085
        %2092 = vmatprep.subr.mxu0 0.0
        %2093 = vmatpush1.msra.mxu0 0.0
        %2094 = vmatprep.subr.mxu0 0.0
        %2095 = vmatpush1.msra.mxu0 0.0
        %2096 = vmatprep.subr.mxu0 0.0
        %2097 = vmatpush1.msra.mxu0 0.0
        %2098 = vmatprep.subr.mxu0 0.0
        %2099 = vmatpush1.msra.mxu0 0.0
        %2100 = vmatprep.subr.mxu0 0.0
        %2101 = vmatpush1.msra.mxu0 0.0
        %2102 = vmatprep.subr.mxu0 0.0
        %2103 = vmatpush1.msra.mxu0 0.0
        %2104 = vmatprep.subr.mxu0 0.0
        %2105 = vmatpush1.msra.mxu0 0.0
        %2106 = vmatprep.subr.mxu0 0.0
        %2107 = vmatpush1.msra.mxu0 0.0
        %2108 = vmatprep.subr.mxu0 0.0
        %2109 = vmatpush1.msra.mxu0 0.0
        %2110 = vmatprep.subr.mxu0 0.0
        %2111 = vmatpush1.msra.mxu0 0.0
        %2112 = vmatprep.subr.mxu0 0.0
        %2113 = vmatpush1.msra.mxu0 0.0
        %2114 = vmatprep.subr.mxu0 0.0
        %2115 = vmatpush1.msra.mxu0 0.0
        %2116 = vmatprep.subr.mxu0 0.0
        %2117 = vmatpush1.msra.mxu0 0.0
        %2118 = vmatprep.subr.mxu0 0.0
        %2119 = vmatpush1.msra.mxu0 0.0
        %2120 = vmatprep.subr.mxu0 0.0
        %2121 = vmatpush1.msra.mxu0 0.0
        %2122 = vmatprep.subr.mxu0 0.0
        %2123 = vmatpush1.msra.mxu0 0.0
        %2124 = vmatprep.subr.mxu0 0.0
        %2125 = vmatpush1.msra.mxu0 0.0
        %2126 = vmatprep.subr.mxu0 0.0
        %2127 = vmatpush1.msra.mxu0 0.0
        %2128 = vmatprep.subr.mxu0 0.0
        %2129 = vmatpush1.msra.mxu0 0.0
        %2130 = vmatprep.subr.mxu0 0.0
        %2131 = vmatpush1.msra.mxu0 0.0
        %2132 = vmatprep.subr.mxu0 0.0
        %2133 = vmatpush1.msra.mxu0 0.0
        %2134 = vmatprep.subr.mxu0 0.0
        %2135 = vmatpush1.msra.mxu0 0.0
        %2136 = vmatprep.subr.mxu0 0.0
        %2137 = vmatpush1.msra.mxu0 0.0
        %2138 = vmatprep.subr.mxu0 0.0
        %2139 = vmatpush1.msra.mxu0 0.0
        %2140 = vmatprep.subr.mxu0 0.0
        %2141 = vmatpush1.msra.mxu0 0.0
        %2142 = vmatprep.subr.mxu0 0.0
        %2143 = vmatpush1.msra.mxu0 0.0
        %2144 = vmatprep.subr.mxu0 0.0
        %2145 = vmatpush1.msra.mxu0 0.0
        %2146 = vmatprep.subr.mxu0 0.0
        %2147 = vmatpush1.msra.mxu0 0.0
        %2148 = vmatprep.subr.mxu0 0.0
        %2149 = vmatpush1.msra.mxu0 0.0
        %2150 = vmatprep.subr.mxu0 0.0
        %2151 = vmatpush1.msra.mxu0 0.0
        %2152 = vmatprep.subr.mxu0 0.0
        %2153 = vmatpush1.msra.mxu0 0.0
        %2154 = vmatprep.mubr.f32.mxu0 0.0
        %2155 = vmatmul.mubr.f32.gmra.mrb[0].mxu0 %v2088
        %v2156 = vpop.f32.mrb[0].mxu0
        %v2157 = vadd.f32 0.0, %v2156
        %v2158 = vpop.f32.mrb[0].mxu0
        %2159 = vdwg.mxu0
        %2160 = vrot.lane.b32.xlu0 %v863, 40
        %v2161 = vpop.permute.xlu0 %2160
        %v2164 = vsel %vm869, %v2080, 0
        %2166 = vmatprep.subr.mxu0 0.0
        %2167 = vmatpush1.msra.mxu0 %v2161
        %2168 = vmatprep.subr.mxu0 0.0
        %2169 = vmatpush1.msra.mxu0 0.0
        %2170 = vmatprep.subr.mxu0 0.0
        %2171 = vmatpush1.msra.mxu0 0.0
        %2172 = vmatprep.subr.mxu0 0.0
        %2173 = vmatpush1.msra.mxu0 0.0
        %2174 = vmatprep.subr.mxu0 0.0
        %2175 = vmatpush1.msra.mxu0 0.0
        %2176 = vmatprep.subr.mxu0 0.0
        %2177 = vmatpush1.msra.mxu0 0.0
        %2178 = vmatprep.subr.mxu0 0.0
        %2179 = vmatpush1.msra.mxu0 0.0
        %2180 = vmatprep.subr.mxu0 0.0
        %2181 = vmatpush1.msra.mxu0 0.0
        %2182 = vmatprep.subr.mxu0 0.0
        %2183 = vmatpush1.msra.mxu0 0.0
        %2184 = vmatprep.subr.mxu0 0.0
        %2185 = vmatpush1.msra.mxu0 0.0
        %2186 = vmatprep.subr.mxu0 0.0
        %2187 = vmatpush1.msra.mxu0 0.0
        %2188 = vmatprep.subr.mxu0 0.0
        %2189 = vmatpush1.msra.mxu0 0.0
        %2190 = vmatprep.subr.mxu0 0.0
        %2191 = vmatpush1.msra.mxu0 0.0
        %2192 = vmatprep.subr.mxu0 0.0
        %2193 = vmatpush1.msra.mxu0 0.0
        %2194 = vmatprep.subr.mxu0 0.0
        %2195 = vmatpush1.msra.mxu0 0.0
        %2196 = vmatprep.subr.mxu0 0.0
        %2197 = vmatpush1.msra.mxu0 0.0
        %2198 = vmatprep.subr.mxu0 0.0
        %2199 = vmatpush1.msra.mxu0 0.0
        %2200 = vmatprep.subr.mxu0 0.0
        %2201 = vmatpush1.msra.mxu0 0.0
        %2202 = vmatprep.subr.mxu0 0.0
        %2203 = vmatpush1.msra.mxu0 0.0
        %2204 = vmatprep.subr.mxu0 0.0
        %2205 = vmatpush1.msra.mxu0 0.0
        %2206 = vmatprep.subr.mxu0 0.0
        %2207 = vmatpush1.msra.mxu0 0.0
        %2208 = vmatprep.subr.mxu0 0.0
        %2209 = vmatpush1.msra.mxu0 0.0
        %2210 = vmatprep.subr.mxu0 0.0
        %2211 = vmatpush1.msra.mxu0 0.0
        %2212 = vmatprep.subr.mxu0 0.0
        %2213 = vmatpush1.msra.mxu0 0.0
        %2214 = vmatprep.subr.mxu0 0.0
        %2215 = vmatpush1.msra.mxu0 0.0
        %2216 = vmatprep.subr.mxu0 0.0
        %2217 = vmatpush1.msra.mxu0 0.0
        %2218 = vmatprep.subr.mxu0 0.0
        %2219 = vmatpush1.msra.mxu0 0.0
        %2220 = vmatprep.subr.mxu0 0.0
        %2221 = vmatpush1.msra.mxu0 0.0
        %2222 = vmatprep.subr.mxu0 0.0
        %2223 = vmatpush1.msra.mxu0 0.0
        %2224 = vmatprep.subr.mxu0 0.0
        %2225 = vmatpush1.msra.mxu0 0.0
        %2226 = vmatprep.subr.mxu0 0.0
        %2227 = vmatpush1.msra.mxu0 0.0
        %2228 = vmatprep.subr.mxu0 0.0
        %2229 = vmatpush1.msra.mxu0 0.0
        %2230 = vmatprep.mubr.f32.mxu0 0.0
        %2231 = vmatmul.mubr.f32.gmra.mrb[0].mxu0 %v2164
        %v2232 = vpop.f32.mrb[0].mxu0
        %v2233 = vadd.f32 0.0, %v2232
        %v2234 = vpop.f32.mrb[0].mxu0
        %2235 = vdwg.mxu0
        %2238 = vrot.lane.b32.xlu0 %v2157, 24
        %v2239 = vpop.permute.xlu0 %2238
        %2240 = vrot.lane.b32.xlu0 %v2233, 24
        %v2241 = vpop.permute.xlu0 %2240
        %vm2244 = vcmask 261312
        %2245 = vst.msk [vmem:[#allocation3] sm:$0xff] %vm2244, %v2239
        %2246 = vst.msk [vmem:[#allocation3 + $0x8] sm:$0xff] %vm2244, %v2241
        %v2247 = vld [vmem:[#allocation3] sm:$0xff]
        %v2248 = vld [vmem:[#allocation3 + $0x8] sm:$0xff]
        %v2249 = vld [vmem:[%s694] sm:$0xff]
        %v2250 = vld [vmem:[%s694 + $0x8] sm:$0xff]
        %v2251 = vld [vmem:[%s694 + $0x10] sm:$0xff]
        %v2252 = vld [vmem:[%s694 + $0x18] sm:$0xff]
        %v2253 = vld [vmem:[%s697] sm:$0x1]
        %v2255 = vlaneseq
        %v2256 = vshrl.u32 %v2255, 7
        %v2257 = vsub.s32 0, %v2256
        %v2258 = vrot.slane %v2253, %v2257
        %v2261 = vsel %vm784, %v2247, 0
        %v2264 = vsel %vm784, %v2248, 0
        %2266 = vmatprep.subr.mxu0 0.0
        %2267 = vmatpush1.msra.mxu0 %v2249
        %2268 = vmatprep.subr.mxu0 0.0
        %2269 = vmatpush1.msra.mxu0 %v2250
        %2270 = vmatprep.subr.mxu0 0.0
        %2271 = vmatpush1.msra.mxu0 %v2251
        %2272 = vmatprep.subr.mxu0 0.0
        %2273 = vmatpush1.msra.mxu0 %v2252
        %2274 = vmatprep.subr.mxu0 0.0
        %2275 = vmatpush1.msra.mxu0 0.0
        %2276 = vmatprep.subr.mxu0 0.0
        %2277 = vmatpush1.msra.mxu0 0.0
        %2278 = vmatprep.subr.mxu0 0.0
        %2279 = vmatpush1.msra.mxu0 0.0
        %2280 = vmatprep.subr.mxu0 0.0
        %2281 = vmatpush1.msra.mxu0 0.0
        %2282 = vmatprep.subr.mxu0 0.0
        %2283 = vmatpush1.msra.mxu0 0.0
        %2284 = vmatprep.subr.mxu0 0.0
        %2285 = vmatpush1.msra.mxu0 0.0
        %2286 = vmatprep.subr.mxu0 0.0
        %2287 = vmatpush1.msra.mxu0 0.0
        %2288 = vmatprep.subr.mxu0 0.0
        %2289 = vmatpush1.msra.mxu0 0.0
        %2290 = vmatprep.subr.mxu0 0.0
        %2291 = vmatpush1.msra.mxu0 0.0
        %2292 = vmatprep.subr.mxu0 0.0
        %2293 = vmatpush1.msra.mxu0 0.0
        %2294 = vmatprep.subr.mxu0 0.0
        %2295 = vmatpush1.msra.mxu0 0.0
        %2296 = vmatprep.subr.mxu0 0.0
        %2297 = vmatpush1.msra.mxu0 0.0
        %2298 = vmatprep.subr.mxu0 0.0
        %2299 = vmatpush1.msra.mxu0 0.0
        %2300 = vmatprep.subr.mxu0 0.0
        %2301 = vmatpush1.msra.mxu0 0.0
        %2302 = vmatprep.subr.mxu0 0.0
        %2303 = vmatpush1.msra.mxu0 0.0
        %2304 = vmatprep.subr.mxu0 0.0
        %2305 = vmatpush1.msra.mxu0 0.0
        %2306 = vmatprep.subr.mxu0 0.0
        %2307 = vmatpush1.msra.mxu0 0.0
        %2308 = vmatprep.subr.mxu0 0.0
        %2309 = vmatpush1.msra.mxu0 0.0
        %2310 = vmatprep.subr.mxu0 0.0
        %2311 = vmatpush1.msra.mxu0 0.0
        %2312 = vmatprep.subr.mxu0 0.0
        %2313 = vmatpush1.msra.mxu0 0.0
        %2314 = vmatprep.subr.mxu0 0.0
        %2315 = vmatpush1.msra.mxu0 0.0
        %2316 = vmatprep.subr.mxu0 0.0
        %2317 = vmatpush1.msra.mxu0 0.0
        %2318 = vmatprep.subr.mxu0 0.0
        %2319 = vmatpush1.msra.mxu0 0.0
        %2320 = vmatprep.subr.mxu0 0.0
        %2321 = vmatpush1.msra.mxu0 0.0
        %2322 = vmatprep.subr.mxu0 0.0
        %2323 = vmatpush1.msra.mxu0 0.0
        %2324 = vmatprep.subr.mxu0 0.0
        %2325 = vmatpush1.msra.mxu0 0.0
        %2326 = vmatprep.subr.mxu0 0.0
        %2327 = vmatpush1.msra.mxu0 0.0
        %2328 = vmatprep.subr.mxu0 0.0
        %2329 = vmatpush1.msra.mxu0 0.0
        %2330 = vmatprep.mubr.f32.mxu0 0.0
        %2331 = vmatmul.mubr.f32.gmra.mrb[0].mxu0 %v2261
        %v2332 = vpop.f32.mrb[0].mxu0
        %v2333 = vadd.f32 %v2258, %v2332
        %v2334 = vpop.f32.mrb[0].mxu0
        %2335 = vmatprep.mubr.f32.mxu0 0.0
        %2336 = vmatmul.mubr.f32.gmra.mrb[0].mxu0 %v2264
        %v2337 = vpop.f32.mrb[0].mxu0
        %v2338 = vadd.f32 %v2258, %v2337
        %v2339 = vpop.f32.mrb[0].mxu0
        %2340 = vdwg.mxu0
        %v2341 = vadd.f32 %v2333, %v767
        %v2342 = vadd.f32 %v2338, %v768
        %v2343 = vld [vmem:[%s700] sm:$0x1]
        %v2344 = vld [vmem:[%s703] sm:$0x1]
        %v2345 = vsel %vm784, %v2341, 0.0
        %2346 = vadd.xlane.f32.xlu0 %v2345
        %v2347 = vpop.xlane.xlu0 %2346
        %v2348 = vsel %vm784, %v2342, 0.0
        %2349 = vadd.xlane.f32.xlu0 %v2348
        %v2350 = vpop.xlane.xlu0 %2349
        %v2351 = vrcp.pop 32.0
        %v2352 = vmul.f32 %v2347, %v2351
        %v2353 = vmul.f32 %v2350, %v2351
        %v2354 = vsub.f32 %v2341, %v2352
        %v2355 = vsub.f32 %v2342, %v2353
        %v2356 = vmul.f32 %v2354, %v2354
        %v2357 = vmul.f32 %v2355, %v2355
        %v2358 = vsel %vm784, %v2356, 0.0
        %2359 = vadd.xlane.f32.xlu0 %v2358
        %v2360 = vpop.xlane.xlu0 %2359
        %v2361 = vsel %vm784, %v2357, 0.0
        %2362 = vadd.xlane.f32.xlu0 %v2361
        %v2363 = vpop.xlane.xlu0 %2362
        %v2364 = vmul.f32 %v2360, %v2351
        %v2365 = vmul.f32 %v2363, %v2351
        %v2366 = vadd.f32 %v2364, 1e-05
        %v2367 = vadd.f32 %v2365, 1e-05
        %v2368 = vrsqrt.pop %v2366
        %v2369 = vrsqrt.pop %v2367
        %v2370 = vmul.f32 %v2354, %v2368
        %v2371 = vmul.f32 %v2355, %v2369
        %v2373 = vlaneseq
        %v2374 = vshrl.u32 %v2373, 7
        %v2375 = vsub.s32 0, %v2374
        %v2376 = vrot.slane %v2343, %v2375
        %v2378 = vmul.f32 %v2370, %v2376
        %v2379 = vmul.f32 %v2371, %v2376
        %v2381 = vlaneseq
        %v2382 = vshrl.u32 %v2381, 7
        %v2383 = vsub.s32 0, %v2382
        %v2384 = vrot.slane %v2344, %v2383
        %v2386 = vadd.f32 %v2378, %v2384
        %v2387 = vadd.f32 %v2379, %v2384
        %v2388 = vld [vmem:[%s708] sm:$0xff]
        %v2389 = vld [vmem:[%s708 + $0x8] sm:$0xff]
        %v2390 = vld [vmem:[%s708 + $0x10] sm:$0xff]
        %v2391 = vld [vmem:[%s708 + $0x18] sm:$0xff]
        %v2392 = vld [vmem:[%s711] sm:$0x1]
        %v2394 = vlaneseq
        %v2395 = vshrl.u32 %v2394, 7
        %v2396 = vsub.s32 0, %v2395
        %v2397 = vrot.slane %v2392, %v2396
        %v2400 = vsel %vm784, %v2386, 0
        %v2403 = vsel %vm784, %v2387, 0
        %2405 = vmatprep.subr.mxu0 0.0
        %2406 = vmatpush1.msra.mxu0 %v2388
        %2407 = vmatprep.subr.mxu0 0.0
        %2408 = vmatpush1.msra.mxu0 %v2389
        %2409 = vmatprep.subr.mxu0 0.0
        %2410 = vmatpush1.msra.mxu0 %v2390
        %2411 = vmatprep.subr.mxu0 0.0
        %2412 = vmatpush1.msra.mxu0 %v2391
        %2413 = vmatprep.subr.mxu0 0.0
        %2414 = vmatpush1.msra.mxu0 0.0
        %2415 = vmatprep.subr.mxu0 0.0
        %2416 = vmatpush1.msra.mxu0 0.0
        %2417 = vmatprep.subr.mxu0 0.0
        %2418 = vmatpush1.msra.mxu0 0.0
        %2419 = vmatprep.subr.mxu0 0.0
        %2420 = vmatpush1.msra.mxu0 0.0
        %2421 = vmatprep.subr.mxu0 0.0
        %2422 = vmatpush1.msra.mxu0 0.0
        %2423 = vmatprep.subr.mxu0 0.0
        %2424 = vmatpush1.msra.mxu0 0.0
        %2425 = vmatprep.subr.mxu0 0.0
        %2426 = vmatpush1.msra.mxu0 0.0
        %2427 = vmatprep.subr.mxu0 0.0
        %2428 = vmatpush1.msra.mxu0 0.0
        %2429 = vmatprep.subr.mxu0 0.0
        %2430 = vmatpush1.msra.mxu0 0.0
        %2431 = vmatprep.subr.mxu0 0.0
        %2432 = vmatpush1.msra.mxu0 0.0
        %2433 = vmatprep.subr.mxu0 0.0
        %2434 = vmatpush1.msra.mxu0 0.0
        %2435 = vmatprep.subr.mxu0 0.0
        %2436 = vmatpush1.msra.mxu0 0.0
        %2437 = vmatprep.subr.mxu0 0.0
        %2438 = vmatpush1.msra.mxu0 0.0
        %2439 = vmatprep.subr.mxu0 0.0
        %2440 = vmatpush1.msra.mxu0 0.0
        %2441 = vmatprep.subr.mxu0 0.0
        %2442 = vmatpush1.msra.mxu0 0.0
        %2443 = vmatprep.subr.mxu0 0.0
        %2444 = vmatpush1.msra.mxu0 0.0
        %2445 = vmatprep.subr.mxu0 0.0
        %2446 = vmatpush1.msra.mxu0 0.0
        %2447 = vmatprep.subr.mxu0 0.0
        %2448 = vmatpush1.msra.mxu0 0.0
        %2449 = vmatprep.subr.mxu0 0.0
        %2450 = vmatpush1.msra.mxu0 0.0
        %2451 = vmatprep.subr.mxu0 0.0
        %2452 = vmatpush1.msra.mxu0 0.0
        %2453 = vmatprep.subr.mxu0 0.0
        %2454 = vmatpush1.msra.mxu0 0.0
        %2455 = vmatprep.subr.mxu0 0.0
        %2456 = vmatpush1.msra.mxu0 0.0
        %2457 = vmatprep.subr.mxu0 0.0
        %2458 = vmatpush1.msra.mxu0 0.0
        %2459 = vmatprep.subr.mxu0 0.0
        %2460 = vmatpush1.msra.mxu0 0.0
        %2461 = vmatprep.subr.mxu0 0.0
        %2462 = vmatpush1.msra.mxu0 0.0
        %2463 = vmatprep.subr.mxu0 0.0
        %2464 = vmatpush1.msra.mxu0 0.0
        %2465 = vmatprep.subr.mxu0 0.0
        %2466 = vmatpush1.msra.mxu0 0.0
        %2467 = vmatprep.subr.mxu0 0.0
        %2468 = vmatpush1.msra.mxu0 0.0
        %2469 = vmatprep.mubr.f32.mxu0 0.0
        %2470 = vmatmul.mubr.f32.gmra.mrb[0].mxu0 %v2400
        %v2471 = vpop.f32.mrb[0].mxu0
        %v2472 = vadd.f32 %v2397, %v2471
        %v2473 = vpop.f32.mrb[0].mxu0
        %2474 = vmatprep.mubr.f32.mxu0 0.0
        %2475 = vmatmul.mubr.f32.gmra.mrb[0].mxu0 %v2403
        %v2476 = vpop.f32.mrb[0].mxu0
        %v2477 = vadd.f32 %v2397, %v2476
        %v2478 = vpop.f32.mrb[0].mxu0
        %2479 = vdwg.mxu0
        %v2480 = vmul.f32 %v2472, 0.5
        %v2481 = vmul.f32 %v2477, 0.5
        %v2482 = vmul.f32 %v2472, 0.70710677
        %v2483 = vmul.f32 %v2477, 0.70710677
        %v2484 = verf.f32.pop %v2482
        %v2485 = verf.f32.pop %v2483
        %v2486 = vadd.f32 %v2484, 1.0
        %v2487 = vadd.f32 %v2485, 1.0
        %v2488 = vmul.f32 %v2480, %v2486
        %v2489 = vmul.f32 %v2481, %v2487
        %v2490 = vld [vmem:[%s716] sm:$0xff]
        %v2491 = vld [vmem:[%s716 + $0x8] sm:$0xff]
        %v2492 = vld [vmem:[%s716 + $0x10] sm:$0xff]
        %v2493 = vld [vmem:[%s716 + $0x18] sm:$0xff]
        %v2494 = vld [vmem:[%s716 + $0x20] sm:$0xff]
        %v2495 = vld [vmem:[%s716 + $0x28] sm:$0xff]
        %v2496 = vld [vmem:[%s716 + $0x30] sm:$0xff]
        %v2497 = vld [vmem:[%s716 + $0x38] sm:$0xff]
        %v2498 = vld [vmem:[%s719] sm:$0x1]
        %v2500 = vlaneseq
        %v2501 = vshrl.u32 %v2500, 7
        %v2502 = vsub.s32 0, %v2501
        %v2503 = vrot.slane %v2498, %v2502
        %vm2505 = vcmask 523264
        %v2507 = vsel %vm2505, %v2488, 0
        %v2510 = vsel %vm2505, %v2489, 0
        %2512 = vmatprep.subr.mxu0 0.0
        %2513 = vmatpush1.msra.mxu0 %v2490
        %2514 = vmatprep.subr.mxu0 0.0
        %2515 = vmatpush1.msra.mxu0 %v2491
        %2516 = vmatprep.subr.mxu0 0.0
        %2517 = vmatpush1.msra.mxu0 %v2492
        %2518 = vmatprep.subr.mxu0 0.0
        %2519 = vmatpush1.msra.mxu0 %v2493
        %2520 = vmatprep.subr.mxu0 0.0
        %2521 = vmatpush1.msra.mxu0 %v2494
        %2522 = vmatprep.subr.mxu0 0.0
        %2523 = vmatpush1.msra.mxu0 %v2495
        %2524 = vmatprep.subr.mxu0 0.0
        %2525 = vmatpush1.msra.mxu0 %v2496
        %2526 = vmatprep.subr.mxu0 0.0
        %2527 = vmatpush1.msra.mxu0 %v2497
        %2528 = vmatprep.subr.mxu0 0.0
        %2529 = vmatpush1.msra.mxu0 0.0
        %2530 = vmatprep.subr.mxu0 0.0
        %2531 = vmatpush1.msra.mxu0 0.0
        %2532 = vmatprep.subr.mxu0 0.0
        %2533 = vmatpush1.msra.mxu0 0.0
        %2534 = vmatprep.subr.mxu0 0.0
        %2535 = vmatpush1.msra.mxu0 0.0
        %2536 = vmatprep.subr.mxu0 0.0
        %2537 = vmatpush1.msra.mxu0 0.0
        %2538 = vmatprep.subr.mxu0 0.0
        %2539 = vmatpush1.msra.mxu0 0.0
        %2540 = vmatprep.subr.mxu0 0.0
        %2541 = vmatpush1.msra.mxu0 0.0
        %2542 = vmatprep.subr.mxu0 0.0
        %2543 = vmatpush1.msra.mxu0 0.0
        %2544 = vmatprep.subr.mxu0 0.0
        %2545 = vmatpush1.msra.mxu0 0.0
        %2546 = vmatprep.subr.mxu0 0.0
        %2547 = vmatpush1.msra.mxu0 0.0
        %2548 = vmatprep.subr.mxu0 0.0
        %2549 = vmatpush1.msra.mxu0 0.0
        %2550 = vmatprep.subr.mxu0 0.0
        %2551 = vmatpush1.msra.mxu0 0.0
        %2552 = vmatprep.subr.mxu0 0.0
        %2553 = vmatpush1.msra.mxu0 0.0
        %2554 = vmatprep.subr.mxu0 0.0
        %2555 = vmatpush1.msra.mxu0 0.0
        %2556 = vmatprep.subr.mxu0 0.0
        %2557 = vmatpush1.msra.mxu0 0.0
        %2558 = vmatprep.subr.mxu0 0.0
        %2559 = vmatpush1.msra.mxu0 0.0
        %2560 = vmatprep.subr.mxu0 0.0
        %2561 = vmatpush1.msra.mxu0 0.0
        %2562 = vmatprep.subr.mxu0 0.0
        %2563 = vmatpush1.msra.mxu0 0.0
        %2564 = vmatprep.subr.mxu0 0.0
        %2565 = vmatpush1.msra.mxu0 0.0
        %2566 = vmatprep.subr.mxu0 0.0
        %2567 = vmatpush1.msra.mxu0 0.0
        %2568 = vmatprep.subr.mxu0 0.0
        %2569 = vmatpush1.msra.mxu0 0.0
        %2570 = vmatprep.subr.mxu0 0.0
        %2571 = vmatpush1.msra.mxu0 0.0
        %2572 = vmatprep.subr.mxu0 0.0
        %2573 = vmatpush1.msra.mxu0 0.0
        %2574 = vmatprep.subr.mxu0 0.0
        %2575 = vmatpush1.msra.mxu0 0.0
        %2576 = vmatprep.mubr.f32.mxu0 0.0
        %2577 = vmatmul.mubr.f32.gmra.mrb[0].mxu0 %v2507
        %v2578 = vpop.f32.mrb[0].mxu0
        %v2579 = vadd.f32 %v2503, %v2578
        %v2580 = vpop.f32.mrb[0].mxu0
        %2581 = vmatprep.mubr.f32.mxu0 0.0
        %2582 = vmatmul.mubr.f32.gmra.mrb[0].mxu0 %v2510
        %v2583 = vpop.f32.mrb[0].mxu0
        %v2584 = vadd.f32 %v2503, %v2583
        %v2585 = vpop.f32.mrb[0].mxu0
        %2586 = vdwg.mxu0
        %v2587 = vadd.f32 %v2579, %v2386
        %v2588 = vadd.f32 %v2584, %v2387
        %v2589 = vld [vmem:[%s722] sm:$0x1]
        %v2590 = vld [vmem:[%s725] sm:$0x1]
        %v2591 = vsel %vm784, %v2587, 0.0
        %2592 = vadd.xlane.f32.xlu0 %v2591
        %v2593 = vpop.xlane.xlu0 %2592
        %v2594 = vsel %vm784, %v2588, 0.0
        %2595 = vadd.xlane.f32.xlu0 %v2594
        %v2596 = vpop.xlane.xlu0 %2595
        %v2597 = vmul.f32 %v2593, %v2351
        %v2598 = vmul.f32 %v2596, %v2351
        %v2599 = vsub.f32 %v2587, %v2597
        %v2600 = vsub.f32 %v2588, %v2598
        %v2601 = vmul.f32 %v2599, %v2599
        %v2602 = vmul.f32 %v2600, %v2600
        %v2603 = vsel %vm784, %v2601, 0.0
        %2604 = vadd.xlane.f32.xlu0 %v2603
        %v2605 = vpop.xlane.xlu0 %2604
        %v2606 = vsel %vm784, %v2602, 0.0
        %2607 = vadd.xlane.f32.xlu0 %v2606
        %v2608 = vpop.xlane.xlu0 %2607
        %v2609 = vmul.f32 %v2605, %v2351
        %v2610 = vmul.f32 %v2608, %v2351
        %v2611 = vadd.f32 %v2609, 1e-05
        %v2612 = vadd.f32 %v2610, 1e-05
        %v2613 = vrsqrt.pop %v2611
        %v2614 = vrsqrt.pop %v2612
        %v2615 = vmul.f32 %v2599, %v2613
        %v2616 = vmul.f32 %v2600, %v2614
        %v2618 = vlaneseq
        %v2619 = vshrl.u32 %v2618, 7
        %v2620 = vsub.s32 0, %v2619
        %v2621 = vrot.slane %v2589, %v2620
        %v2623 = vmul.f32 %v2615, %v2621
        %v2624 = vmul.f32 %v2616, %v2621
        %v2626 = vlaneseq
        %v2627 = vshrl.u32 %v2626, 7
        %v2628 = vsub.s32 0, %v2627
        %v2629 = vrot.slane %v2590, %v2628
        %v2631 = vadd.f32 %v2623, %v2629
        %v2632 = vadd.f32 %v2624, %v2629
        %2633 = vst.msk [vmem:[#allocation7] sm:$0xff] %vm784, %v2631
        %2634 = vst.msk [vmem:[#allocation7 + $0x8] sm:$0xff] %vm784, %v2632
        %s2635 = sand.u32 %s444, 1
        %s2636 = scalar_lea.sflag [#allocation9], %s2635
        %s2637 = sand.u32 %s444, 1
        %s2638 = smul.addr %s2637, 64
        %s2639 = scalar_lea.vmem [#allocation8], %s2638
        // Predicated region
        $region85: #{tpu_custom_call.1} parent=75 // pred_check
          %p2640 = pneg %p426
        $region86: #{tpu_custom_call.1} parent=75 // pred_check_branch
          %2642 = sbr.rel (%p2640) target = $region88
        $region87: #{tpu_custom_call.1} parent=75 // pred_region
          %s2643 = smul.u32 2, %s36
          %s2645 = ssub.s32 256, 256
          %2646 = vsyncadd [#allocation6], %s2645
          %s2647 = smul.addr %s2643, 128
          %s2648 = scalar_lea.hbm %s14, %s2647
          %s2649 = sshll.u32 [#allocation7], 4
          %s2650 = int_to_ptr.vmem [resolvable:$true] %s2649
          %2655 = dma.vmem_to_hbm [thread:$0]  %s2650, 256, %s2648, [#allocation6], 128, 128, 8
        $region88: #{tpu_custom_call.1} parent=75 // pred_fallthru
          _
        // Predicated region
        $region89: #{tpu_custom_call.1} parent=75 // pred_check
          %p2656 = pneg %p454
        $region90: #{tpu_custom_call.1} parent=75 // pred_check_branch
          %2658 = sbr.rel (%p2656) target = $region92
        $region91: #{tpu_custom_call.1} parent=75 // pred_region
          %s2659 = smul.u32 2, %s36
          %s2661 = ssub.s32 1024, 1024
          %2662 = vsyncadd %s2636, %s2661
          %s2663 = smul.addr %s37, 8
          %s2664 = sadd.s32 %s2659, %s2663
          %s2665 = smul.addr %s2664, 128
          %s2666 = scalar_lea.hbm %s15, %s2665
          %s2667 = sshll.u32 %s2639, 4
          %s2668 = int_to_ptr.vmem [resolvable:$true] %s2667
          %2673 = dma.vmem_to_hbm [thread:$0]  %s2668, 1024, %s2666, %s2636, 128, 128, 8
        $region92: #{tpu_custom_call.1} parent=75 // pred_fallthru
          _
        // Predicated region
        $region93: #{tpu_custom_call.1} parent=75 // pred_check
          %p2674 = pneg %p426
        $region94: #{tpu_custom_call.1} parent=75 // pred_check_branch
          %2676 = sbr.rel (%p2674) target = $region96
        $region95: #{tpu_custom_call.1} parent=75 // pred_region
          %2677 = dma.done [#allocation6], 256
        $region96: #{tpu_custom_call.1} parent=75 // pred_fallthru
          _
      $region76: #{tpu_custom_call.1} parent=5 // pred_fallthru
        _
      %p2678 = scmp.le.s32.totalorder 2, %s27
      // Predicated region
      $region97: #{tpu_custom_call.1} parent=5 // pred_check
        %p2679 = pneg %p2678
      $region98: #{tpu_custom_call.1} parent=5 // pred_check_branch
        %2681 = sbr.rel (%p2679) target = $region100
      $region99: #{tpu_custom_call.1} parent=5 // pred_region
        %s2682 = ssub.s32 %s27, 2
        // Predicated region
        $region101: #{tpu_custom_call.1} parent=99 // pred_check
          %p2683 = pneg %p460
        $region102: #{tpu_custom_call.1} parent=99 // pred_check_branch
          %2685 = sbr.rel (%p2683) target = $region104
        $region103: #{tpu_custom_call.1} parent=99 // pred_region
          %s2686 = sand.u32 %s445, 1
          %s2687 = scalar_lea.sflag [#allocation9], %s2686
          %s2688 = sand.u32 %s445, 1
          %s2689 = smul.addr %s2688, 64
          %s2690 = scalar_lea.vmem [#allocation8], %s2689
          %2691 = dma.done %s2687, 1024
        $region104: #{tpu_custom_call.1} parent=99 // pred_fallthru
          _
      $region100: #{tpu_custom_call.1} parent=5 // pred_fallthru
        _
    $region6: #{tpu_custom_call.1} parent=1 // loop_footer
      %s31 = sadd.s32 1, %s27
    $region7: #{tpu_custom_call.1} parent=1 // loop_footer_branch
      %26 = sbr.rel target = $region3
    $region8: #{tpu_custom_call.1} parent=1 // loop_exit
      _
    %2692 = vsyncpa [#allocation5], 1
    %s2693 = scalar_lea.sflag [#allocation5], 1
    %2694 = vsyncpa %s2693, 1
    %2695 = vsyncpa [#allocation6], 1
    %s2696 = scalar_lea.sflag [#allocation6], 1
    %2697 = vsyncpa %s2696, 1
    %2698 = vsyncpa [#allocation9], 1
    %s2699 = scalar_lea.sflag [#allocation9], 1
    %2700 = vsyncpa %s2699, 1

</llo_original>
